<compile_context>
chip_gen: v7x
topology: tpu7x:2x2x1
jax: 0.10.0
libtpu: 0.0.40
codegen_flags: <defaults>
</compile_context>

<pallas_src>
import functools

import jax
import jax.numpy as jnp
from jax.experimental import pallas as pl
from jax.experimental.pallas import tpu as pltpu


def deepar_kernel(x_ref, dec_base_ref,
                  e_wih_ref, e_whh_ref, e_bih_ref, e_bhh_ref,
                  d_wihx_ref, d_wcat_ref, d_bih_ref, d_bhh_ref,
                  fc_w_ref, fc_b_ref,
                  out_ref, *, T, B, G):
    G3 = 3 * G

    def sigmoid(v):
        # single EUP tanh instead of exp + divide on the serial critical path
        return 0.5 * (jnp.tanh(0.5 * v) + 1.0)

    def gru_combine(gi, gh, h_prev):
        # PyTorch gate order [reset, update, new]; each gate is its own 128-lane block,
        # so these slices are plain full-vreg reads (no lane shuffles).
        r = sigmoid(gi[:, 0:G] + gh[:, 0:G])
        z = sigmoid(gi[:, G:2 * G] + gh[:, G:2 * G])
        n = jnp.tanh(gi[:, 2 * G:3 * G] + r * gh[:, 2 * G:3 * G])
        return (1.0 - z) * n + z * h_prev

    # ---------------- Encoder GRU (h0 = 0) ----------------
    e_whh = e_whh_ref[...]                       # (G, 3G)
    e_bhh = e_bhh_ref[...]                       # (1, 3G)

    # Input-gate terms have no h dependence -> one vectorized pre-pass off the chain.
    x_all = x_ref[...]                           # (T, B)
    gi_all = (x_all[:, :, None] * e_wih_ref[...][None, :, :]
              + e_bih_ref[...][None, :, :])      # (T, B, 3G)

    h = jnp.zeros((B, G), jnp.float32)           # padded hidden; lanes >= H stay exactly 0
    for t in range(T):                           # fully unrolled, static indices
        gh = jnp.dot(h, e_whh, preferred_element_type=jnp.float32) + e_bhh
        h = gru_combine(gi_all[t], gh, h)

    # ---------------- Decoder loop ----------------
    # Loop-invariant input-gate contribution of the (frozen) concat base, hoisted.
    dec_gi = dec_base_ref[...] * d_wihx_ref[...] + d_bih_ref[...]   # (B, 3G)
    d_wcat = d_wcat_ref[...]                     # (G, 6G)  fused [W_ih(h-part) | W_hh]
    d_bhh = d_bhh_ref[...]                       # (1, 3G)

    hs = []
    for _ in range(T):                           # fully unrolled
        g = jnp.dot(h, d_wcat, preferred_element_type=jnp.float32)  # one MXU issue/step
        h = gru_combine(g[:, 0:G3] + dec_gi, g[:, G3:2 * G3] + d_bhh, h)
        hs.append(h)

    # ---------------- fc head + store, batched over all T steps ----------------
    h_hist = jnp.stack(hs, axis=0)                                   # (T, B, G)
    y = jnp.sum(h_hist * fc_w_ref[...][None, :, :], axis=-1)         # (T, B)
    out_ref[...] = y + fc_b_ref[...]                                 # single lane-batched store


def make_params(key, H, input_size=1, output_size=1):
    ks = jax.random.split(key, 10)
    s = 1.0 / (H ** 0.5)
    u = lambda k, shape: jax.random.uniform(k, shape, jnp.float32, -s, s)
    return dict(
        enc_w_ih=u(ks[0], (3 * H, input_size)),
        enc_w_hh=u(ks[1], (3 * H, H)),
        enc_b_ih=u(ks[2], (3 * H,)),
        enc_b_hh=u(ks[3], (3 * H,)),
        dec_w_ih=u(ks[4], (3 * H, input_size + H)),
        dec_w_hh=u(ks[5], (3 * H, H)),
        dec_b_ih=u(ks[6], (3 * H,)),
        dec_b_hh=u(ks[7], (3 * H,)),
        fc_w=u(ks[8], (output_size, H)),
        fc_b=u(ks[9], (output_size,)),
    )


def deepar_forward(x, p, H):
    """x: (B, T) f32; returns (B, T, 1) matching the PyTorch forward's output layout."""
    B, T = x.shape
    assert B == T, "reference torch.cat is only shape-valid when seq_len == batch"
    G = ((H + 127) // 128) * 128          # per-gate lane block (also padded hidden dim)
    f32 = jnp.float32

    def pad_gate_cols(w, n_gates=3):
        # (rows, n_gates*H) -> (rows, n_gates*G): gate g occupies cols [g*G, g*G+H), rest 0.
        parts = [jnp.pad(w[:, g * H:(g + 1) * H], ((0, 0), (0, G - H)))
                 for g in range(n_gates)]
        return jnp.concatenate(parts, axis=1)

    def pad_rows(w):
        return jnp.pad(w, ((0, G - w.shape[0]), (0, 0)))

    x_tm = jnp.transpose(x).astype(f32)                    # (T, B) time-major, no size-1 dim
    # encoder_input[-1, :, :] on the un-permuted (B, T, 1) tensor -> x[B-1, :]; (T,1)==(B,1).
    dec_base = x[B - 1, :][:, None].astype(f32)

    e_wih = pad_gate_cols(p["enc_w_ih"].T.astype(f32))               # (1, 3G)
    e_whh = pad_rows(pad_gate_cols(p["enc_w_hh"].T.astype(f32)))     # (G, 3G)
    e_bih = pad_gate_cols(p["enc_b_ih"].astype(f32)[None, :])        # (1, 3G)
    e_bhh = pad_gate_cols(p["enc_b_hh"].astype(f32)[None, :])        # (1, 3G)

    d_wih_t = p["dec_w_ih"].T.astype(f32)                            # (1+H, 3H)
    d_wihx = pad_gate_cols(d_wih_t[:1, :])                           # (1, 3G) scalar-input rows
    d_wihh = pad_rows(pad_gate_cols(d_wih_t[1:, :]))                 # (G, 3G) hidden-input rows
    d_whh = pad_rows(pad_gate_cols(p["dec_w_hh"].T.astype(f32)))     # (G, 3G)
    d_wcat = jnp.concatenate([d_wihh, d_whh], axis=1)                # (G, 6G) fused decoder weight
    d_bih = pad_gate_cols(p["dec_b_ih"].astype(f32)[None, :])        # (1, 3G)
    d_bhh = pad_gate_cols(p["dec_b_hh"].astype(f32)[None, :])        # (1, 3G)

    fc_w = jnp.pad(p["fc_w"].astype(f32), ((0, 0), (0, G - H)))      # (1, G)
    fc_b = p["fc_b"].astype(f32).reshape(1, 1)                       # (1, 1)

    args = (x_tm, dec_base, e_wih, e_whh, e_bih, e_bhh,
            d_wihx, d_wcat, d_bih, d_bhh, fc_w, fc_b)
    in_specs = [pl.BlockSpec(memory_space=pltpu.MemorySpace.VMEM) for _ in args]

    out_tm = pl.pallas_call(
        functools.partial(deepar_kernel, T=T, B=B, G=G),
        out_shape=jax.ShapeDtypeStruct((T, B), jnp.float32),
        in_specs=in_specs,
        out_specs=pl.BlockSpec(memory_space=pltpu.MemorySpace.VMEM),
    )(*args)

    return jnp.transpose(out_tm)[:, :, None]               # (B, T, output_size)


def deepar_reference(x, p, H):
    """Pure-JAX reference (same semantics as the kernel) for correctness checking."""
    B, T = x.shape
    hp = jax.lax.Precision.HIGHEST

    def gru_cell(inp, h, w_ih, w_hh, b_ih, b_hh):
        gi = jnp.dot(inp, w_ih.T, precision=hp) + b_ih
        gh = jnp.dot(h, w_hh.T, precision=hp) + b_hh
        r = jax.nn.sigmoid(gi[:, :H] + gh[:, :H])
        z = jax.nn.sigmoid(gi[:, H:2 * H] + gh[:, H:2 * H])
        n = jnp.tanh(gi[:, 2 * H:] + r * gh[:, 2 * H:])
        return (1.0 - z) * n + z * h

    x_tm = jnp.transpose(x)[:, :, None]
    h = jnp.zeros((B, H), jnp.float32)
    for t in range(T):
        h = gru_cell(x_tm[t], h, p["enc_w_ih"], p["enc_w_hh"], p["enc_b_ih"], p["enc_b_hh"])
    dec_base = x[B - 1, :][:, None]
    ys = []
    for _ in range(T):
        inp = jnp.concatenate([dec_base, h], axis=-1)
        h = gru_cell(inp, h, p["dec_w_ih"], p["dec_w_hh"], p["dec_b_ih"], p["dec_b_hh"])
        ys.append(jnp.dot(h, p["fc_w"].T, precision=hp) + p["fc_b"])
    return jnp.stack(ys).transpose(1, 0, 2)


if __name__ == "__main__":
    B = T = 8        # batch == seq (required by the reference forward's torch.cat)
    H = 32           # hidden_size (module default is 64; 32 keeps the example small)

    key = jax.random.PRNGKey(0)
    kx, kp = jax.random.split(key)
    x = jax.random.normal(kx, (B, T), dtype=jnp.float32)
    params = make_params(kp, H)

    out = deepar_forward(x, params, H)
    out = jax.block_until_ready(out)

    ref = deepar_reference(x, params, H)
    assert out.shape == (B, T, 1), out.shape
    max_err = float(jnp.max(jnp.abs(out - ref)))
    assert jnp.allclose(out, ref, atol=1e-3, rtol=1e-3), f"max abs err = {max_err}"

    print("KERNEL_OK")
</pallas_src>

<mosaic_0001>
module attributes {stable_mosaic.version = 11 : i64} {
  func.func @deepar_kernel(%arg0: memref<8x8xf32, #tpu.memory_space<vmem>>, %arg1: memref<8x1xf32, #tpu.memory_space<vmem>>, %arg2: memref<1x384xf32, #tpu.memory_space<vmem>>, %arg3: memref<128x384xf32, #tpu.memory_space<vmem>>, %arg4: memref<1x384xf32, #tpu.memory_space<vmem>>, %arg5: memref<1x384xf32, #tpu.memory_space<vmem>>, %arg6: memref<1x384xf32, #tpu.memory_space<vmem>>, %arg7: memref<128x768xf32, #tpu.memory_space<vmem>>, %arg8: memref<1x384xf32, #tpu.memory_space<vmem>>, %arg9: memref<1x384xf32, #tpu.memory_space<vmem>>, %arg10: memref<1x128xf32, #tpu.memory_space<vmem>>, %arg11: memref<1x1xf32, #tpu.memory_space<vmem>>, %arg12: memref<8x8xf32, #tpu.memory_space<vmem>>) attributes {dimension_semantics = [], scalar_prefetch = 0 : i64, scratch_operands = 0 : i64, tpu.core_type = #tpu.core_type<tc>} {
    %c0 = arith.constant 0 : index
    %c0_0 = arith.constant 0 : index
    %0 = vector.load %arg3[%c0, %c0_0] : memref<128x384xf32, #tpu.memory_space<vmem>>, vector<128x384xf32>
    %c0_1 = arith.constant 0 : index
    %c0_2 = arith.constant 0 : index
    %1 = vector.load %arg5[%c0_1, %c0_2] : memref<1x384xf32, #tpu.memory_space<vmem>>, vector<1x384xf32>
    %c0_3 = arith.constant 0 : index
    %c0_4 = arith.constant 0 : index
    %2 = vector.load %arg0[%c0_3, %c0_4] : memref<8x8xf32, #tpu.memory_space<vmem>>, vector<8x8xf32>
    %3 = vector.shape_cast %2 : vector<8x8xf32> to vector<8x8x1xf32>
    %c0_5 = arith.constant 0 : index
    %c0_6 = arith.constant 0 : index
    %4 = vector.load %arg2[%c0_5, %c0_6] : memref<1x384xf32, #tpu.memory_space<vmem>>, vector<1x384xf32>
    %5 = vector.shape_cast %4 : vector<1x384xf32> to vector<1x1x384xf32>
    %6 = vector.broadcast %3 : vector<8x8x1xf32> to vector<8x8x384xf32>
    %7 = vector.broadcast %5 : vector<1x1x384xf32> to vector<8x8x384xf32>
    %8 = arith.mulf %6, %7 : vector<8x8x384xf32>
    %c0_7 = arith.constant 0 : index
    %c0_8 = arith.constant 0 : index
    %9 = vector.load %arg4[%c0_7, %c0_8] : memref<1x384xf32, #tpu.memory_space<vmem>>, vector<1x384xf32>
    %10 = vector.shape_cast %9 : vector<1x384xf32> to vector<1x1x384xf32>
    %11 = vector.broadcast %10 : vector<1x1x384xf32> to vector<8x8x384xf32>
    %12 = arith.addf %8, %11 : vector<8x8x384xf32>
    %cst = arith.constant 0.000000e+00 : f32
    %13 = vector.broadcast %cst : f32 to vector<8x128xf32>
    %cst_9 = arith.constant dense<0.000000e+00> : vector<8x384xf32>
    %14 = tpu.matmul %13, %0, %cst_9 {dimension_numbers = #tpu.dot_dimension_numbers<[1], [0], [0], [1], [0, 0, 1, 1], [], []>} : vector<8x128xf32>, vector<128x384xf32>, vector<8x384xf32> -> vector<8x384xf32>
    %15 = vector.broadcast %1 : vector<1x384xf32> to vector<8x384xf32>
    %16 = arith.addf %14, %15 : vector<8x384xf32>
    %17 = vector.extract_strided_slice %12 {offsets = [0, 0, 0], sizes = [1, 8, 384], strides = [1, 1, 1]} : vector<8x8x384xf32> to vector<1x8x384xf32>
    %18 = vector.shape_cast %17 : vector<1x8x384xf32> to vector<8x384xf32>
    %19 = vector.extract_strided_slice %18 {offsets = [0, 0], sizes = [8, 128], strides = [1, 1]} : vector<8x384xf32> to vector<8x128xf32>
    %20 = vector.extract_strided_slice %16 {offsets = [0, 0], sizes = [8, 128], strides = [1, 1]} : vector<8x384xf32> to vector<8x128xf32>
    %21 = arith.addf %19, %20 : vector<8x128xf32>
    %cst_10 = arith.constant 5.000000e-01 : f32
    %22 = vector.broadcast %cst_10 : f32 to vector<8x128xf32>
    %23 = arith.mulf %22, %21 : vector<8x128xf32>
    %24 = math.tanh %23 : vector<8x128xf32>
    %cst_11 = arith.constant 1.000000e+00 : f32
    %25 = vector.broadcast %cst_11 : f32 to vector<8x128xf32>
    %26 = arith.addf %24, %25 : vector<8x128xf32>
    %cst_12 = arith.constant 5.000000e-01 : f32
    %27 = vector.broadcast %cst_12 : f32 to vector<8x128xf32>
    %28 = arith.mulf %27, %26 : vector<8x128xf32>
    %29 = vector.extract_strided_slice %18 {offsets = [0, 128], sizes = [8, 128], strides = [1, 1]} : vector<8x384xf32> to vector<8x128xf32>
    %30 = vector.extract_strided_slice %16 {offsets = [0, 128], sizes = [8, 128], strides = [1, 1]} : vector<8x384xf32> to vector<8x128xf32>
    %31 = arith.addf %29, %30 : vector<8x128xf32>
    %cst_13 = arith.constant 5.000000e-01 : f32
    %32 = vector.broadcast %cst_13 : f32 to vector<8x128xf32>
    %33 = arith.mulf %32, %31 : vector<8x128xf32>
    %34 = math.tanh %33 : vector<8x128xf32>
    %cst_14 = arith.constant 1.000000e+00 : f32
    %35 = vector.broadcast %cst_14 : f32 to vector<8x128xf32>
    %36 = arith.addf %34, %35 : vector<8x128xf32>
    %cst_15 = arith.constant 5.000000e-01 : f32
    %37 = vector.broadcast %cst_15 : f32 to vector<8x128xf32>
    %38 = arith.mulf %37, %36 : vector<8x128xf32>
    %39 = vector.extract_strided_slice %18 {offsets = [0, 256], sizes = [8, 128], strides = [1, 1]} : vector<8x384xf32> to vector<8x128xf32>
    %40 = vector.extract_strided_slice %16 {offsets = [0, 256], sizes = [8, 128], strides = [1, 1]} : vector<8x384xf32> to vector<8x128xf32>
    %41 = arith.mulf %28, %40 : vector<8x128xf32>
    %42 = arith.addf %39, %41 : vector<8x128xf32>
    %43 = math.tanh %42 : vector<8x128xf32>
    %cst_16 = arith.constant 1.000000e+00 : f32
    %44 = vector.broadcast %cst_16 : f32 to vector<8x128xf32>
    %45 = arith.subf %44, %38 : vector<8x128xf32>
    %46 = arith.mulf %45, %43 : vector<8x128xf32>
    %47 = arith.mulf %38, %13 : vector<8x128xf32>
    %48 = arith.addf %46, %47 : vector<8x128xf32>
    %cst_17 = arith.constant dense<0.000000e+00> : vector<8x384xf32>
    %49 = tpu.matmul %48, %0, %cst_17 {dimension_numbers = #tpu.dot_dimension_numbers<[1], [0], [0], [1], [0, 0, 1, 1], [], []>} : vector<8x128xf32>, vector<128x384xf32>, vector<8x384xf32> -> vector<8x384xf32>
    %50 = vector.broadcast %1 : vector<1x384xf32> to vector<8x384xf32>
    %51 = arith.addf %49, %50 : vector<8x384xf32>
    %52 = vector.extract_strided_slice %12 {offsets = [1, 0, 0], sizes = [1, 8, 384], strides = [1, 1, 1]} : vector<8x8x384xf32> to vector<1x8x384xf32>
    %53 = vector.shape_cast %52 : vector<1x8x384xf32> to vector<8x384xf32>
    %54 = vector.extract_strided_slice %53 {offsets = [0, 0], sizes = [8, 128], strides = [1, 1]} : vector<8x384xf32> to vector<8x128xf32>
    %55 = vector.extract_strided_slice %51 {offsets = [0, 0], sizes = [8, 128], strides = [1, 1]} : vector<8x384xf32> to vector<8x128xf32>
    %56 = arith.addf %54, %55 : vector<8x128xf32>
    %cst_18 = arith.constant 5.000000e-01 : f32
    %57 = vector.broadcast %cst_18 : f32 to vector<8x128xf32>
    %58 = arith.mulf %57, %56 : vector<8x128xf32>
    %59 = math.tanh %58 : vector<8x128xf32>
    %cst_19 = arith.constant 1.000000e+00 : f32
    %60 = vector.broadcast %cst_19 : f32 to vector<8x128xf32>
    %61 = arith.addf %59, %60 : vector<8x128xf32>
    %cst_20 = arith.constant 5.000000e-01 : f32
    %62 = vector.broadcast %cst_20 : f32 to vector<8x128xf32>
    %63 = arith.mulf %62, %61 : vector<8x128xf32>
    %64 = vector.extract_strided_slice %53 {offsets = [0, 128], sizes = [8, 128], strides = [1, 1]} : vector<8x384xf32> to vector<8x128xf32>
    %65 = vector.extract_strided_slice %51 {offsets = [0, 128], sizes = [8, 128], strides = [1, 1]} : vector<8x384xf32> to vector<8x128xf32>
    %66 = arith.addf %64, %65 : vector<8x128xf32>
    %cst_21 = arith.constant 5.000000e-01 : f32
    %67 = vector.broadcast %cst_21 : f32 to vector<8x128xf32>
    %68 = arith.mulf %67, %66 : vector<8x128xf32>
    %69 = math.tanh %68 : vector<8x128xf32>
    %cst_22 = arith.constant 1.000000e+00 : f32
    %70 = vector.broadcast %cst_22 : f32 to vector<8x128xf32>
    %71 = arith.addf %69, %70 : vector<8x128xf32>
    %cst_23 = arith.constant 5.000000e-01 : f32
    %72 = vector.broadcast %cst_23 : f32 to vector<8x128xf32>
    %73 = arith.mulf %72, %71 : vector<8x128xf32>
    %74 = vector.extract_strided_slice %53 {offsets = [0, 256], sizes = [8, 128], strides = [1, 1]} : vector<8x384xf32> to vector<8x128xf32>
    %75 = vector.extract_strided_slice %51 {offsets = [0, 256], sizes = [8, 128], strides = [1, 1]} : vector<8x384xf32> to vector<8x128xf32>
    %76 = arith.mulf %63, %75 : vector<8x128xf32>
    %77 = arith.addf %74, %76 : vector<8x128xf32>
    %78 = math.tanh %77 : vector<8x128xf32>
    %cst_24 = arith.constant 1.000000e+00 : f32
    %79 = vector.broadcast %cst_24 : f32 to vector<8x128xf32>
    %80 = arith.subf %79, %73 : vector<8x128xf32>
    %81 = arith.mulf %80, %78 : vector<8x128xf32>
    %82 = arith.mulf %73, %48 : vector<8x128xf32>
    %83 = arith.addf %81, %82 : vector<8x128xf32>
    %cst_25 = arith.constant dense<0.000000e+00> : vector<8x384xf32>
    %84 = tpu.matmul %83, %0, %cst_25 {dimension_numbers = #tpu.dot_dimension_numbers<[1], [0], [0], [1], [0, 0, 1, 1], [], []>} : vector<8x128xf32>, vector<128x384xf32>, vector<8x384xf32> -> vector<8x384xf32>
    %85 = vector.broadcast %1 : vector<1x384xf32> to vector<8x384xf32>
    %86 = arith.addf %84, %85 : vector<8x384xf32>
    %87 = vector.extract_strided_slice %12 {offsets = [2, 0, 0], sizes = [1, 8, 384], strides = [1, 1, 1]} : vector<8x8x384xf32> to vector<1x8x384xf32>
    %88 = vector.shape_cast %87 : vector<1x8x384xf32> to vector<8x384xf32>
    %89 = vector.extract_strided_slice %88 {offsets = [0, 0], sizes = [8, 128], strides = [1, 1]} : vector<8x384xf32> to vector<8x128xf32>
    %90 = vector.extract_strided_slice %86 {offsets = [0, 0], sizes = [8, 128], strides = [1, 1]} : vector<8x384xf32> to vector<8x128xf32>
    %91 = arith.addf %89, %90 : vector<8x128xf32>
    %cst_26 = arith.constant 5.000000e-01 : f32
    %92 = vector.broadcast %cst_26 : f32 to vector<8x128xf32>
    %93 = arith.mulf %92, %91 : vector<8x128xf32>
    %94 = math.tanh %93 : vector<8x128xf32>
    %cst_27 = arith.constant 1.000000e+00 : f32
    %95 = vector.broadcast %cst_27 : f32 to vector<8x128xf32>
    %96 = arith.addf %94, %95 : vector<8x128xf32>
    %cst_28 = arith.constant 5.000000e-01 : f32
    %97 = vector.broadcast %cst_28 : f32 to vector<8x128xf32>
    %98 = arith.mulf %97, %96 : vector<8x128xf32>
    %99 = vector.extract_strided_slice %88 {offsets = [0, 128], sizes = [8, 128], strides = [1, 1]} : vector<8x384xf32> to vector<8x128xf32>
    %100 = vector.extract_strided_slice %86 {offsets = [0, 128], sizes = [8, 128], strides = [1, 1]} : vector<8x384xf32> to vector<8x128xf32>
    %101 = arith.addf %99, %100 : vector<8x128xf32>
    %cst_29 = arith.constant 5.000000e-01 : f32
    %102 = vector.broadcast %cst_29 : f32 to vector<8x128xf32>
    %103 = arith.mulf %102, %101 : vector<8x128xf32>
    %104 = math.tanh %103 : vector<8x128xf32>
    %cst_30 = arith.constant 1.000000e+00 : f32
    %105 = vector.broadcast %cst_30 : f32 to vector<8x128xf32>
    %106 = arith.addf %104, %105 : vector<8x128xf32>
    %cst_31 = arith.constant 5.000000e-01 : f32
    %107 = vector.broadcast %cst_31 : f32 to vector<8x128xf32>
    %108 = arith.mulf %107, %106 : vector<8x128xf32>
    %109 = vector.extract_strided_slice %88 {offsets = [0, 256], sizes = [8, 128], strides = [1, 1]} : vector<8x384xf32> to vector<8x128xf32>
    %110 = vector.extract_strided_slice %86 {offsets = [0, 256], sizes = [8, 128], strides = [1, 1]} : vector<8x384xf32> to vector<8x128xf32>
    %111 = arith.mulf %98, %110 : vector<8x128xf32>
    %112 = arith.addf %109, %111 : vector<8x128xf32>
    %113 = math.tanh %112 : vector<8x128xf32>
    %cst_32 = arith.constant 1.000000e+00 : f32
    %114 = vector.broadcast %cst_32 : f32 to vector<8x128xf32>
    %115 = arith.subf %114, %108 : vector<8x128xf32>
    %116 = arith.mulf %115, %113 : vector<8x128xf32>
    %117 = arith.mulf %108, %83 : vector<8x128xf32>
    %118 = arith.addf %116, %117 : vector<8x128xf32>
    %cst_33 = arith.constant dense<0.000000e+00> : vector<8x384xf32>
    %119 = tpu.matmul %118, %0, %cst_33 {dimension_numbers = #tpu.dot_dimension_numbers<[1], [0], [0], [1], [0, 0, 1, 1], [], []>} : vector<8x128xf32>, vector<128x384xf32>, vector<8x384xf32> -> vector<8x384xf32>
    %120 = vector.broadcast %1 : vector<1x384xf32> to vector<8x384xf32>
    %121 = arith.addf %119, %120 : vector<8x384xf32>
    %122 = vector.extract_strided_slice %12 {offsets = [3, 0, 0], sizes = [1, 8, 384], strides = [1, 1, 1]} : vector<8x8x384xf32> to vector<1x8x384xf32>
    %123 = vector.shape_cast %122 : vector<1x8x384xf32> to vector<8x384xf32>
    %124 = vector.extract_strided_slice %123 {offsets = [0, 0], sizes = [8, 128], strides = [1, 1]} : vector<8x384xf32> to vector<8x128xf32>
    %125 = vector.extract_strided_slice %121 {offsets = [0, 0], sizes = [8, 128], strides = [1, 1]} : vector<8x384xf32> to vector<8x128xf32>
    %126 = arith.addf %124, %125 : vector<8x128xf32>
    %cst_34 = arith.constant 5.000000e-01 : f32
    %127 = vector.broadcast %cst_34 : f32 to vector<8x128xf32>
    %128 = arith.mulf %127, %126 : vector<8x128xf32>
    %129 = math.tanh %128 : vector<8x128xf32>
    %cst_35 = arith.constant 1.000000e+00 : f32
    %130 = vector.broadcast %cst_35 : f32 to vector<8x128xf32>
    %131 = arith.addf %129, %130 : vector<8x128xf32>
    %cst_36 = arith.constant 5.000000e-01 : f32
    %132 = vector.broadcast %cst_36 : f32 to vector<8x128xf32>
    %133 = arith.mulf %132, %131 : vector<8x128xf32>
    %134 = vector.extract_strided_slice %123 {offsets = [0, 128], sizes = [8, 128], strides = [1, 1]} : vector<8x384xf32> to vector<8x128xf32>
    %135 = vector.extract_strided_slice %121 {offsets = [0, 128], sizes = [8, 128], strides = [1, 1]} : vector<8x384xf32> to vector<8x128xf32>
    %136 = arith.addf %134, %135 : vector<8x128xf32>
    %cst_37 = arith.constant 5.000000e-01 : f32
    %137 = vector.broadcast %cst_37 : f32 to vector<8x128xf32>
    %138 = arith.mulf %137, %136 : vector<8x128xf32>
    %139 = math.tanh %138 : vector<8x128xf32>
    %cst_38 = arith.constant 1.000000e+00 : f32
    %140 = vector.broadcast %cst_38 : f32 to vector<8x128xf32>
    %141 = arith.addf %139, %140 : vector<8x128xf32>
    %cst_39 = arith.constant 5.000000e-01 : f32
    %142 = vector.broadcast %cst_39 : f32 to vector<8x128xf32>
    %143 = arith.mulf %142, %141 : vector<8x128xf32>
    %144 = vector.extract_strided_slice %123 {offsets = [0, 256], sizes = [8, 128], strides = [1, 1]} : vector<8x384xf32> to vector<8x128xf32>
    %145 = vector.extract_strided_slice %121 {offsets = [0, 256], sizes = [8, 128], strides = [1, 1]} : vector<8x384xf32> to vector<8x128xf32>
    %146 = arith.mulf %133, %145 : vector<8x128xf32>
    %147 = arith.addf %144, %146 : vector<8x128xf32>
    %148 = math.tanh %147 : vector<8x128xf32>
    %cst_40 = arith.constant 1.000000e+00 : f32
    %149 = vector.broadcast %cst_40 : f32 to vector<8x128xf32>
    %150 = arith.subf %149, %143 : vector<8x128xf32>
    %151 = arith.mulf %150, %148 : vector<8x128xf32>
    %152 = arith.mulf %143, %118 : vector<8x128xf32>
    %153 = arith.addf %151, %152 : vector<8x128xf32>
    %cst_41 = arith.constant dense<0.000000e+00> : vector<8x384xf32>
    %154 = tpu.matmul %153, %0, %cst_41 {dimension_numbers = #tpu.dot_dimension_numbers<[1], [0], [0], [1], [0, 0, 1, 1], [], []>} : vector<8x128xf32>, vector<128x384xf32>, vector<8x384xf32> -> vector<8x384xf32>
    %155 = vector.broadcast %1 : vector<1x384xf32> to vector<8x384xf32>
    %156 = arith.addf %154, %155 : vector<8x384xf32>
    %157 = vector.extract_strided_slice %12 {offsets = [4, 0, 0], sizes = [1, 8, 384], strides = [1, 1, 1]} : vector<8x8x384xf32> to vector<1x8x384xf32>
    %158 = vector.shape_cast %157 : vector<1x8x384xf32> to vector<8x384xf32>
    %159 = vector.extract_strided_slice %158 {offsets = [0, 0], sizes = [8, 128], strides = [1, 1]} : vector<8x384xf32> to vector<8x128xf32>
    %160 = vector.extract_strided_slice %156 {offsets = [0, 0], sizes = [8, 128], strides = [1, 1]} : vector<8x384xf32> to vector<8x128xf32>
    %161 = arith.addf %159, %160 : vector<8x128xf32>
    %cst_42 = arith.constant 5.000000e-01 : f32
    %162 = vector.broadcast %cst_42 : f32 to vector<8x128xf32>
    %163 = arith.mulf %162, %161 : vector<8x128xf32>
    %164 = math.tanh %163 : vector<8x128xf32>
    %cst_43 = arith.constant 1.000000e+00 : f32
    %165 = vector.broadcast %cst_43 : f32 to vector<8x128xf32>
    %166 = arith.addf %164, %165 : vector<8x128xf32>
    %cst_44 = arith.constant 5.000000e-01 : f32
    %167 = vector.broadcast %cst_44 : f32 to vector<8x128xf32>
    %168 = arith.mulf %167, %166 : vector<8x128xf32>
    %169 = vector.extract_strided_slice %158 {offsets = [0, 128], sizes = [8, 128], strides = [1, 1]} : vector<8x384xf32> to vector<8x128xf32>
    %170 = vector.extract_strided_slice %156 {offsets = [0, 128], sizes = [8, 128], strides = [1, 1]} : vector<8x384xf32> to vector<8x128xf32>
    %171 = arith.addf %169, %170 : vector<8x128xf32>
    %cst_45 = arith.constant 5.000000e-01 : f32
    %172 = vector.broadcast %cst_45 : f32 to vector<8x128xf32>
    %173 = arith.mulf %172, %171 : vector<8x128xf32>
    %174 = math.tanh %173 : vector<8x128xf32>
    %cst_46 = arith.constant 1.000000e+00 : f32
    %175 = vector.broadcast %cst_46 : f32 to vector<8x128xf32>
    %176 = arith.addf %174, %175 : vector<8x128xf32>
    %cst_47 = arith.constant 5.000000e-01 : f32
    %177 = vector.broadcast %cst_47 : f32 to vector<8x128xf32>
    %178 = arith.mulf %177, %176 : vector<8x128xf32>
    %179 = vector.extract_strided_slice %158 {offsets = [0, 256], sizes = [8, 128], strides = [1, 1]} : vector<8x384xf32> to vector<8x128xf32>
    %180 = vector.extract_strided_slice %156 {offsets = [0, 256], sizes = [8, 128], strides = [1, 1]} : vector<8x384xf32> to vector<8x128xf32>
    %181 = arith.mulf %168, %180 : vector<8x128xf32>
    %182 = arith.addf %179, %181 : vector<8x128xf32>
    %183 = math.tanh %182 : vector<8x128xf32>
    %cst_48 = arith.constant 1.000000e+00 : f32
    %184 = vector.broadcast %cst_48 : f32 to vector<8x128xf32>
    %185 = arith.subf %184, %178 : vector<8x128xf32>
    %186 = arith.mulf %185, %183 : vector<8x128xf32>
    %187 = arith.mulf %178, %153 : vector<8x128xf32>
    %188 = arith.addf %186, %187 : vector<8x128xf32>
    %cst_49 = arith.constant dense<0.000000e+00> : vector<8x384xf32>
    %189 = tpu.matmul %188, %0, %cst_49 {dimension_numbers = #tpu.dot_dimension_numbers<[1], [0], [0], [1], [0, 0, 1, 1], [], []>} : vector<8x128xf32>, vector<128x384xf32>, vector<8x384xf32> -> vector<8x384xf32>
    %190 = vector.broadcast %1 : vector<1x384xf32> to vector<8x384xf32>
    %191 = arith.addf %189, %190 : vector<8x384xf32>
    %192 = vector.extract_strided_slice %12 {offsets = [5, 0, 0], sizes = [1, 8, 384], strides = [1, 1, 1]} : vector<8x8x384xf32> to vector<1x8x384xf32>
    %193 = vector.shape_cast %192 : vector<1x8x384xf32> to vector<8x384xf32>
    %194 = vector.extract_strided_slice %193 {offsets = [0, 0], sizes = [8, 128], strides = [1, 1]} : vector<8x384xf32> to vector<8x128xf32>
    %195 = vector.extract_strided_slice %191 {offsets = [0, 0], sizes = [8, 128], strides = [1, 1]} : vector<8x384xf32> to vector<8x128xf32>
    %196 = arith.addf %194, %195 : vector<8x128xf32>
    %cst_50 = arith.constant 5.000000e-01 : f32
    %197 = vector.broadcast %cst_50 : f32 to vector<8x128xf32>
    %198 = arith.mulf %197, %196 : vector<8x128xf32>
    %199 = math.tanh %198 : vector<8x128xf32>
    %cst_51 = arith.constant 1.000000e+00 : f32
    %200 = vector.broadcast %cst_51 : f32 to vector<8x128xf32>
    %201 = arith.addf %199, %200 : vector<8x128xf32>
    %cst_52 = arith.constant 5.000000e-01 : f32
    %202 = vector.broadcast %cst_52 : f32 to vector<8x128xf32>
    %203 = arith.mulf %202, %201 : vector<8x128xf32>
    %204 = vector.extract_strided_slice %193 {offsets = [0, 128], sizes = [8, 128], strides = [1, 1]} : vector<8x384xf32> to vector<8x128xf32>
    %205 = vector.extract_strided_slice %191 {offsets = [0, 128], sizes = [8, 128], strides = [1, 1]} : vector<8x384xf32> to vector<8x128xf32>
    %206 = arith.addf %204, %205 : vector<8x128xf32>
    %cst_53 = arith.constant 5.000000e-01 : f32
    %207 = vector.broadcast %cst_53 : f32 to vector<8x128xf32>
    %208 = arith.mulf %207, %206 : vector<8x128xf32>
    %209 = math.tanh %208 : vector<8x128xf32>
    %cst_54 = arith.constant 1.000000e+00 : f32
    %210 = vector.broadcast %cst_54 : f32 to vector<8x128xf32>
    %211 = arith.addf %209, %210 : vector<8x128xf32>
    %cst_55 = arith.constant 5.000000e-01 : f32
    %212 = vector.broadcast %cst_55 : f32 to vector<8x128xf32>
    %213 = arith.mulf %212, %211 : vector<8x128xf32>
    %214 = vector.extract_strided_slice %193 {offsets = [0, 256], sizes = [8, 128], strides = [1, 1]} : vector<8x384xf32> to vector<8x128xf32>
    %215 = vector.extract_strided_slice %191 {offsets = [0, 256], sizes = [8, 128], strides = [1, 1]} : vector<8x384xf32> to vector<8x128xf32>
    %216 = arith.mulf %203, %215 : vector<8x128xf32>
    %217 = arith.addf %214, %216 : vector<8x128xf32>
    %218 = math.tanh %217 : vector<8x128xf32>
    %cst_56 = arith.constant 1.000000e+00 : f32
    %219 = vector.broadcast %cst_56 : f32 to vector<8x128xf32>
    %220 = arith.subf %219, %213 : vector<8x128xf32>
    %221 = arith.mulf %220, %218 : vector<8x128xf32>
    %222 = arith.mulf %213, %188 : vector<8x128xf32>
    %223 = arith.addf %221, %222 : vector<8x128xf32>
    %cst_57 = arith.constant dense<0.000000e+00> : vector<8x384xf32>
    %224 = tpu.matmul %223, %0, %cst_57 {dimension_numbers = #tpu.dot_dimension_numbers<[1], [0], [0], [1], [0, 0, 1, 1], [], []>} : vector<8x128xf32>, vector<128x384xf32>, vector<8x384xf32> -> vector<8x384xf32>
    %225 = vector.broadcast %1 : vector<1x384xf32> to vector<8x384xf32>
    %226 = arith.addf %224, %225 : vector<8x384xf32>
    %227 = vector.extract_strided_slice %12 {offsets = [6, 0, 0], sizes = [1, 8, 384], strides = [1, 1, 1]} : vector<8x8x384xf32> to vector<1x8x384xf32>
    %228 = vector.shape_cast %227 : vector<1x8x384xf32> to vector<8x384xf32>
    %229 = vector.extract_strided_slice %228 {offsets = [0, 0], sizes = [8, 128], strides = [1, 1]} : vector<8x384xf32> to vector<8x128xf32>
    %230 = vector.extract_strided_slice %226 {offsets = [0, 0], sizes = [8, 128], strides = [1, 1]} : vector<8x384xf32> to vector<8x128xf32>
    %231 = arith.addf %229, %230 : vector<8x128xf32>
    %cst_58 = arith.constant 5.000000e-01 : f32
    %232 = vector.broadcast %cst_58 : f32 to vector<8x128xf32>
    %233 = arith.mulf %232, %231 : vector<8x128xf32>
    %234 = math.tanh %233 : vector<8x128xf32>
    %cst_59 = arith.constant 1.000000e+00 : f32
    %235 = vector.broadcast %cst_59 : f32 to vector<8x128xf32>
    %236 = arith.addf %234, %235 : vector<8x128xf32>
    %cst_60 = arith.constant 5.000000e-01 : f32
    %237 = vector.broadcast %cst_60 : f32 to vector<8x128xf32>
    %238 = arith.mulf %237, %236 : vector<8x128xf32>
    %239 = vector.extract_strided_slice %228 {offsets = [0, 128], sizes = [8, 128], strides = [1, 1]} : vector<8x384xf32> to vector<8x128xf32>
    %240 = vector.extract_strided_slice %226 {offsets = [0, 128], sizes = [8, 128], strides = [1, 1]} : vector<8x384xf32> to vector<8x128xf32>
    %241 = arith.addf %239, %240 : vector<8x128xf32>
    %cst_61 = arith.constant 5.000000e-01 : f32
    %242 = vector.broadcast %cst_61 : f32 to vector<8x128xf32>
    %243 = arith.mulf %242, %241 : vector<8x128xf32>
    %244 = math.tanh %243 : vector<8x128xf32>
    %cst_62 = arith.constant 1.000000e+00 : f32
    %245 = vector.broadcast %cst_62 : f32 to vector<8x128xf32>
    %246 = arith.addf %244, %245 : vector<8x128xf32>
    %cst_63 = arith.constant 5.000000e-01 : f32
    %247 = vector.broadcast %cst_63 : f32 to vector<8x128xf32>
    %248 = arith.mulf %247, %246 : vector<8x128xf32>
    %249 = vector.extract_strided_slice %228 {offsets = [0, 256], sizes = [8, 128], strides = [1, 1]} : vector<8x384xf32> to vector<8x128xf32>
    %250 = vector.extract_strided_slice %226 {offsets = [0, 256], sizes = [8, 128], strides = [1, 1]} : vector<8x384xf32> to vector<8x128xf32>
    %251 = arith.mulf %238, %250 : vector<8x128xf32>
    %252 = arith.addf %249, %251 : vector<8x128xf32>
    %253 = math.tanh %252 : vector<8x128xf32>
    %cst_64 = arith.constant 1.000000e+00 : f32
    %254 = vector.broadcast %cst_64 : f32 to vector<8x128xf32>
    %255 = arith.subf %254, %248 : vector<8x128xf32>
    %256 = arith.mulf %255, %253 : vector<8x128xf32>
    %257 = arith.mulf %248, %223 : vector<8x128xf32>
    %258 = arith.addf %256, %257 : vector<8x128xf32>
    %cst_65 = arith.constant dense<0.000000e+00> : vector<8x384xf32>
    %259 = tpu.matmul %258, %0, %cst_65 {dimension_numbers = #tpu.dot_dimension_numbers<[1], [0], [0], [1], [0, 0, 1, 1], [], []>} : vector<8x128xf32>, vector<128x384xf32>, vector<8x384xf32> -> vector<8x384xf32>
    %260 = vector.broadcast %1 : vector<1x384xf32> to vector<8x384xf32>
    %261 = arith.addf %259, %260 : vector<8x384xf32>
    %262 = vector.extract_strided_slice %12 {offsets = [7, 0, 0], sizes = [1, 8, 384], strides = [1, 1, 1]} : vector<8x8x384xf32> to vector<1x8x384xf32>
    %263 = vector.shape_cast %262 : vector<1x8x384xf32> to vector<8x384xf32>
    %264 = vector.extract_strided_slice %263 {offsets = [0, 0], sizes = [8, 128], strides = [1, 1]} : vector<8x384xf32> to vector<8x128xf32>
    %265 = vector.extract_strided_slice %261 {offsets = [0, 0], sizes = [8, 128], strides = [1, 1]} : vector<8x384xf32> to vector<8x128xf32>
    %266 = arith.addf %264, %265 : vector<8x128xf32>
    %cst_66 = arith.constant 5.000000e-01 : f32
    %267 = vector.broadcast %cst_66 : f32 to vector<8x128xf32>
    %268 = arith.mulf %267, %266 : vector<8x128xf32>
    %269 = math.tanh %268 : vector<8x128xf32>
    %cst_67 = arith.constant 1.000000e+00 : f32
    %270 = vector.broadcast %cst_67 : f32 to vector<8x128xf32>
    %271 = arith.addf %269, %270 : vector<8x128xf32>
    %cst_68 = arith.constant 5.000000e-01 : f32
    %272 = vector.broadcast %cst_68 : f32 to vector<8x128xf32>
    %273 = arith.mulf %272, %271 : vector<8x128xf32>
    %274 = vector.extract_strided_slice %263 {offsets = [0, 128], sizes = [8, 128], strides = [1, 1]} : vector<8x384xf32> to vector<8x128xf32>
    %275 = vector.extract_strided_slice %261 {offsets = [0, 128], sizes = [8, 128], strides = [1, 1]} : vector<8x384xf32> to vector<8x128xf32>
    %276 = arith.addf %274, %275 : vector<8x128xf32>
    %cst_69 = arith.constant 5.000000e-01 : f32
    %277 = vector.broadcast %cst_69 : f32 to vector<8x128xf32>
    %278 = arith.mulf %277, %276 : vector<8x128xf32>
    %279 = math.tanh %278 : vector<8x128xf32>
    %cst_70 = arith.constant 1.000000e+00 : f32
    %280 = vector.broadcast %cst_70 : f32 to vector<8x128xf32>
    %281 = arith.addf %279, %280 : vector<8x128xf32>
    %cst_71 = arith.constant 5.000000e-01 : f32
    %282 = vector.broadcast %cst_71 : f32 to vector<8x128xf32>
    %283 = arith.mulf %282, %281 : vector<8x128xf32>
    %284 = vector.extract_strided_slice %263 {offsets = [0, 256], sizes = [8, 128], strides = [1, 1]} : vector<8x384xf32> to vector<8x128xf32>
    %285 = vector.extract_strided_slice %261 {offsets = [0, 256], sizes = [8, 128], strides = [1, 1]} : vector<8x384xf32> to vector<8x128xf32>
    %286 = arith.mulf %273, %285 : vector<8x128xf32>
    %287 = arith.addf %284, %286 : vector<8x128xf32>
    %288 = math.tanh %287 : vector<8x128xf32>
    %cst_72 = arith.constant 1.000000e+00 : f32
    %289 = vector.broadcast %cst_72 : f32 to vector<8x128xf32>
    %290 = arith.subf %289, %283 : vector<8x128xf32>
    %291 = arith.mulf %290, %288 : vector<8x128xf32>
    %292 = arith.mulf %283, %258 : vector<8x128xf32>
    %293 = arith.addf %291, %292 : vector<8x128xf32>
    %c0_73 = arith.constant 0 : index
    %c0_74 = arith.constant 0 : index
    %294 = vector.load %arg1[%c0_73, %c0_74] : memref<8x1xf32, #tpu.memory_space<vmem>>, vector<8x1xf32>
    %c0_75 = arith.constant 0 : index
    %c0_76 = arith.constant 0 : index
    %295 = vector.load %arg6[%c0_75, %c0_76] : memref<1x384xf32, #tpu.memory_space<vmem>>, vector<1x384xf32>
    %296 = vector.broadcast %294 : vector<8x1xf32> to vector<8x384xf32>
    %297 = vector.broadcast %295 : vector<1x384xf32> to vector<8x384xf32>
    %298 = arith.mulf %296, %297 : vector<8x384xf32>
    %c0_77 = arith.constant 0 : index
    %c0_78 = arith.constant 0 : index
    %299 = vector.load %arg8[%c0_77, %c0_78] : memref<1x384xf32, #tpu.memory_space<vmem>>, vector<1x384xf32>
    %300 = vector.broadcast %299 : vector<1x384xf32> to vector<8x384xf32>
    %301 = arith.addf %298, %300 : vector<8x384xf32>
    %c0_79 = arith.constant 0 : index
    %c0_80 = arith.constant 0 : index
    %302 = vector.load %arg7[%c0_79, %c0_80] : memref<128x768xf32, #tpu.memory_space<vmem>>, vector<128x768xf32>
    %c0_81 = arith.constant 0 : index
    %c0_82 = arith.constant 0 : index
    %303 = vector.load %arg9[%c0_81, %c0_82] : memref<1x384xf32, #tpu.memory_space<vmem>>, vector<1x384xf32>
    %cst_83 = arith.constant dense<0.000000e+00> : vector<8x768xf32>
    %304 = tpu.matmul %293, %302, %cst_83 {dimension_numbers = #tpu.dot_dimension_numbers<[1], [0], [0], [1], [0, 0, 1, 1], [], []>} : vector<8x128xf32>, vector<128x768xf32>, vector<8x768xf32> -> vector<8x768xf32>
    %305 = vector.extract_strided_slice %304 {offsets = [0, 0], sizes = [8, 384], strides = [1, 1]} : vector<8x768xf32> to vector<8x384xf32>
    %306 = arith.addf %305, %301 : vector<8x384xf32>
    %307 = vector.extract_strided_slice %304 {offsets = [0, 384], sizes = [8, 384], strides = [1, 1]} : vector<8x768xf32> to vector<8x384xf32>
    %308 = vector.broadcast %303 : vector<1x384xf32> to vector<8x384xf32>
    %309 = arith.addf %307, %308 : vector<8x384xf32>
    %310 = vector.extract_strided_slice %306 {offsets = [0, 0], sizes = [8, 128], strides = [1, 1]} : vector<8x384xf32> to vector<8x128xf32>
    %311 = vector.extract_strided_slice %309 {offsets = [0, 0], sizes = [8, 128], strides = [1, 1]} : vector<8x384xf32> to vector<8x128xf32>
    %312 = arith.addf %310, %311 : vector<8x128xf32>
    %cst_84 = arith.constant 5.000000e-01 : f32
    %313 = vector.broadcast %cst_84 : f32 to vector<8x128xf32>
    %314 = arith.mulf %313, %312 : vector<8x128xf32>
    %315 = math.tanh %314 : vector<8x128xf32>
    %cst_85 = arith.constant 1.000000e+00 : f32
    %316 = vector.broadcast %cst_85 : f32 to vector<8x128xf32>
    %317 = arith.addf %315, %316 : vector<8x128xf32>
    %cst_86 = arith.constant 5.000000e-01 : f32
    %318 = vector.broadcast %cst_86 : f32 to vector<8x128xf32>
    %319 = arith.mulf %318, %317 : vector<8x128xf32>
    %320 = vector.extract_strided_slice %306 {offsets = [0, 128], sizes = [8, 128], strides = [1, 1]} : vector<8x384xf32> to vector<8x128xf32>
    %321 = vector.extract_strided_slice %309 {offsets = [0, 128], sizes = [8, 128], strides = [1, 1]} : vector<8x384xf32> to vector<8x128xf32>
    %322 = arith.addf %320, %321 : vector<8x128xf32>
    %cst_87 = arith.constant 5.000000e-01 : f32
    %323 = vector.broadcast %cst_87 : f32 to vector<8x128xf32>
    %324 = arith.mulf %323, %322 : vector<8x128xf32>
    %325 = math.tanh %324 : vector<8x128xf32>
    %cst_88 = arith.constant 1.000000e+00 : f32
    %326 = vector.broadcast %cst_88 : f32 to vector<8x128xf32>
    %327 = arith.addf %325, %326 : vector<8x128xf32>
    %cst_89 = arith.constant 5.000000e-01 : f32
    %328 = vector.broadcast %cst_89 : f32 to vector<8x128xf32>
    %329 = arith.mulf %328, %327 : vector<8x128xf32>
    %330 = vector.extract_strided_slice %306 {offsets = [0, 256], sizes = [8, 128], strides = [1, 1]} : vector<8x384xf32> to vector<8x128xf32>
    %331 = vector.extract_strided_slice %309 {offsets = [0, 256], sizes = [8, 128], strides = [1, 1]} : vector<8x384xf32> to vector<8x128xf32>
    %332 = arith.mulf %319, %331 : vector<8x128xf32>
    %333 = arith.addf %330, %332 : vector<8x128xf32>
    %334 = math.tanh %333 : vector<8x128xf32>
    %cst_90 = arith.constant 1.000000e+00 : f32
    %335 = vector.broadcast %cst_90 : f32 to vector<8x128xf32>
    %336 = arith.subf %335, %329 : vector<8x128xf32>
    %337 = arith.mulf %336, %334 : vector<8x128xf32>
    %338 = arith.mulf %329, %293 : vector<8x128xf32>
    %339 = arith.addf %337, %338 : vector<8x128xf32>
    %cst_91 = arith.constant dense<0.000000e+00> : vector<8x768xf32>
    %340 = tpu.matmul %339, %302, %cst_91 {dimension_numbers = #tpu.dot_dimension_numbers<[1], [0], [0], [1], [0, 0, 1, 1], [], []>} : vector<8x128xf32>, vector<128x768xf32>, vector<8x768xf32> -> vector<8x768xf32>
    %341 = vector.extract_strided_slice %340 {offsets = [0, 0], sizes = [8, 384], strides = [1, 1]} : vector<8x768xf32> to vector<8x384xf32>
    %342 = arith.addf %341, %301 : vector<8x384xf32>
    %343 = vector.extract_strided_slice %340 {offsets = [0, 384], sizes = [8, 384], strides = [1, 1]} : vector<8x768xf32> to vector<8x384xf32>
    %344 = vector.broadcast %303 : vector<1x384xf32> to vector<8x384xf32>
    %345 = arith.addf %343, %344 : vector<8x384xf32>
    %346 = vector.extract_strided_slice %342 {offsets = [0, 0], sizes = [8, 128], strides = [1, 1]} : vector<8x384xf32> to vector<8x128xf32>
    %347 = vector.extract_strided_slice %345 {offsets = [0, 0], sizes = [8, 128], strides = [1, 1]} : vector<8x384xf32> to vector<8x128xf32>
    %348 = arith.addf %346, %347 : vector<8x128xf32>
    %cst_92 = arith.constant 5.000000e-01 : f32
    %349 = vector.broadcast %cst_92 : f32 to vector<8x128xf32>
    %350 = arith.mulf %349, %348 : vector<8x128xf32>
    %351 = math.tanh %350 : vector<8x128xf32>
    %cst_93 = arith.constant 1.000000e+00 : f32
    %352 = vector.broadcast %cst_93 : f32 to vector<8x128xf32>
    %353 = arith.addf %351, %352 : vector<8x128xf32>
    %cst_94 = arith.constant 5.000000e-01 : f32
    %354 = vector.broadcast %cst_94 : f32 to vector<8x128xf32>
    %355 = arith.mulf %354, %353 : vector<8x128xf32>
    %356 = vector.extract_strided_slice %342 {offsets = [0, 128], sizes = [8, 128], strides = [1, 1]} : vector<8x384xf32> to vector<8x128xf32>
    %357 = vector.extract_strided_slice %345 {offsets = [0, 128], sizes = [8, 128], strides = [1, 1]} : vector<8x384xf32> to vector<8x128xf32>
    %358 = arith.addf %356, %357 : vector<8x128xf32>
    %cst_95 = arith.constant 5.000000e-01 : f32
    %359 = vector.broadcast %cst_95 : f32 to vector<8x128xf32>
    %360 = arith.mulf %359, %358 : vector<8x128xf32>
    %361 = math.tanh %360 : vector<8x128xf32>
    %cst_96 = arith.constant 1.000000e+00 : f32
    %362 = vector.broadcast %cst_96 : f32 to vector<8x128xf32>
    %363 = arith.addf %361, %362 : vector<8x128xf32>
    %cst_97 = arith.constant 5.000000e-01 : f32
    %364 = vector.broadcast %cst_97 : f32 to vector<8x128xf32>
    %365 = arith.mulf %364, %363 : vector<8x128xf32>
    %366 = vector.extract_strided_slice %342 {offsets = [0, 256], sizes = [8, 128], strides = [1, 1]} : vector<8x384xf32> to vector<8x128xf32>
    %367 = vector.extract_strided_slice %345 {offsets = [0, 256], sizes = [8, 128], strides = [1, 1]} : vector<8x384xf32> to vector<8x128xf32>
    %368 = arith.mulf %355, %367 : vector<8x128xf32>
    %369 = arith.addf %366, %368 : vector<8x128xf32>
    %370 = math.tanh %369 : vector<8x128xf32>
    %cst_98 = arith.constant 1.000000e+00 : f32
    %371 = vector.broadcast %cst_98 : f32 to vector<8x128xf32>
    %372 = arith.subf %371, %365 : vector<8x128xf32>
    %373 = arith.mulf %372, %370 : vector<8x128xf32>
    %374 = arith.mulf %365, %339 : vector<8x128xf32>
    %375 = arith.addf %373, %374 : vector<8x128xf32>
    %cst_99 = arith.constant dense<0.000000e+00> : vector<8x768xf32>
    %376 = tpu.matmul %375, %302, %cst_99 {dimension_numbers = #tpu.dot_dimension_numbers<[1], [0], [0], [1], [0, 0, 1, 1], [], []>} : vector<8x128xf32>, vector<128x768xf32>, vector<8x768xf32> -> vector<8x768xf32>
    %377 = vector.extract_strided_slice %376 {offsets = [0, 0], sizes = [8, 384], strides = [1, 1]} : vector<8x768xf32> to vector<8x384xf32>
    %378 = arith.addf %377, %301 : vector<8x384xf32>
    %379 = vector.extract_strided_slice %376 {offsets = [0, 384], sizes = [8, 384], strides = [1, 1]} : vector<8x768xf32> to vector<8x384xf32>
    %380 = vector.broadcast %303 : vector<1x384xf32> to vector<8x384xf32>
    %381 = arith.addf %379, %380 : vector<8x384xf32>
    %382 = vector.extract_strided_slice %378 {offsets = [0, 0], sizes = [8, 128], strides = [1, 1]} : vector<8x384xf32> to vector<8x128xf32>
    %383 = vector.extract_strided_slice %381 {offsets = [0, 0], sizes = [8, 128], strides = [1, 1]} : vector<8x384xf32> to vector<8x128xf32>
    %384 = arith.addf %382, %383 : vector<8x128xf32>
    %cst_100 = arith.constant 5.000000e-01 : f32
    %385 = vector.broadcast %cst_100 : f32 to vector<8x128xf32>
    %386 = arith.mulf %385, %384 : vector<8x128xf32>
    %387 = math.tanh %386 : vector<8x128xf32>
    %cst_101 = arith.constant 1.000000e+00 : f32
    %388 = vector.broadcast %cst_101 : f32 to vector<8x128xf32>
    %389 = arith.addf %387, %388 : vector<8x128xf32>
    %cst_102 = arith.constant 5.000000e-01 : f32
    %390 = vector.broadcast %cst_102 : f32 to vector<8x128xf32>
    %391 = arith.mulf %390, %389 : vector<8x128xf32>
    %392 = vector.extract_strided_slice %378 {offsets = [0, 128], sizes = [8, 128], strides = [1, 1]} : vector<8x384xf32> to vector<8x128xf32>
    %393 = vector.extract_strided_slice %381 {offsets = [0, 128], sizes = [8, 128], strides = [1, 1]} : vector<8x384xf32> to vector<8x128xf32>
    %394 = arith.addf %392, %393 : vector<8x128xf32>
    %cst_103 = arith.constant 5.000000e-01 : f32
    %395 = vector.broadcast %cst_103 : f32 to vector<8x128xf32>
    %396 = arith.mulf %395, %394 : vector<8x128xf32>
    %397 = math.tanh %396 : vector<8x128xf32>
    %cst_104 = arith.constant 1.000000e+00 : f32
    %398 = vector.broadcast %cst_104 : f32 to vector<8x128xf32>
    %399 = arith.addf %397, %398 : vector<8x128xf32>
    %cst_105 = arith.constant 5.000000e-01 : f32
    %400 = vector.broadcast %cst_105 : f32 to vector<8x128xf32>
    %401 = arith.mulf %400, %399 : vector<8x128xf32>
    %402 = vector.extract_strided_slice %378 {offsets = [0, 256], sizes = [8, 128], strides = [1, 1]} : vector<8x384xf32> to vector<8x128xf32>
    %403 = vector.extract_strided_slice %381 {offsets = [0, 256], sizes = [8, 128], strides = [1, 1]} : vector<8x384xf32> to vector<8x128xf32>
    %404 = arith.mulf %391, %403 : vector<8x128xf32>
    %405 = arith.addf %402, %404 : vector<8x128xf32>
    %406 = math.tanh %405 : vector<8x128xf32>
    %cst_106 = arith.constant 1.000000e+00 : f32
    %407 = vector.broadcast %cst_106 : f32 to vector<8x128xf32>
    %408 = arith.subf %407, %401 : vector<8x128xf32>
    %409 = arith.mulf %408, %406 : vector<8x128xf32>
    %410 = arith.mulf %401, %375 : vector<8x128xf32>
    %411 = arith.addf %409, %410 : vector<8x128xf32>
    %cst_107 = arith.constant dense<0.000000e+00> : vector<8x768xf32>
    %412 = tpu.matmul %411, %302, %cst_107 {dimension_numbers = #tpu.dot_dimension_numbers<[1], [0], [0], [1], [0, 0, 1, 1], [], []>} : vector<8x128xf32>, vector<128x768xf32>, vector<8x768xf32> -> vector<8x768xf32>
    %413 = vector.extract_strided_slice %412 {offsets = [0, 0], sizes = [8, 384], strides = [1, 1]} : vector<8x768xf32> to vector<8x384xf32>
    %414 = arith.addf %413, %301 : vector<8x384xf32>
    %415 = vector.extract_strided_slice %412 {offsets = [0, 384], sizes = [8, 384], strides = [1, 1]} : vector<8x768xf32> to vector<8x384xf32>
    %416 = vector.broadcast %303 : vector<1x384xf32> to vector<8x384xf32>
    %417 = arith.addf %415, %416 : vector<8x384xf32>
    %418 = vector.extract_strided_slice %414 {offsets = [0, 0], sizes = [8, 128], strides = [1, 1]} : vector<8x384xf32> to vector<8x128xf32>
    %419 = vector.extract_strided_slice %417 {offsets = [0, 0], sizes = [8, 128], strides = [1, 1]} : vector<8x384xf32> to vector<8x128xf32>
    %420 = arith.addf %418, %419 : vector<8x128xf32>
    %cst_108 = arith.constant 5.000000e-01 : f32
    %421 = vector.broadcast %cst_108 : f32 to vector<8x128xf32>
    %422 = arith.mulf %421, %420 : vector<8x128xf32>
    %423 = math.tanh %422 : vector<8x128xf32>
    %cst_109 = arith.constant 1.000000e+00 : f32
    %424 = vector.broadcast %cst_109 : f32 to vector<8x128xf32>
    %425 = arith.addf %423, %424 : vector<8x128xf32>
    %cst_110 = arith.constant 5.000000e-01 : f32
    %426 = vector.broadcast %cst_110 : f32 to vector<8x128xf32>
    %427 = arith.mulf %426, %425 : vector<8x128xf32>
    %428 = vector.extract_strided_slice %414 {offsets = [0, 128], sizes = [8, 128], strides = [1, 1]} : vector<8x384xf32> to vector<8x128xf32>
    %429 = vector.extract_strided_slice %417 {offsets = [0, 128], sizes = [8, 128], strides = [1, 1]} : vector<8x384xf32> to vector<8x128xf32>
    %430 = arith.addf %428, %429 : vector<8x128xf32>
    %cst_111 = arith.constant 5.000000e-01 : f32
    %431 = vector.broadcast %cst_111 : f32 to vector<8x128xf32>
    %432 = arith.mulf %431, %430 : vector<8x128xf32>
    %433 = math.tanh %432 : vector<8x128xf32>
    %cst_112 = arith.constant 1.000000e+00 : f32
    %434 = vector.broadcast %cst_112 : f32 to vector<8x128xf32>
    %435 = arith.addf %433, %434 : vector<8x128xf32>
    %cst_113 = arith.constant 5.000000e-01 : f32
    %436 = vector.broadcast %cst_113 : f32 to vector<8x128xf32>
    %437 = arith.mulf %436, %435 : vector<8x128xf32>
    %438 = vector.extract_strided_slice %414 {offsets = [0, 256], sizes = [8, 128], strides = [1, 1]} : vector<8x384xf32> to vector<8x128xf32>
    %439 = vector.extract_strided_slice %417 {offsets = [0, 256], sizes = [8, 128], strides = [1, 1]} : vector<8x384xf32> to vector<8x128xf32>
    %440 = arith.mulf %427, %439 : vector<8x128xf32>
    %441 = arith.addf %438, %440 : vector<8x128xf32>
    %442 = math.tanh %441 : vector<8x128xf32>
    %cst_114 = arith.constant 1.000000e+00 : f32
    %443 = vector.broadcast %cst_114 : f32 to vector<8x128xf32>
    %444 = arith.subf %443, %437 : vector<8x128xf32>
    %445 = arith.mulf %444, %442 : vector<8x128xf32>
    %446 = arith.mulf %437, %411 : vector<8x128xf32>
    %447 = arith.addf %445, %446 : vector<8x128xf32>
    %cst_115 = arith.constant dense<0.000000e+00> : vector<8x768xf32>
    %448 = tpu.matmul %447, %302, %cst_115 {dimension_numbers = #tpu.dot_dimension_numbers<[1], [0], [0], [1], [0, 0, 1, 1], [], []>} : vector<8x128xf32>, vector<128x768xf32>, vector<8x768xf32> -> vector<8x768xf32>
    %449 = vector.extract_strided_slice %448 {offsets = [0, 0], sizes = [8, 384], strides = [1, 1]} : vector<8x768xf32> to vector<8x384xf32>
    %450 = arith.addf %449, %301 : vector<8x384xf32>
    %451 = vector.extract_strided_slice %448 {offsets = [0, 384], sizes = [8, 384], strides = [1, 1]} : vector<8x768xf32> to vector<8x384xf32>
    %452 = vector.broadcast %303 : vector<1x384xf32> to vector<8x384xf32>
    %453 = arith.addf %451, %452 : vector<8x384xf32>
    %454 = vector.extract_strided_slice %450 {offsets = [0, 0], sizes = [8, 128], strides = [1, 1]} : vector<8x384xf32> to vector<8x128xf32>
    %455 = vector.extract_strided_slice %453 {offsets = [0, 0], sizes = [8, 128], strides = [1, 1]} : vector<8x384xf32> to vector<8x128xf32>
    %456 = arith.addf %454, %455 : vector<8x128xf32>
    %cst_116 = arith.constant 5.000000e-01 : f32
    %457 = vector.broadcast %cst_116 : f32 to vector<8x128xf32>
    %458 = arith.mulf %457, %456 : vector<8x128xf32>
    %459 = math.tanh %458 : vector<8x128xf32>
    %cst_117 = arith.constant 1.000000e+00 : f32
    %460 = vector.broadcast %cst_117 : f32 to vector<8x128xf32>
    %461 = arith.addf %459, %460 : vector<8x128xf32>
    %cst_118 = arith.constant 5.000000e-01 : f32
    %462 = vector.broadcast %cst_118 : f32 to vector<8x128xf32>
    %463 = arith.mulf %462, %461 : vector<8x128xf32>
    %464 = vector.extract_strided_slice %450 {offsets = [0, 128], sizes = [8, 128], strides = [1, 1]} : vector<8x384xf32> to vector<8x128xf32>
    %465 = vector.extract_strided_slice %453 {offsets = [0, 128], sizes = [8, 128], strides = [1, 1]} : vector<8x384xf32> to vector<8x128xf32>
    %466 = arith.addf %464, %465 : vector<8x128xf32>
    %cst_119 = arith.constant 5.000000e-01 : f32
    %467 = vector.broadcast %cst_119 : f32 to vector<8x128xf32>
    %468 = arith.mulf %467, %466 : vector<8x128xf32>
    %469 = math.tanh %468 : vector<8x128xf32>
    %cst_120 = arith.constant 1.000000e+00 : f32
    %470 = vector.broadcast %cst_120 : f32 to vector<8x128xf32>
    %471 = arith.addf %469, %470 : vector<8x128xf32>
    %cst_121 = arith.constant 5.000000e-01 : f32
    %472 = vector.broadcast %cst_121 : f32 to vector<8x128xf32>
    %473 = arith.mulf %472, %471 : vector<8x128xf32>
    %474 = vector.extract_strided_slice %450 {offsets = [0, 256], sizes = [8, 128], strides = [1, 1]} : vector<8x384xf32> to vector<8x128xf32>
    %475 = vector.extract_strided_slice %453 {offsets = [0, 256], sizes = [8, 128], strides = [1, 1]} : vector<8x384xf32> to vector<8x128xf32>
    %476 = arith.mulf %463, %475 : vector<8x128xf32>
    %477 = arith.addf %474, %476 : vector<8x128xf32>
    %478 = math.tanh %477 : vector<8x128xf32>
    %cst_122 = arith.constant 1.000000e+00 : f32
    %479 = vector.broadcast %cst_122 : f32 to vector<8x128xf32>
    %480 = arith.subf %479, %473 : vector<8x128xf32>
    %481 = arith.mulf %480, %478 : vector<8x128xf32>
    %482 = arith.mulf %473, %447 : vector<8x128xf32>
    %483 = arith.addf %481, %482 : vector<8x128xf32>
    %cst_123 = arith.constant dense<0.000000e+00> : vector<8x768xf32>
    %484 = tpu.matmul %483, %302, %cst_123 {dimension_numbers = #tpu.dot_dimension_numbers<[1], [0], [0], [1], [0, 0, 1, 1], [], []>} : vector<8x128xf32>, vector<128x768xf32>, vector<8x768xf32> -> vector<8x768xf32>
    %485 = vector.extract_strided_slice %484 {offsets = [0, 0], sizes = [8, 384], strides = [1, 1]} : vector<8x768xf32> to vector<8x384xf32>
    %486 = arith.addf %485, %301 : vector<8x384xf32>
    %487 = vector.extract_strided_slice %484 {offsets = [0, 384], sizes = [8, 384], strides = [1, 1]} : vector<8x768xf32> to vector<8x384xf32>
    %488 = vector.broadcast %303 : vector<1x384xf32> to vector<8x384xf32>
    %489 = arith.addf %487, %488 : vector<8x384xf32>
    %490 = vector.extract_strided_slice %486 {offsets = [0, 0], sizes = [8, 128], strides = [1, 1]} : vector<8x384xf32> to vector<8x128xf32>
    %491 = vector.extract_strided_slice %489 {offsets = [0, 0], sizes = [8, 128], strides = [1, 1]} : vector<8x384xf32> to vector<8x128xf32>
    %492 = arith.addf %490, %491 : vector<8x128xf32>
    %cst_124 = arith.constant 5.000000e-01 : f32
    %493 = vector.broadcast %cst_124 : f32 to vector<8x128xf32>
    %494 = arith.mulf %493, %492 : vector<8x128xf32>
    %495 = math.tanh %494 : vector<8x128xf32>
    %cst_125 = arith.constant 1.000000e+00 : f32
    %496 = vector.broadcast %cst_125 : f32 to vector<8x128xf32>
    %497 = arith.addf %495, %496 : vector<8x128xf32>
    %cst_126 = arith.constant 5.000000e-01 : f32
    %498 = vector.broadcast %cst_126 : f32 to vector<8x128xf32>
    %499 = arith.mulf %498, %497 : vector<8x128xf32>
    %500 = vector.extract_strided_slice %486 {offsets = [0, 128], sizes = [8, 128], strides = [1, 1]} : vector<8x384xf32> to vector<8x128xf32>
    %501 = vector.extract_strided_slice %489 {offsets = [0, 128], sizes = [8, 128], strides = [1, 1]} : vector<8x384xf32> to vector<8x128xf32>
    %502 = arith.addf %500, %501 : vector<8x128xf32>
    %cst_127 = arith.constant 5.000000e-01 : f32
    %503 = vector.broadcast %cst_127 : f32 to vector<8x128xf32>
    %504 = arith.mulf %503, %502 : vector<8x128xf32>
    %505 = math.tanh %504 : vector<8x128xf32>
    %cst_128 = arith.constant 1.000000e+00 : f32
    %506 = vector.broadcast %cst_128 : f32 to vector<8x128xf32>
    %507 = arith.addf %505, %506 : vector<8x128xf32>
    %cst_129 = arith.constant 5.000000e-01 : f32
    %508 = vector.broadcast %cst_129 : f32 to vector<8x128xf32>
    %509 = arith.mulf %508, %507 : vector<8x128xf32>
    %510 = vector.extract_strided_slice %486 {offsets = [0, 256], sizes = [8, 128], strides = [1, 1]} : vector<8x384xf32> to vector<8x128xf32>
    %511 = vector.extract_strided_slice %489 {offsets = [0, 256], sizes = [8, 128], strides = [1, 1]} : vector<8x384xf32> to vector<8x128xf32>
    %512 = arith.mulf %499, %511 : vector<8x128xf32>
    %513 = arith.addf %510, %512 : vector<8x128xf32>
    %514 = math.tanh %513 : vector<8x128xf32>
    %cst_130 = arith.constant 1.000000e+00 : f32
    %515 = vector.broadcast %cst_130 : f32 to vector<8x128xf32>
    %516 = arith.subf %515, %509 : vector<8x128xf32>
    %517 = arith.mulf %516, %514 : vector<8x128xf32>
    %518 = arith.mulf %509, %483 : vector<8x128xf32>
    %519 = arith.addf %517, %518 : vector<8x128xf32>
    %cst_131 = arith.constant dense<0.000000e+00> : vector<8x768xf32>
    %520 = tpu.matmul %519, %302, %cst_131 {dimension_numbers = #tpu.dot_dimension_numbers<[1], [0], [0], [1], [0, 0, 1, 1], [], []>} : vector<8x128xf32>, vector<128x768xf32>, vector<8x768xf32> -> vector<8x768xf32>
    %521 = vector.extract_strided_slice %520 {offsets = [0, 0], sizes = [8, 384], strides = [1, 1]} : vector<8x768xf32> to vector<8x384xf32>
    %522 = arith.addf %521, %301 : vector<8x384xf32>
    %523 = vector.extract_strided_slice %520 {offsets = [0, 384], sizes = [8, 384], strides = [1, 1]} : vector<8x768xf32> to vector<8x384xf32>
    %524 = vector.broadcast %303 : vector<1x384xf32> to vector<8x384xf32>
    %525 = arith.addf %523, %524 : vector<8x384xf32>
    %526 = vector.extract_strided_slice %522 {offsets = [0, 0], sizes = [8, 128], strides = [1, 1]} : vector<8x384xf32> to vector<8x128xf32>
    %527 = vector.extract_strided_slice %525 {offsets = [0, 0], sizes = [8, 128], strides = [1, 1]} : vector<8x384xf32> to vector<8x128xf32>
    %528 = arith.addf %526, %527 : vector<8x128xf32>
    %cst_132 = arith.constant 5.000000e-01 : f32
    %529 = vector.broadcast %cst_132 : f32 to vector<8x128xf32>
    %530 = arith.mulf %529, %528 : vector<8x128xf32>
    %531 = math.tanh %530 : vector<8x128xf32>
    %cst_133 = arith.constant 1.000000e+00 : f32
    %532 = vector.broadcast %cst_133 : f32 to vector<8x128xf32>
    %533 = arith.addf %531, %532 : vector<8x128xf32>
    %cst_134 = arith.constant 5.000000e-01 : f32
    %534 = vector.broadcast %cst_134 : f32 to vector<8x128xf32>
    %535 = arith.mulf %534, %533 : vector<8x128xf32>
    %536 = vector.extract_strided_slice %522 {offsets = [0, 128], sizes = [8, 128], strides = [1, 1]} : vector<8x384xf32> to vector<8x128xf32>
    %537 = vector.extract_strided_slice %525 {offsets = [0, 128], sizes = [8, 128], strides = [1, 1]} : vector<8x384xf32> to vector<8x128xf32>
    %538 = arith.addf %536, %537 : vector<8x128xf32>
    %cst_135 = arith.constant 5.000000e-01 : f32
    %539 = vector.broadcast %cst_135 : f32 to vector<8x128xf32>
    %540 = arith.mulf %539, %538 : vector<8x128xf32>
    %541 = math.tanh %540 : vector<8x128xf32>
    %cst_136 = arith.constant 1.000000e+00 : f32
    %542 = vector.broadcast %cst_136 : f32 to vector<8x128xf32>
    %543 = arith.addf %541, %542 : vector<8x128xf32>
    %cst_137 = arith.constant 5.000000e-01 : f32
    %544 = vector.broadcast %cst_137 : f32 to vector<8x128xf32>
    %545 = arith.mulf %544, %543 : vector<8x128xf32>
    %546 = vector.extract_strided_slice %522 {offsets = [0, 256], sizes = [8, 128], strides = [1, 1]} : vector<8x384xf32> to vector<8x128xf32>
    %547 = vector.extract_strided_slice %525 {offsets = [0, 256], sizes = [8, 128], strides = [1, 1]} : vector<8x384xf32> to vector<8x128xf32>
    %548 = arith.mulf %535, %547 : vector<8x128xf32>
    %549 = arith.addf %546, %548 : vector<8x128xf32>
    %550 = math.tanh %549 : vector<8x128xf32>
    %cst_138 = arith.constant 1.000000e+00 : f32
    %551 = vector.broadcast %cst_138 : f32 to vector<8x128xf32>
    %552 = arith.subf %551, %545 : vector<8x128xf32>
    %553 = arith.mulf %552, %550 : vector<8x128xf32>
    %554 = arith.mulf %545, %519 : vector<8x128xf32>
    %555 = arith.addf %553, %554 : vector<8x128xf32>
    %cst_139 = arith.constant dense<0.000000e+00> : vector<8x768xf32>
    %556 = tpu.matmul %555, %302, %cst_139 {dimension_numbers = #tpu.dot_dimension_numbers<[1], [0], [0], [1], [0, 0, 1, 1], [], []>} : vector<8x128xf32>, vector<128x768xf32>, vector<8x768xf32> -> vector<8x768xf32>
    %557 = vector.extract_strided_slice %556 {offsets = [0, 0], sizes = [8, 384], strides = [1, 1]} : vector<8x768xf32> to vector<8x384xf32>
    %558 = arith.addf %557, %301 : vector<8x384xf32>
    %559 = vector.extract_strided_slice %556 {offsets = [0, 384], sizes = [8, 384], strides = [1, 1]} : vector<8x768xf32> to vector<8x384xf32>
    %560 = vector.broadcast %303 : vector<1x384xf32> to vector<8x384xf32>
    %561 = arith.addf %559, %560 : vector<8x384xf32>
    %562 = vector.extract_strided_slice %558 {offsets = [0, 0], sizes = [8, 128], strides = [1, 1]} : vector<8x384xf32> to vector<8x128xf32>
    %563 = vector.extract_strided_slice %561 {offsets = [0, 0], sizes = [8, 128], strides = [1, 1]} : vector<8x384xf32> to vector<8x128xf32>
    %564 = arith.addf %562, %563 : vector<8x128xf32>
    %cst_140 = arith.constant 5.000000e-01 : f32
    %565 = vector.broadcast %cst_140 : f32 to vector<8x128xf32>
    %566 = arith.mulf %565, %564 : vector<8x128xf32>
    %567 = math.tanh %566 : vector<8x128xf32>
    %cst_141 = arith.constant 1.000000e+00 : f32
    %568 = vector.broadcast %cst_141 : f32 to vector<8x128xf32>
    %569 = arith.addf %567, %568 : vector<8x128xf32>
    %cst_142 = arith.constant 5.000000e-01 : f32
    %570 = vector.broadcast %cst_142 : f32 to vector<8x128xf32>
    %571 = arith.mulf %570, %569 : vector<8x128xf32>
    %572 = vector.extract_strided_slice %558 {offsets = [0, 128], sizes = [8, 128], strides = [1, 1]} : vector<8x384xf32> to vector<8x128xf32>
    %573 = vector.extract_strided_slice %561 {offsets = [0, 128], sizes = [8, 128], strides = [1, 1]} : vector<8x384xf32> to vector<8x128xf32>
    %574 = arith.addf %572, %573 : vector<8x128xf32>
    %cst_143 = arith.constant 5.000000e-01 : f32
    %575 = vector.broadcast %cst_143 : f32 to vector<8x128xf32>
    %576 = arith.mulf %575, %574 : vector<8x128xf32>
    %577 = math.tanh %576 : vector<8x128xf32>
    %cst_144 = arith.constant 1.000000e+00 : f32
    %578 = vector.broadcast %cst_144 : f32 to vector<8x128xf32>
    %579 = arith.addf %577, %578 : vector<8x128xf32>
    %cst_145 = arith.constant 5.000000e-01 : f32
    %580 = vector.broadcast %cst_145 : f32 to vector<8x128xf32>
    %581 = arith.mulf %580, %579 : vector<8x128xf32>
    %582 = vector.extract_strided_slice %558 {offsets = [0, 256], sizes = [8, 128], strides = [1, 1]} : vector<8x384xf32> to vector<8x128xf32>
    %583 = vector.extract_strided_slice %561 {offsets = [0, 256], sizes = [8, 128], strides = [1, 1]} : vector<8x384xf32> to vector<8x128xf32>
    %584 = arith.mulf %571, %583 : vector<8x128xf32>
    %585 = arith.addf %582, %584 : vector<8x128xf32>
    %586 = math.tanh %585 : vector<8x128xf32>
    %cst_146 = arith.constant 1.000000e+00 : f32
    %587 = vector.broadcast %cst_146 : f32 to vector<8x128xf32>
    %588 = arith.subf %587, %581 : vector<8x128xf32>
    %589 = arith.mulf %588, %586 : vector<8x128xf32>
    %590 = arith.mulf %581, %555 : vector<8x128xf32>
    %591 = arith.addf %589, %590 : vector<8x128xf32>
    %592 = vector.shape_cast %339 : vector<8x128xf32> to vector<1x8x128xf32>
    %593 = vector.shape_cast %375 : vector<8x128xf32> to vector<1x8x128xf32>
    %594 = vector.shape_cast %411 : vector<8x128xf32> to vector<1x8x128xf32>
    %595 = vector.shape_cast %447 : vector<8x128xf32> to vector<1x8x128xf32>
    %596 = vector.shape_cast %483 : vector<8x128xf32> to vector<1x8x128xf32>
    %597 = vector.shape_cast %519 : vector<8x128xf32> to vector<1x8x128xf32>
    %598 = vector.shape_cast %555 : vector<8x128xf32> to vector<1x8x128xf32>
    %599 = vector.shape_cast %591 : vector<8x128xf32> to vector<1x8x128xf32>
    %600 = tpu.concatenate %592, %593, %594, %595, %596, %597, %598, %599 in 0 : vector<1x8x128xf32>, vector<1x8x128xf32>, vector<1x8x128xf32>, vector<1x8x128xf32>, vector<1x8x128xf32>, vector<1x8x128xf32>, vector<1x8x128xf32>, vector<1x8x128xf32> -> vector<8x8x128xf32>
    %c0_147 = arith.constant 0 : index
    %c0_148 = arith.constant 0 : index
    %601 = vector.load %arg10[%c0_147, %c0_148] : memref<1x128xf32, #tpu.memory_space<vmem>>, vector<1x128xf32>
    %602 = vector.shape_cast %601 : vector<1x128xf32> to vector<1x1x128xf32>
    %603 = vector.broadcast %602 : vector<1x1x128xf32> to vector<8x8x128xf32>
    %604 = arith.mulf %600, %603 : vector<8x8x128xf32>
    %cst_149 = arith.constant dense<0.000000e+00> : vector<8x8xf32>
    %605 = vector.multi_reduction <add>, %604, %cst_149 [2] : vector<8x8x128xf32> to vector<8x8xf32>
    %c0_150 = arith.constant 0 : index
    %c0_151 = arith.constant 0 : index
    %606 = vector.load %arg11[%c0_150, %c0_151] : memref<1x1xf32, #tpu.memory_space<vmem>>, vector<1x1xf32>
    %607 = vector.broadcast %606 : vector<1x1xf32> to vector<8x8xf32>
    %608 = arith.addf %605, %607 : vector<8x8xf32>
    %c0_152 = arith.constant 0 : index
    %c0_153 = arith.constant 0 : index
    %609 = vector.load %arg12[%c0_152, %c0_153] : memref<8x8xf32, #tpu.memory_space<vmem>>, vector<8x8xf32>
    tpu.vector_store %arg12[%c0_152, %c0_153], %608 {strides = array<i32>} : memref<8x8xf32, #tpu.memory_space<vmem>>, vector<8x8xf32>,
    return
  }
}

</mosaic_0001>

<llo_original>
// kernel: tpu_custom_call.1
$region0: #{tpu_custom_call.1}
  #allocation0 [shape = 'u32[]', space=smem, size = 0x4, offset = 0x4, fixed_abs, tag = 'smem constant byte address 0x4 - core index']
  #allocation1 [shape = 'u32[144,128]{1,0:T(1,128)}', space=vmem, size = 0x12000, scoped, tag = 'internal scratch']
  #allocation2 [shape = 'f32[1,1]{1,0:T(1,128)S(1)}', space=vmem, size = 0x200, scoped, tag = 'scoped memory for tpu_custom_call.1']
  %s0 = inlined_call_operand.vmem [shape: f32[8,8], index: 0, kind: input, shape index: {}]
  %s1 = inlined_call_operand.vmem [shape: f32[8,1], index: 1, kind: input, shape index: {}]
  %s2 = inlined_call_operand.vmem [shape: f32[1,384], index: 2, kind: input, shape index: {}]
  %s3 = inlined_call_operand.hbm [shape: f32[128,384], index: 3, kind: input, shape index: {}]
  %s4 = inlined_call_operand.vmem [shape: f32[1,384], index: 4, kind: input, shape index: {}]
  %s5 = inlined_call_operand.vmem [shape: f32[1,384], index: 5, kind: input, shape index: {}]
  %s6 = inlined_call_operand.vmem [shape: f32[1,384], index: 6, kind: input, shape index: {}]
  %s7 = inlined_call_operand.hbm [shape: f32[128,768], index: 7, kind: input, shape index: {}]
  %s8 = inlined_call_operand.vmem [shape: f32[1,384], index: 8, kind: input, shape index: {}]
  %s9 = inlined_call_operand.vmem [shape: f32[1,384], index: 9, kind: input, shape index: {}]
  %s10 = inlined_call_operand.vmem [shape: f32[1,128], index: 10, kind: input, shape index: {}]
  %s11 = inlined_call_operand.<no memory space> [shape: f32[1,1], index: 11, kind: input, shape index: {}]
  %s12 = inlined_call_operand.hbm [shape: f32[8,8], index: 12, kind: output, shape index: {}]
  %s13 = sld [smem:[#allocation0]]
  $region66: #{tpu_custom_call.1} parent=0
    _
  %s15 = ssub.s32 1, %s13
  %s16 = scalar_select 0, %s15, %s13
  %v17 = vstv %s11
  %18 = vst [vmem:[#allocation2] sm:$0x1] %v17
  $region1: #{tpu_custom_call.1} parent=0
    #allocation3 [shape = 'u8[196608]{0}', space=vmem, size = 0x30000, scoped, tag = 'input window, operand 3, single buffered']
    #allocation4 [shape = 's32[1]{0}', space=sflag, size = 0x4, scoped, tag = 'scoped memory for tpu_custom_call.1']
    #allocation5 [shape = 's32[1]{0}', space=sflag, size = 0x4, scoped, tag = 'scoped memory for tpu_custom_call.1']
    #allocation6 [shape = 'u8[393216]{0}', space=vmem, size = 0x60000, scoped, tag = 'input window, operand 7, single buffered']
    #allocation7 [shape = 's32[1]{0}', space=sflag, size = 0x4, scoped, tag = 'scoped memory for tpu_custom_call.1']
    #allocation8 [shape = 'u8[4096]{0}', space=vmem, size = 0x1000, scoped, tag = 'output window, operand 0, single buffered']
    %19 = vsyncpa [#allocation4], 0
    %20 = vsyncpa [#allocation7], 0
    %21 = vsyncpa [#allocation5], 0
    // Predicated region
    $region2: #{tpu_custom_call.1} parent=1 // pred_check
      _
    $region3: #{tpu_custom_call.1} parent=1 // pred_check_branch
      %23 = sbr.rel (0) target = $region5
    $region4: #{tpu_custom_call.1} parent=1 // pred_region
      _
    $region5: #{tpu_custom_call.1} parent=1 // pred_fallthru
      _
    // Predicated region
    $region6: #{tpu_custom_call.1} parent=1 // pred_check
      _
    $region7: #{tpu_custom_call.1} parent=1 // pred_check_branch
      %25 = sbr.rel (0) target = $region9
    $region8: #{tpu_custom_call.1} parent=1 // pred_region
      _
    $region9: #{tpu_custom_call.1} parent=1 // pred_fallthru
      _
    // Predicated region
    $region10: #{tpu_custom_call.1} parent=1 // pred_check
      _
    $region11: #{tpu_custom_call.1} parent=1 // pred_check_branch
      %27 = sbr.rel (0) target = $region13
    $region12: #{tpu_custom_call.1} parent=1 // pred_region
      _
    $region13: #{tpu_custom_call.1} parent=1 // pred_fallthru
      _
    // Predicated region
    $region14: #{tpu_custom_call.1} parent=1 // pred_check
      _
    $region15: #{tpu_custom_call.1} parent=1 // pred_check_branch
      %29 = sbr.rel (0) target = $region17
    $region16: #{tpu_custom_call.1} parent=1 // pred_region
      %s31 = ssub.s32 6144, 6144
      %32 = vsyncadd [#allocation4], %s31
      %s33 = sshll.u32 [#allocation3], 4
      %s34 = int_to_ptr.vmem [resolvable:$true] %s33
      %39 = dma.hbm_to_vmem [thread:$0]  %s3, 6144, %s34, [#allocation4], 384, 384, 24
    $region17: #{tpu_custom_call.1} parent=1 // pred_fallthru
      _
    // Predicated region
    $region18: #{tpu_custom_call.1} parent=1 // pred_check
      _
    $region19: #{tpu_custom_call.1} parent=1 // pred_check_branch
      %41 = sbr.rel (0) target = $region21
    $region20: #{tpu_custom_call.1} parent=1 // pred_region
      _
    $region21: #{tpu_custom_call.1} parent=1 // pred_fallthru
      _
    // Predicated region
    $region22: #{tpu_custom_call.1} parent=1 // pred_check
      _
    $region23: #{tpu_custom_call.1} parent=1 // pred_check_branch
      %43 = sbr.rel (0) target = $region25
    $region24: #{tpu_custom_call.1} parent=1 // pred_region
      _
    $region25: #{tpu_custom_call.1} parent=1 // pred_fallthru
      _
    // Predicated region
    $region26: #{tpu_custom_call.1} parent=1 // pred_check
      _
    $region27: #{tpu_custom_call.1} parent=1 // pred_check_branch
      %45 = sbr.rel (0) target = $region29
    $region28: #{tpu_custom_call.1} parent=1 // pred_region
      _
    $region29: #{tpu_custom_call.1} parent=1 // pred_fallthru
      _
    // Predicated region
    $region30: #{tpu_custom_call.1} parent=1 // pred_check
      _
    $region31: #{tpu_custom_call.1} parent=1 // pred_check_branch
      %47 = sbr.rel (0) target = $region33
    $region32: #{tpu_custom_call.1} parent=1 // pred_region
      %s49 = ssub.s32 12288, 12288
      %50 = vsyncadd [#allocation7], %s49
      %s51 = sshll.u32 [#allocation6], 4
      %s52 = int_to_ptr.vmem [resolvable:$true] %s51
      %57 = dma.hbm_to_vmem [thread:$0]  %s7, 12288, %s52, [#allocation7], 768, 768, 48
    $region33: #{tpu_custom_call.1} parent=1 // pred_fallthru
      _
    // Predicated region
    $region34: #{tpu_custom_call.1} parent=1 // pred_check
      _
    $region35: #{tpu_custom_call.1} parent=1 // pred_check_branch
      %59 = sbr.rel (0) target = $region37
    $region36: #{tpu_custom_call.1} parent=1 // pred_region
      _
    $region37: #{tpu_custom_call.1} parent=1 // pred_fallthru
      _
    // Predicated region
    $region38: #{tpu_custom_call.1} parent=1 // pred_check
      _
    $region39: #{tpu_custom_call.1} parent=1 // pred_check_branch
      %61 = sbr.rel (0) target = $region41
    $region40: #{tpu_custom_call.1} parent=1 // pred_region
      _
    $region41: #{tpu_custom_call.1} parent=1 // pred_fallthru
      _
    // Predicated region
    $region42: #{tpu_custom_call.1} parent=1 // pred_check
      _
    $region43: #{tpu_custom_call.1} parent=1 // pred_check_branch
      %63 = sbr.rel (0) target = $region45
    $region44: #{tpu_custom_call.1} parent=1 // pred_region
      _
    $region45: #{tpu_custom_call.1} parent=1 // pred_fallthru
      _
    // Predicated region
    $region46: #{tpu_custom_call.1} parent=1 // pred_check
      _
    $region47: #{tpu_custom_call.1} parent=1 // pred_check_branch
      %65 = sbr.rel (0) target = $region49
    $region48: #{tpu_custom_call.1} parent=1 // pred_region
      _
    $region49: #{tpu_custom_call.1} parent=1 // pred_fallthru
      _
    // Predicated region
    $region50: #{tpu_custom_call.1} parent=1 // pred_check
      _
    $region51: #{tpu_custom_call.1} parent=1 // pred_check_branch
      %67 = sbr.rel (0) target = $region53
    $region52: #{tpu_custom_call.1} parent=1 // pred_region
      %68 = dma.done [#allocation4], 6144
    $region53: #{tpu_custom_call.1} parent=1 // pred_fallthru
      _
    // Predicated region
    $region54: #{tpu_custom_call.1} parent=1 // pred_check
      _
    $region55: #{tpu_custom_call.1} parent=1 // pred_check_branch
      %70 = sbr.rel (0) target = $region57
    $region56: #{tpu_custom_call.1} parent=1 // pred_region
      %71 = dma.done [#allocation7], 12288
    $region57: #{tpu_custom_call.1} parent=1 // pred_fallthru
      _
    %v72 = vld [vmem:[#allocation3] sm:$0xff]
    %v73 = vld [vmem:[#allocation3 + $0x8] sm:$0xff]
    %v74 = vld [vmem:[#allocation3 + $0x10] sm:$0xff]
    %v75 = vld [vmem:[#allocation3 + $0x18] sm:$0xff]
    %v76 = vld [vmem:[#allocation3 + $0x20] sm:$0xff]
    %v77 = vld [vmem:[#allocation3 + $0x28] sm:$0xff]
    %v78 = vld [vmem:[#allocation3 + $0x30] sm:$0xff]
    %v79 = vld [vmem:[#allocation3 + $0x38] sm:$0xff]
    %v80 = vld [vmem:[#allocation3 + $0x40] sm:$0xff]
    %v81 = vld [vmem:[#allocation3 + $0x48] sm:$0xff]
    %v82 = vld [vmem:[#allocation3 + $0x50] sm:$0xff]
    %v83 = vld [vmem:[#allocation3 + $0x58] sm:$0xff]
    %v84 = vld [vmem:[#allocation3 + $0x60] sm:$0xff]
    %v85 = vld [vmem:[#allocation3 + $0x68] sm:$0xff]
    %v86 = vld [vmem:[#allocation3 + $0x70] sm:$0xff]
    %v87 = vld [vmem:[#allocation3 + $0x78] sm:$0xff]
    %v88 = vld [vmem:[#allocation3 + $0x80] sm:$0xff]
    %v89 = vld [vmem:[#allocation3 + $0x88] sm:$0xff]
    %v90 = vld [vmem:[#allocation3 + $0x90] sm:$0xff]
    %v91 = vld [vmem:[#allocation3 + $0x98] sm:$0xff]
    %v92 = vld [vmem:[#allocation3 + $0xa0] sm:$0xff]
    %v93 = vld [vmem:[#allocation3 + $0xa8] sm:$0xff]
    %v94 = vld [vmem:[#allocation3 + $0xb0] sm:$0xff]
    %v95 = vld [vmem:[#allocation3 + $0xb8] sm:$0xff]
    %v96 = vld [vmem:[#allocation3 + $0xc0] sm:$0xff]
    %v97 = vld [vmem:[#allocation3 + $0xc8] sm:$0xff]
    %v98 = vld [vmem:[#allocation3 + $0xd0] sm:$0xff]
    %v99 = vld [vmem:[#allocation3 + $0xd8] sm:$0xff]
    %v100 = vld [vmem:[#allocation3 + $0xe0] sm:$0xff]
    %v101 = vld [vmem:[#allocation3 + $0xe8] sm:$0xff]
    %v102 = vld [vmem:[#allocation3 + $0xf0] sm:$0xff]
    %v103 = vld [vmem:[#allocation3 + $0xf8] sm:$0xff]
    %v104 = vld [vmem:[#allocation3 + $0x100] sm:$0xff]
    %v105 = vld [vmem:[#allocation3 + $0x108] sm:$0xff]
    %v106 = vld [vmem:[#allocation3 + $0x110] sm:$0xff]
    %v107 = vld [vmem:[#allocation3 + $0x118] sm:$0xff]
    %v108 = vld [vmem:[#allocation3 + $0x120] sm:$0xff]
    %v109 = vld [vmem:[#allocation3 + $0x128] sm:$0xff]
    %v110 = vld [vmem:[#allocation3 + $0x130] sm:$0xff]
    %v111 = vld [vmem:[#allocation3 + $0x138] sm:$0xff]
    %v112 = vld [vmem:[#allocation3 + $0x140] sm:$0xff]
    %v113 = vld [vmem:[#allocation3 + $0x148] sm:$0xff]
    %v114 = vld [vmem:[#allocation3 + $0x150] sm:$0xff]
    %v115 = vld [vmem:[#allocation3 + $0x158] sm:$0xff]
    %v116 = vld [vmem:[#allocation3 + $0x160] sm:$0xff]
    %v117 = vld [vmem:[#allocation3 + $0x168] sm:$0xff]
    %v118 = vld [vmem:[#allocation3 + $0x170] sm:$0xff]
    %v119 = vld [vmem:[#allocation3 + $0x178] sm:$0xff]
    %v120 = vld [vmem:[%s5] sm:$0x7]
    %v121 = vld [vmem:[%s0] sm:$0xff]
    %v122 = vlaneseq
    %v123 = vshrl.u32 %v122, 7
    %v124 = vsub.s32 0, %v123
    %v125 = vrot.slane %v121, %v124
    %127 = vbcast.lane.b32.xlu0 %v125, 256
    %v128 = vpop.permute.xlu0 %127
    %v129 = vlaneseq
    %v130 = vshrl.u32 %v129, 7
    %v131 = vsub.s32 1, %v130
    %v132 = vrot.slane %v121, %v131
    %134 = vbcast.lane.b32.xlu0 %v132, 256
    %v135 = vpop.permute.xlu0 %134
    %v136 = vlaneseq
    %v137 = vshrl.u32 %v136, 7
    %v138 = vsub.s32 2, %v137
    %v139 = vrot.slane %v121, %v138
    %141 = vbcast.lane.b32.xlu0 %v139, 256
    %v142 = vpop.permute.xlu0 %141
    %v143 = vlaneseq
    %v144 = vshrl.u32 %v143, 7
    %v145 = vsub.s32 3, %v144
    %v146 = vrot.slane %v121, %v145
    %148 = vbcast.lane.b32.xlu0 %v146, 256
    %v149 = vpop.permute.xlu0 %148
    %v150 = vlaneseq
    %v151 = vshrl.u32 %v150, 7
    %v152 = vsub.s32 4, %v151
    %v153 = vrot.slane %v121, %v152
    %155 = vbcast.lane.b32.xlu0 %v153, 256
    %v156 = vpop.permute.xlu0 %155
    %v157 = vlaneseq
    %v158 = vshrl.u32 %v157, 7
    %v159 = vsub.s32 5, %v158
    %v160 = vrot.slane %v121, %v159
    %162 = vbcast.lane.b32.xlu0 %v160, 256
    %v163 = vpop.permute.xlu0 %162
    %v164 = vlaneseq
    %v165 = vshrl.u32 %v164, 7
    %v166 = vsub.s32 6, %v165
    %v167 = vrot.slane %v121, %v166
    %169 = vbcast.lane.b32.xlu0 %v167, 256
    %v170 = vpop.permute.xlu0 %169
    %v171 = vlaneseq
    %v172 = vshrl.u32 %v171, 7
    %v173 = vsub.s32 7, %v172
    %v174 = vrot.slane %v121, %v173
    %176 = vbcast.lane.b32.xlu0 %v174, 256
    %v177 = vpop.permute.xlu0 %176
    %v178 = vld [vmem:[%s2] sm:$0x7]
    %v180 = vlaneseq
    %v181 = vshrl.u32 %v180, 7
    %v182 = vsub.s32 0, %v181
    %v183 = vrot.slane %v178, %v182
    %v184 = vlaneseq
    %v185 = vshrl.u32 %v184, 7
    %v186 = vsub.s32 1, %v185
    %v187 = vrot.slane %v178, %v186
    %v188 = vlaneseq
    %v189 = vshrl.u32 %v188, 7
    %v190 = vsub.s32 2, %v189
    %v191 = vrot.slane %v178, %v190
    %v195 = vmul.f32 %v128, %v183
    %v196 = vmul.f32 %v128, %v187
    %v197 = vmul.f32 %v128, %v191
    %v198 = vmul.f32 %v135, %v183
    %v199 = vmul.f32 %v135, %v187
    %v200 = vmul.f32 %v135, %v191
    %v201 = vmul.f32 %v142, %v183
    %v202 = vmul.f32 %v142, %v187
    %v203 = vmul.f32 %v142, %v191
    %v204 = vmul.f32 %v149, %v183
    %v205 = vmul.f32 %v149, %v187
    %v206 = vmul.f32 %v149, %v191
    %v207 = vmul.f32 %v156, %v183
    %v208 = vmul.f32 %v156, %v187
    %v209 = vmul.f32 %v156, %v191
    %v210 = vmul.f32 %v163, %v183
    %v211 = vmul.f32 %v163, %v187
    %v212 = vmul.f32 %v163, %v191
    %v213 = vmul.f32 %v170, %v183
    %v214 = vmul.f32 %v170, %v187
    %v215 = vmul.f32 %v170, %v191
    %v216 = vmul.f32 %v177, %v183
    %v217 = vmul.f32 %v177, %v187
    %v218 = vmul.f32 %v177, %v191
    %v219 = vld [vmem:[%s4] sm:$0x7]
    %v221 = vlaneseq
    %v222 = vshrl.u32 %v221, 7
    %v223 = vsub.s32 0, %v222
    %v224 = vrot.slane %v219, %v223
    %v225 = vlaneseq
    %v226 = vshrl.u32 %v225, 7
    %v227 = vsub.s32 1, %v226
    %v228 = vrot.slane %v219, %v227
    %v229 = vlaneseq
    %v230 = vshrl.u32 %v229, 7
    %v231 = vsub.s32 2, %v230
    %v232 = vrot.slane %v219, %v231
    %v236 = vadd.f32 %v195, %v224
    %v237 = vadd.f32 %v196, %v228
    %v238 = vadd.f32 %v197, %v232
    %v239 = vadd.f32 %v198, %v224
    %v240 = vadd.f32 %v199, %v228
    %v241 = vadd.f32 %v200, %v232
    %v242 = vadd.f32 %v201, %v224
    %v243 = vadd.f32 %v202, %v228
    %v244 = vadd.f32 %v203, %v232
    %v245 = vadd.f32 %v204, %v224
    %v246 = vadd.f32 %v205, %v228
    %v247 = vadd.f32 %v206, %v232
    %v248 = vadd.f32 %v207, %v224
    %v249 = vadd.f32 %v208, %v228
    %v250 = vadd.f32 %v209, %v232
    %v251 = vadd.f32 %v210, %v224
    %v252 = vadd.f32 %v211, %v228
    %v253 = vadd.f32 %v212, %v232
    %v254 = vadd.f32 %v213, %v224
    %v255 = vadd.f32 %v214, %v228
    %v256 = vadd.f32 %v215, %v232
    %v257 = vadd.f32 %v216, %v224
    %v258 = vadd.f32 %v217, %v228
    %v259 = vadd.f32 %v218, %v232
    %v261 = vlaneseq
    %v262 = vshrl.u32 %v261, 7
    %v263 = vsub.s32 0, %v262
    %v264 = vrot.slane %v120, %v263
    %v265 = vlaneseq
    %v266 = vshrl.u32 %v265, 7
    %v267 = vsub.s32 1, %v266
    %v268 = vrot.slane %v120, %v267
    %v269 = vlaneseq
    %v270 = vshrl.u32 %v269, 7
    %v271 = vsub.s32 2, %v270
    %v272 = vrot.slane %v120, %v271
    %276 = vmatprep.subr.mxu0 %v73
    %277 = vmatpush1.msra.mxu0 %v72
    %278 = vmatprep.subr.mxu0 %v76
    %279 = vmatpush1.msra.mxu0 %v75
    %280 = vmatprep.subr.mxu0 %v79
    %281 = vmatpush1.msra.mxu0 %v78
    %282 = vmatprep.subr.mxu0 %v82
    %283 = vmatpush1.msra.mxu0 %v81
    %284 = vmatprep.subr.mxu0 %v85
    %285 = vmatpush1.msra.mxu0 %v84
    %286 = vmatprep.subr.mxu0 %v88
    %287 = vmatpush1.msra.mxu0 %v87
    %288 = vmatprep.subr.mxu0 %v91
    %289 = vmatpush1.msra.mxu0 %v90
    %290 = vmatprep.subr.mxu0 %v94
    %291 = vmatpush1.msra.mxu0 %v93
    %292 = vmatprep.subr.mxu0 %v97
    %293 = vmatpush1.msra.mxu0 %v96
    %294 = vmatprep.subr.mxu0 %v100
    %295 = vmatpush1.msra.mxu0 %v99
    %296 = vmatprep.subr.mxu0 %v103
    %297 = vmatpush1.msra.mxu0 %v102
    %298 = vmatprep.subr.mxu0 %v106
    %299 = vmatpush1.msra.mxu0 %v105
    %300 = vmatprep.subr.mxu0 %v109
    %301 = vmatpush1.msra.mxu0 %v108
    %302 = vmatprep.subr.mxu0 %v112
    %303 = vmatpush1.msra.mxu0 %v111
    %304 = vmatprep.subr.mxu0 %v115
    %305 = vmatpush1.msra.mxu0 %v114
    %306 = vmatprep.subr.mxu0 %v118
    %307 = vmatpush1.msra.mxu0 %v117
    %308 = vmatprep.subr.mxu0 0.0
    %309 = vmatpush1.msra.mxu0 0.0
    %310 = vmatprep.subr.mxu0 0.0
    %311 = vmatpush1.msra.mxu0 0.0
    %312 = vmatprep.subr.mxu0 0.0
    %313 = vmatpush1.msra.mxu0 0.0
    %314 = vmatprep.subr.mxu0 0.0
    %315 = vmatpush1.msra.mxu0 0.0
    %316 = vmatprep.subr.mxu0 0.0
    %317 = vmatpush1.msra.mxu0 0.0
    %318 = vmatprep.subr.mxu0 0.0
    %319 = vmatpush1.msra.mxu0 0.0
    %320 = vmatprep.subr.mxu0 0.0
    %321 = vmatpush1.msra.mxu0 0.0
    %322 = vmatprep.subr.mxu0 0.0
    %323 = vmatpush1.msra.mxu0 0.0
    %324 = vmatprep.subr.mxu0 0.0
    %325 = vmatpush1.msra.mxu0 0.0
    %326 = vmatprep.subr.mxu0 0.0
    %327 = vmatpush1.msra.mxu0 0.0
    %328 = vmatprep.subr.mxu0 0.0
    %329 = vmatpush1.msra.mxu0 0.0
    %330 = vmatprep.subr.mxu0 0.0
    %331 = vmatpush1.msra.mxu0 0.0
    %332 = vmatprep.subr.mxu0 0.0
    %333 = vmatpush1.msra.mxu0 0.0
    %334 = vmatprep.subr.mxu0 0.0
    %335 = vmatpush1.msra.mxu0 0.0
    %336 = vmatprep.subr.mxu0 0.0
    %337 = vmatpush1.msra.mxu0 0.0
    %338 = vmatprep.subr.mxu0 0.0
    %339 = vmatpush1.msra.mxu0 0.0
    %340 = vmatprep.mubr.f32.mxu0 0.0
    %341 = vmatmul.mubr.f32.gmra.mrb[0].mxu0 0.0
    %v342 = vpop.f32.mrb[0].mxu0
    %v343 = vadd.f32 %v264, %v342
    %v344 = vpop.f32.mrb[0].mxu0
    %v345 = vadd.f32 %v268, %v344
    %346 = vdwg.mxu0
    %347 = vmatprep.subr.mxu0 0.0
    %348 = vmatpush1.msra.mxu0 %v74
    %349 = vmatprep.subr.mxu0 0.0
    %350 = vmatpush1.msra.mxu0 %v77
    %351 = vmatprep.subr.mxu0 0.0
    %352 = vmatpush1.msra.mxu0 %v80
    %353 = vmatprep.subr.mxu0 0.0
    %354 = vmatpush1.msra.mxu0 %v83
    %355 = vmatprep.subr.mxu0 0.0
    %356 = vmatpush1.msra.mxu0 %v86
    %357 = vmatprep.subr.mxu0 0.0
    %358 = vmatpush1.msra.mxu0 %v89
    %359 = vmatprep.subr.mxu0 0.0
    %360 = vmatpush1.msra.mxu0 %v92
    %361 = vmatprep.subr.mxu0 0.0
    %362 = vmatpush1.msra.mxu0 %v95
    %363 = vmatprep.subr.mxu0 0.0
    %364 = vmatpush1.msra.mxu0 %v98
    %365 = vmatprep.subr.mxu0 0.0
    %366 = vmatpush1.msra.mxu0 %v101
    %367 = vmatprep.subr.mxu0 0.0
    %368 = vmatpush1.msra.mxu0 %v104
    %369 = vmatprep.subr.mxu0 0.0
    %370 = vmatpush1.msra.mxu0 %v107
    %371 = vmatprep.subr.mxu0 0.0
    %372 = vmatpush1.msra.mxu0 %v110
    %373 = vmatprep.subr.mxu0 0.0
    %374 = vmatpush1.msra.mxu0 %v113
    %375 = vmatprep.subr.mxu0 0.0
    %376 = vmatpush1.msra.mxu0 %v116
    %377 = vmatprep.subr.mxu0 0.0
    %378 = vmatpush1.msra.mxu0 %v119
    %379 = vmatprep.subr.mxu0 0.0
    %380 = vmatpush1.msra.mxu0 0.0
    %381 = vmatprep.subr.mxu0 0.0
    %382 = vmatpush1.msra.mxu0 0.0
    %383 = vmatprep.subr.mxu0 0.0
    %384 = vmatpush1.msra.mxu0 0.0
    %385 = vmatprep.subr.mxu0 0.0
    %386 = vmatpush1.msra.mxu0 0.0
    %387 = vmatprep.subr.mxu0 0.0
    %388 = vmatpush1.msra.mxu0 0.0
    %389 = vmatprep.subr.mxu0 0.0
    %390 = vmatpush1.msra.mxu0 0.0
    %391 = vmatprep.subr.mxu0 0.0
    %392 = vmatpush1.msra.mxu0 0.0
    %393 = vmatprep.subr.mxu0 0.0
    %394 = vmatpush1.msra.mxu0 0.0
    %395 = vmatprep.subr.mxu0 0.0
    %396 = vmatpush1.msra.mxu0 0.0
    %397 = vmatprep.subr.mxu0 0.0
    %398 = vmatpush1.msra.mxu0 0.0
    %399 = vmatprep.subr.mxu0 0.0
    %400 = vmatpush1.msra.mxu0 0.0
    %401 = vmatprep.subr.mxu0 0.0
    %402 = vmatpush1.msra.mxu0 0.0
    %403 = vmatprep.subr.mxu0 0.0
    %404 = vmatpush1.msra.mxu0 0.0
    %405 = vmatprep.subr.mxu0 0.0
    %406 = vmatpush1.msra.mxu0 0.0
    %407 = vmatprep.subr.mxu0 0.0
    %408 = vmatpush1.msra.mxu0 0.0
    %409 = vmatprep.subr.mxu0 0.0
    %410 = vmatpush1.msra.mxu0 0.0
    %411 = vmatprep.mubr.f32.mxu0 0.0
    %412 = vmatmul.mubr.f32.gmra.mrb[0].mxu0 0.0
    %v413 = vpop.f32.mrb[0].mxu0
    %v414 = vadd.f32 %v272, %v413
    %v415 = vpop.f32.mrb[0].mxu0
    %416 = vdwg.mxu0
    %v417 = vadd.f32 %v236, %v343
    %v418 = vmul.f32 %v417, 0.5
    %v419 = vtanh.pop %v418
    %v420 = vadd.f32 %v419, 1.0
    %v421 = vmul.f32 %v420, 0.5
    %v422 = vadd.f32 %v237, %v345
    %v423 = vmul.f32 %v422, 0.5
    %v424 = vtanh.pop %v423
    %v425 = vadd.f32 %v424, 1.0
    %v426 = vmul.f32 %v425, 0.5
    %v427 = vmul.f32 %v421, %v414
    %v428 = vadd.f32 %v238, %v427
    %v429 = vtanh.pop %v428
    %v430 = vsub.f32 1.0, %v426
    %v431 = vmul.f32 %v430, %v429
    %v432 = vmul.f32 %v426, 0.0
    %v433 = vadd.f32 %v431, %v432
    %434 = vmatprep.subr.mxu0 %v73
    %435 = vmatpush1.msra.mxu0 %v72
    %436 = vmatprep.subr.mxu0 %v76
    %437 = vmatpush1.msra.mxu0 %v75
    %438 = vmatprep.subr.mxu0 %v79
    %439 = vmatpush1.msra.mxu0 %v78
    %440 = vmatprep.subr.mxu0 %v82
    %441 = vmatpush1.msra.mxu0 %v81
    %442 = vmatprep.subr.mxu0 %v85
    %443 = vmatpush1.msra.mxu0 %v84
    %444 = vmatprep.subr.mxu0 %v88
    %445 = vmatpush1.msra.mxu0 %v87
    %446 = vmatprep.subr.mxu0 %v91
    %447 = vmatpush1.msra.mxu0 %v90
    %448 = vmatprep.subr.mxu0 %v94
    %449 = vmatpush1.msra.mxu0 %v93
    %450 = vmatprep.subr.mxu0 %v97
    %451 = vmatpush1.msra.mxu0 %v96
    %452 = vmatprep.subr.mxu0 %v100
    %453 = vmatpush1.msra.mxu0 %v99
    %454 = vmatprep.subr.mxu0 %v103
    %455 = vmatpush1.msra.mxu0 %v102
    %456 = vmatprep.subr.mxu0 %v106
    %457 = vmatpush1.msra.mxu0 %v105
    %458 = vmatprep.subr.mxu0 %v109
    %459 = vmatpush1.msra.mxu0 %v108
    %460 = vmatprep.subr.mxu0 %v112
    %461 = vmatpush1.msra.mxu0 %v111
    %462 = vmatprep.subr.mxu0 %v115
    %463 = vmatpush1.msra.mxu0 %v114
    %464 = vmatprep.subr.mxu0 %v118
    %465 = vmatpush1.msra.mxu0 %v117
    %466 = vmatprep.subr.mxu0 0.0
    %467 = vmatpush1.msra.mxu0 0.0
    %468 = vmatprep.subr.mxu0 0.0
    %469 = vmatpush1.msra.mxu0 0.0
    %470 = vmatprep.subr.mxu0 0.0
    %471 = vmatpush1.msra.mxu0 0.0
    %472 = vmatprep.subr.mxu0 0.0
    %473 = vmatpush1.msra.mxu0 0.0
    %474 = vmatprep.subr.mxu0 0.0
    %475 = vmatpush1.msra.mxu0 0.0
    %476 = vmatprep.subr.mxu0 0.0
    %477 = vmatpush1.msra.mxu0 0.0
    %478 = vmatprep.subr.mxu0 0.0
    %479 = vmatpush1.msra.mxu0 0.0
    %480 = vmatprep.subr.mxu0 0.0
    %481 = vmatpush1.msra.mxu0 0.0
    %482 = vmatprep.subr.mxu0 0.0
    %483 = vmatpush1.msra.mxu0 0.0
    %484 = vmatprep.subr.mxu0 0.0
    %485 = vmatpush1.msra.mxu0 0.0
    %486 = vmatprep.subr.mxu0 0.0
    %487 = vmatpush1.msra.mxu0 0.0
    %488 = vmatprep.subr.mxu0 0.0
    %489 = vmatpush1.msra.mxu0 0.0
    %490 = vmatprep.subr.mxu0 0.0
    %491 = vmatpush1.msra.mxu0 0.0
    %492 = vmatprep.subr.mxu0 0.0
    %493 = vmatpush1.msra.mxu0 0.0
    %494 = vmatprep.subr.mxu0 0.0
    %495 = vmatpush1.msra.mxu0 0.0
    %496 = vmatprep.subr.mxu0 0.0
    %497 = vmatpush1.msra.mxu0 0.0
    %498 = vmatprep.mubr.f32.mxu0 0.0
    %499 = vmatmul.mubr.f32.gmra.mrb[0].mxu0 %v433
    %v500 = vpop.f32.mrb[0].mxu0
    %v501 = vadd.f32 %v264, %v500
    %v502 = vpop.f32.mrb[0].mxu0
    %v503 = vadd.f32 %v268, %v502
    %504 = vdwg.mxu0
    %505 = vmatprep.subr.mxu0 0.0
    %506 = vmatpush1.msra.mxu0 %v74
    %507 = vmatprep.subr.mxu0 0.0
    %508 = vmatpush1.msra.mxu0 %v77
    %509 = vmatprep.subr.mxu0 0.0
    %510 = vmatpush1.msra.mxu0 %v80
    %511 = vmatprep.subr.mxu0 0.0
    %512 = vmatpush1.msra.mxu0 %v83
    %513 = vmatprep.subr.mxu0 0.0
    %514 = vmatpush1.msra.mxu0 %v86
    %515 = vmatprep.subr.mxu0 0.0
    %516 = vmatpush1.msra.mxu0 %v89
    %517 = vmatprep.subr.mxu0 0.0
    %518 = vmatpush1.msra.mxu0 %v92
    %519 = vmatprep.subr.mxu0 0.0
    %520 = vmatpush1.msra.mxu0 %v95
    %521 = vmatprep.subr.mxu0 0.0
    %522 = vmatpush1.msra.mxu0 %v98
    %523 = vmatprep.subr.mxu0 0.0
    %524 = vmatpush1.msra.mxu0 %v101
    %525 = vmatprep.subr.mxu0 0.0
    %526 = vmatpush1.msra.mxu0 %v104
    %527 = vmatprep.subr.mxu0 0.0
    %528 = vmatpush1.msra.mxu0 %v107
    %529 = vmatprep.subr.mxu0 0.0
    %530 = vmatpush1.msra.mxu0 %v110
    %531 = vmatprep.subr.mxu0 0.0
    %532 = vmatpush1.msra.mxu0 %v113
    %533 = vmatprep.subr.mxu0 0.0
    %534 = vmatpush1.msra.mxu0 %v116
    %535 = vmatprep.subr.mxu0 0.0
    %536 = vmatpush1.msra.mxu0 %v119
    %537 = vmatprep.subr.mxu0 0.0
    %538 = vmatpush1.msra.mxu0 0.0
    %539 = vmatprep.subr.mxu0 0.0
    %540 = vmatpush1.msra.mxu0 0.0
    %541 = vmatprep.subr.mxu0 0.0
    %542 = vmatpush1.msra.mxu0 0.0
    %543 = vmatprep.subr.mxu0 0.0
    %544 = vmatpush1.msra.mxu0 0.0
    %545 = vmatprep.subr.mxu0 0.0
    %546 = vmatpush1.msra.mxu0 0.0
    %547 = vmatprep.subr.mxu0 0.0
    %548 = vmatpush1.msra.mxu0 0.0
    %549 = vmatprep.subr.mxu0 0.0
    %550 = vmatpush1.msra.mxu0 0.0
    %551 = vmatprep.subr.mxu0 0.0
    %552 = vmatpush1.msra.mxu0 0.0
    %553 = vmatprep.subr.mxu0 0.0
    %554 = vmatpush1.msra.mxu0 0.0
    %555 = vmatprep.subr.mxu0 0.0
    %556 = vmatpush1.msra.mxu0 0.0
    %557 = vmatprep.subr.mxu0 0.0
    %558 = vmatpush1.msra.mxu0 0.0
    %559 = vmatprep.subr.mxu0 0.0
    %560 = vmatpush1.msra.mxu0 0.0
    %561 = vmatprep.subr.mxu0 0.0
    %562 = vmatpush1.msra.mxu0 0.0
    %563 = vmatprep.subr.mxu0 0.0
    %564 = vmatpush1.msra.mxu0 0.0
    %565 = vmatprep.subr.mxu0 0.0
    %566 = vmatpush1.msra.mxu0 0.0
    %567 = vmatprep.subr.mxu0 0.0
    %568 = vmatpush1.msra.mxu0 0.0
    %569 = vmatprep.mubr.f32.mxu0 0.0
    %570 = vmatmul.mubr.f32.gmra.mrb[0].mxu0 %v433
    %v571 = vpop.f32.mrb[0].mxu0
    %v572 = vadd.f32 %v272, %v571
    %v573 = vpop.f32.mrb[0].mxu0
    %574 = vdwg.mxu0
    %v575 = vadd.f32 %v239, %v501
    %v576 = vmul.f32 %v575, 0.5
    %v577 = vtanh.pop %v576
    %v578 = vadd.f32 %v577, 1.0
    %v579 = vmul.f32 %v578, 0.5
    %v580 = vadd.f32 %v240, %v503
    %v581 = vmul.f32 %v580, 0.5
    %v582 = vtanh.pop %v581
    %v583 = vadd.f32 %v582, 1.0
    %v584 = vmul.f32 %v583, 0.5
    %v585 = vmul.f32 %v579, %v572
    %v586 = vadd.f32 %v241, %v585
    %v587 = vtanh.pop %v586
    %v588 = vsub.f32 1.0, %v584
    %v589 = vmul.f32 %v588, %v587
    %v590 = vmul.f32 %v584, %v433
    %v591 = vadd.f32 %v589, %v590
    %592 = vmatprep.subr.mxu0 %v73
    %593 = vmatpush1.msra.mxu0 %v72
    %594 = vmatprep.subr.mxu0 %v76
    %595 = vmatpush1.msra.mxu0 %v75
    %596 = vmatprep.subr.mxu0 %v79
    %597 = vmatpush1.msra.mxu0 %v78
    %598 = vmatprep.subr.mxu0 %v82
    %599 = vmatpush1.msra.mxu0 %v81
    %600 = vmatprep.subr.mxu0 %v85
    %601 = vmatpush1.msra.mxu0 %v84
    %602 = vmatprep.subr.mxu0 %v88
    %603 = vmatpush1.msra.mxu0 %v87
    %604 = vmatprep.subr.mxu0 %v91
    %605 = vmatpush1.msra.mxu0 %v90
    %606 = vmatprep.subr.mxu0 %v94
    %607 = vmatpush1.msra.mxu0 %v93
    %608 = vmatprep.subr.mxu0 %v97
    %609 = vmatpush1.msra.mxu0 %v96
    %610 = vmatprep.subr.mxu0 %v100
    %611 = vmatpush1.msra.mxu0 %v99
    %612 = vmatprep.subr.mxu0 %v103
    %613 = vmatpush1.msra.mxu0 %v102
    %614 = vmatprep.subr.mxu0 %v106
    %615 = vmatpush1.msra.mxu0 %v105
    %616 = vmatprep.subr.mxu0 %v109
    %617 = vmatpush1.msra.mxu0 %v108
    %618 = vmatprep.subr.mxu0 %v112
    %619 = vmatpush1.msra.mxu0 %v111
    %620 = vmatprep.subr.mxu0 %v115
    %621 = vmatpush1.msra.mxu0 %v114
    %622 = vmatprep.subr.mxu0 %v118
    %623 = vmatpush1.msra.mxu0 %v117
    %624 = vmatprep.subr.mxu0 0.0
    %625 = vmatpush1.msra.mxu0 0.0
    %626 = vmatprep.subr.mxu0 0.0
    %627 = vmatpush1.msra.mxu0 0.0
    %628 = vmatprep.subr.mxu0 0.0
    %629 = vmatpush1.msra.mxu0 0.0
    %630 = vmatprep.subr.mxu0 0.0
    %631 = vmatpush1.msra.mxu0 0.0
    %632 = vmatprep.subr.mxu0 0.0
    %633 = vmatpush1.msra.mxu0 0.0
    %634 = vmatprep.subr.mxu0 0.0
    %635 = vmatpush1.msra.mxu0 0.0
    %636 = vmatprep.subr.mxu0 0.0
    %637 = vmatpush1.msra.mxu0 0.0
    %638 = vmatprep.subr.mxu0 0.0
    %639 = vmatpush1.msra.mxu0 0.0
    %640 = vmatprep.subr.mxu0 0.0
    %641 = vmatpush1.msra.mxu0 0.0
    %642 = vmatprep.subr.mxu0 0.0
    %643 = vmatpush1.msra.mxu0 0.0
    %644 = vmatprep.subr.mxu0 0.0
    %645 = vmatpush1.msra.mxu0 0.0
    %646 = vmatprep.subr.mxu0 0.0
    %647 = vmatpush1.msra.mxu0 0.0
    %648 = vmatprep.subr.mxu0 0.0
    %649 = vmatpush1.msra.mxu0 0.0
    %650 = vmatprep.subr.mxu0 0.0
    %651 = vmatpush1.msra.mxu0 0.0
    %652 = vmatprep.subr.mxu0 0.0
    %653 = vmatpush1.msra.mxu0 0.0
    %654 = vmatprep.subr.mxu0 0.0
    %655 = vmatpush1.msra.mxu0 0.0
    %656 = vmatprep.mubr.f32.mxu0 0.0
    %657 = vmatmul.mubr.f32.gmra.mrb[0].mxu0 %v591
    %v658 = vpop.f32.mrb[0].mxu0
    %v659 = vadd.f32 %v264, %v658
    %v660 = vpop.f32.mrb[0].mxu0
    %v661 = vadd.f32 %v268, %v660
    %662 = vdwg.mxu0
    %663 = vmatprep.subr.mxu0 0.0
    %664 = vmatpush1.msra.mxu0 %v74
    %665 = vmatprep.subr.mxu0 0.0
    %666 = vmatpush1.msra.mxu0 %v77
    %667 = vmatprep.subr.mxu0 0.0
    %668 = vmatpush1.msra.mxu0 %v80
    %669 = vmatprep.subr.mxu0 0.0
    %670 = vmatpush1.msra.mxu0 %v83
    %671 = vmatprep.subr.mxu0 0.0
    %672 = vmatpush1.msra.mxu0 %v86
    %673 = vmatprep.subr.mxu0 0.0
    %674 = vmatpush1.msra.mxu0 %v89
    %675 = vmatprep.subr.mxu0 0.0
    %676 = vmatpush1.msra.mxu0 %v92
    %677 = vmatprep.subr.mxu0 0.0
    %678 = vmatpush1.msra.mxu0 %v95
    %679 = vmatprep.subr.mxu0 0.0
    %680 = vmatpush1.msra.mxu0 %v98
    %681 = vmatprep.subr.mxu0 0.0
    %682 = vmatpush1.msra.mxu0 %v101
    %683 = vmatprep.subr.mxu0 0.0
    %684 = vmatpush1.msra.mxu0 %v104
    %685 = vmatprep.subr.mxu0 0.0
    %686 = vmatpush1.msra.mxu0 %v107
    %687 = vmatprep.subr.mxu0 0.0
    %688 = vmatpush1.msra.mxu0 %v110
    %689 = vmatprep.subr.mxu0 0.0
    %690 = vmatpush1.msra.mxu0 %v113
    %691 = vmatprep.subr.mxu0 0.0
    %692 = vmatpush1.msra.mxu0 %v116
    %693 = vmatprep.subr.mxu0 0.0
    %694 = vmatpush1.msra.mxu0 %v119
    %695 = vmatprep.subr.mxu0 0.0
    %696 = vmatpush1.msra.mxu0 0.0
    %697 = vmatprep.subr.mxu0 0.0
    %698 = vmatpush1.msra.mxu0 0.0
    %699 = vmatprep.subr.mxu0 0.0
    %700 = vmatpush1.msra.mxu0 0.0
    %701 = vmatprep.subr.mxu0 0.0
    %702 = vmatpush1.msra.mxu0 0.0
    %703 = vmatprep.subr.mxu0 0.0
    %704 = vmatpush1.msra.mxu0 0.0
    %705 = vmatprep.subr.mxu0 0.0
    %706 = vmatpush1.msra.mxu0 0.0
    %707 = vmatprep.subr.mxu0 0.0
    %708 = vmatpush1.msra.mxu0 0.0
    %709 = vmatprep.subr.mxu0 0.0
    %710 = vmatpush1.msra.mxu0 0.0
    %711 = vmatprep.subr.mxu0 0.0
    %712 = vmatpush1.msra.mxu0 0.0
    %713 = vmatprep.subr.mxu0 0.0
    %714 = vmatpush1.msra.mxu0 0.0
    %715 = vmatprep.subr.mxu0 0.0
    %716 = vmatpush1.msra.mxu0 0.0
    %717 = vmatprep.subr.mxu0 0.0
    %718 = vmatpush1.msra.mxu0 0.0
    %719 = vmatprep.subr.mxu0 0.0
    %720 = vmatpush1.msra.mxu0 0.0
    %721 = vmatprep.subr.mxu0 0.0
    %722 = vmatpush1.msra.mxu0 0.0
    %723 = vmatprep.subr.mxu0 0.0
    %724 = vmatpush1.msra.mxu0 0.0
    %725 = vmatprep.subr.mxu0 0.0
    %726 = vmatpush1.msra.mxu0 0.0
    %727 = vmatprep.mubr.f32.mxu0 0.0
    %728 = vmatmul.mubr.f32.gmra.mrb[0].mxu0 %v591
    %v729 = vpop.f32.mrb[0].mxu0
    %v730 = vadd.f32 %v272, %v729
    %v731 = vpop.f32.mrb[0].mxu0
    %732 = vdwg.mxu0
    %v733 = vadd.f32 %v242, %v659
    %v734 = vmul.f32 %v733, 0.5
    %v735 = vtanh.pop %v734
    %v736 = vadd.f32 %v735, 1.0
    %v737 = vmul.f32 %v736, 0.5
    %v738 = vadd.f32 %v243, %v661
    %v739 = vmul.f32 %v738, 0.5
    %v740 = vtanh.pop %v739
    %v741 = vadd.f32 %v740, 1.0
    %v742 = vmul.f32 %v741, 0.5
    %v743 = vmul.f32 %v737, %v730
    %v744 = vadd.f32 %v244, %v743
    %v745 = vtanh.pop %v744
    %v746 = vsub.f32 1.0, %v742
    %v747 = vmul.f32 %v746, %v745
    %v748 = vmul.f32 %v742, %v591
    %v749 = vadd.f32 %v747, %v748
    %750 = vmatprep.subr.mxu0 %v73
    %751 = vmatpush1.msra.mxu0 %v72
    %752 = vmatprep.subr.mxu0 %v76
    %753 = vmatpush1.msra.mxu0 %v75
    %754 = vmatprep.subr.mxu0 %v79
    %755 = vmatpush1.msra.mxu0 %v78
    %756 = vmatprep.subr.mxu0 %v82
    %757 = vmatpush1.msra.mxu0 %v81
    %758 = vmatprep.subr.mxu0 %v85
    %759 = vmatpush1.msra.mxu0 %v84
    %760 = vmatprep.subr.mxu0 %v88
    %761 = vmatpush1.msra.mxu0 %v87
    %762 = vmatprep.subr.mxu0 %v91
    %763 = vmatpush1.msra.mxu0 %v90
    %764 = vmatprep.subr.mxu0 %v94
    %765 = vmatpush1.msra.mxu0 %v93
    %766 = vmatprep.subr.mxu0 %v97
    %767 = vmatpush1.msra.mxu0 %v96
    %768 = vmatprep.subr.mxu0 %v100
    %769 = vmatpush1.msra.mxu0 %v99
    %770 = vmatprep.subr.mxu0 %v103
    %771 = vmatpush1.msra.mxu0 %v102
    %772 = vmatprep.subr.mxu0 %v106
    %773 = vmatpush1.msra.mxu0 %v105
    %774 = vmatprep.subr.mxu0 %v109
    %775 = vmatpush1.msra.mxu0 %v108
    %776 = vmatprep.subr.mxu0 %v112
    %777 = vmatpush1.msra.mxu0 %v111
    %778 = vmatprep.subr.mxu0 %v115
    %779 = vmatpush1.msra.mxu0 %v114
    %780 = vmatprep.subr.mxu0 %v118
    %781 = vmatpush1.msra.mxu0 %v117
    %782 = vmatprep.subr.mxu0 0.0
    %783 = vmatpush1.msra.mxu0 0.0
    %784 = vmatprep.subr.mxu0 0.0
    %785 = vmatpush1.msra.mxu0 0.0
    %786 = vmatprep.subr.mxu0 0.0
    %787 = vmatpush1.msra.mxu0 0.0
    %788 = vmatprep.subr.mxu0 0.0
    %789 = vmatpush1.msra.mxu0 0.0
    %790 = vmatprep.subr.mxu0 0.0
    %791 = vmatpush1.msra.mxu0 0.0
    %792 = vmatprep.subr.mxu0 0.0
    %793 = vmatpush1.msra.mxu0 0.0
    %794 = vmatprep.subr.mxu0 0.0
    %795 = vmatpush1.msra.mxu0 0.0
    %796 = vmatprep.subr.mxu0 0.0
    %797 = vmatpush1.msra.mxu0 0.0
    %798 = vmatprep.subr.mxu0 0.0
    %799 = vmatpush1.msra.mxu0 0.0
    %800 = vmatprep.subr.mxu0 0.0
    %801 = vmatpush1.msra.mxu0 0.0
    %802 = vmatprep.subr.mxu0 0.0
    %803 = vmatpush1.msra.mxu0 0.0
    %804 = vmatprep.subr.mxu0 0.0
    %805 = vmatpush1.msra.mxu0 0.0
    %806 = vmatprep.subr.mxu0 0.0
    %807 = vmatpush1.msra.mxu0 0.0
    %808 = vmatprep.subr.mxu0 0.0
    %809 = vmatpush1.msra.mxu0 0.0
    %810 = vmatprep.subr.mxu0 0.0
    %811 = vmatpush1.msra.mxu0 0.0
    %812 = vmatprep.subr.mxu0 0.0
    %813 = vmatpush1.msra.mxu0 0.0
    %814 = vmatprep.mubr.f32.mxu0 0.0
    %815 = vmatmul.mubr.f32.gmra.mrb[0].mxu0 %v749
    %v816 = vpop.f32.mrb[0].mxu0
    %v817 = vadd.f32 %v264, %v816
    %v818 = vpop.f32.mrb[0].mxu0
    %v819 = vadd.f32 %v268, %v818
    %820 = vdwg.mxu0
    %821 = vmatprep.subr.mxu0 0.0
    %822 = vmatpush1.msra.mxu0 %v74
    %823 = vmatprep.subr.mxu0 0.0
    %824 = vmatpush1.msra.mxu0 %v77
    %825 = vmatprep.subr.mxu0 0.0
    %826 = vmatpush1.msra.mxu0 %v80
    %827 = vmatprep.subr.mxu0 0.0
    %828 = vmatpush1.msra.mxu0 %v83
    %829 = vmatprep.subr.mxu0 0.0
    %830 = vmatpush1.msra.mxu0 %v86
    %831 = vmatprep.subr.mxu0 0.0
    %832 = vmatpush1.msra.mxu0 %v89
    %833 = vmatprep.subr.mxu0 0.0
    %834 = vmatpush1.msra.mxu0 %v92
    %835 = vmatprep.subr.mxu0 0.0
    %836 = vmatpush1.msra.mxu0 %v95
    %837 = vmatprep.subr.mxu0 0.0
    %838 = vmatpush1.msra.mxu0 %v98
    %839 = vmatprep.subr.mxu0 0.0
    %840 = vmatpush1.msra.mxu0 %v101
    %841 = vmatprep.subr.mxu0 0.0
    %842 = vmatpush1.msra.mxu0 %v104
    %843 = vmatprep.subr.mxu0 0.0
    %844 = vmatpush1.msra.mxu0 %v107
    %845 = vmatprep.subr.mxu0 0.0
    %846 = vmatpush1.msra.mxu0 %v110
    %847 = vmatprep.subr.mxu0 0.0
    %848 = vmatpush1.msra.mxu0 %v113
    %849 = vmatprep.subr.mxu0 0.0
    %850 = vmatpush1.msra.mxu0 %v116
    %851 = vmatprep.subr.mxu0 0.0
    %852 = vmatpush1.msra.mxu0 %v119
    %853 = vmatprep.subr.mxu0 0.0
    %854 = vmatpush1.msra.mxu0 0.0
    %855 = vmatprep.subr.mxu0 0.0
    %856 = vmatpush1.msra.mxu0 0.0
    %857 = vmatprep.subr.mxu0 0.0
    %858 = vmatpush1.msra.mxu0 0.0
    %859 = vmatprep.subr.mxu0 0.0
    %860 = vmatpush1.msra.mxu0 0.0
    %861 = vmatprep.subr.mxu0 0.0
    %862 = vmatpush1.msra.mxu0 0.0
    %863 = vmatprep.subr.mxu0 0.0
    %864 = vmatpush1.msra.mxu0 0.0
    %865 = vmatprep.subr.mxu0 0.0
    %866 = vmatpush1.msra.mxu0 0.0
    %867 = vmatprep.subr.mxu0 0.0
    %868 = vmatpush1.msra.mxu0 0.0
    %869 = vmatprep.subr.mxu0 0.0
    %870 = vmatpush1.msra.mxu0 0.0
    %871 = vmatprep.subr.mxu0 0.0
    %872 = vmatpush1.msra.mxu0 0.0
    %873 = vmatprep.subr.mxu0 0.0
    %874 = vmatpush1.msra.mxu0 0.0
    %875 = vmatprep.subr.mxu0 0.0
    %876 = vmatpush1.msra.mxu0 0.0
    %877 = vmatprep.subr.mxu0 0.0
    %878 = vmatpush1.msra.mxu0 0.0
    %879 = vmatprep.subr.mxu0 0.0
    %880 = vmatpush1.msra.mxu0 0.0
    %881 = vmatprep.subr.mxu0 0.0
    %882 = vmatpush1.msra.mxu0 0.0
    %883 = vmatprep.subr.mxu0 0.0
    %884 = vmatpush1.msra.mxu0 0.0
    %885 = vmatprep.mubr.f32.mxu0 0.0
    %886 = vmatmul.mubr.f32.gmra.mrb[0].mxu0 %v749
    %v887 = vpop.f32.mrb[0].mxu0
    %v888 = vadd.f32 %v272, %v887
    %v889 = vpop.f32.mrb[0].mxu0
    %890 = vdwg.mxu0
    %v891 = vadd.f32 %v245, %v817
    %v892 = vmul.f32 %v891, 0.5
    %v893 = vtanh.pop %v892
    %v894 = vadd.f32 %v893, 1.0
    %v895 = vmul.f32 %v894, 0.5
    %v896 = vadd.f32 %v246, %v819
    %v897 = vmul.f32 %v896, 0.5
    %v898 = vtanh.pop %v897
    %v899 = vadd.f32 %v898, 1.0
    %v900 = vmul.f32 %v899, 0.5
    %v901 = vmul.f32 %v895, %v888
    %v902 = vadd.f32 %v247, %v901
    %v903 = vtanh.pop %v902
    %v904 = vsub.f32 1.0, %v900
    %v905 = vmul.f32 %v904, %v903
    %v906 = vmul.f32 %v900, %v749
    %v907 = vadd.f32 %v905, %v906
    %908 = vmatprep.subr.mxu0 %v73
    %909 = vmatpush1.msra.mxu0 %v72
    %910 = vmatprep.subr.mxu0 %v76
    %911 = vmatpush1.msra.mxu0 %v75
    %912 = vmatprep.subr.mxu0 %v79
    %913 = vmatpush1.msra.mxu0 %v78
    %914 = vmatprep.subr.mxu0 %v82
    %915 = vmatpush1.msra.mxu0 %v81
    %916 = vmatprep.subr.mxu0 %v85
    %917 = vmatpush1.msra.mxu0 %v84
    %918 = vmatprep.subr.mxu0 %v88
    %919 = vmatpush1.msra.mxu0 %v87
    %920 = vmatprep.subr.mxu0 %v91
    %921 = vmatpush1.msra.mxu0 %v90
    %922 = vmatprep.subr.mxu0 %v94
    %923 = vmatpush1.msra.mxu0 %v93
    %924 = vmatprep.subr.mxu0 %v97
    %925 = vmatpush1.msra.mxu0 %v96
    %926 = vmatprep.subr.mxu0 %v100
    %927 = vmatpush1.msra.mxu0 %v99
    %928 = vmatprep.subr.mxu0 %v103
    %929 = vmatpush1.msra.mxu0 %v102
    %930 = vmatprep.subr.mxu0 %v106
    %931 = vmatpush1.msra.mxu0 %v105
    %932 = vmatprep.subr.mxu0 %v109
    %933 = vmatpush1.msra.mxu0 %v108
    %934 = vmatprep.subr.mxu0 %v112
    %935 = vmatpush1.msra.mxu0 %v111
    %936 = vmatprep.subr.mxu0 %v115
    %937 = vmatpush1.msra.mxu0 %v114
    %938 = vmatprep.subr.mxu0 %v118
    %939 = vmatpush1.msra.mxu0 %v117
    %940 = vmatprep.subr.mxu0 0.0
    %941 = vmatpush1.msra.mxu0 0.0
    %942 = vmatprep.subr.mxu0 0.0
    %943 = vmatpush1.msra.mxu0 0.0
    %944 = vmatprep.subr.mxu0 0.0
    %945 = vmatpush1.msra.mxu0 0.0
    %946 = vmatprep.subr.mxu0 0.0
    %947 = vmatpush1.msra.mxu0 0.0
    %948 = vmatprep.subr.mxu0 0.0
    %949 = vmatpush1.msra.mxu0 0.0
    %950 = vmatprep.subr.mxu0 0.0
    %951 = vmatpush1.msra.mxu0 0.0
    %952 = vmatprep.subr.mxu0 0.0
    %953 = vmatpush1.msra.mxu0 0.0
    %954 = vmatprep.subr.mxu0 0.0
    %955 = vmatpush1.msra.mxu0 0.0
    %956 = vmatprep.subr.mxu0 0.0
    %957 = vmatpush1.msra.mxu0 0.0
    %958 = vmatprep.subr.mxu0 0.0
    %959 = vmatpush1.msra.mxu0 0.0
    %960 = vmatprep.subr.mxu0 0.0
    %961 = vmatpush1.msra.mxu0 0.0
    %962 = vmatprep.subr.mxu0 0.0
    %963 = vmatpush1.msra.mxu0 0.0
    %964 = vmatprep.subr.mxu0 0.0
    %965 = vmatpush1.msra.mxu0 0.0
    %966 = vmatprep.subr.mxu0 0.0
    %967 = vmatpush1.msra.mxu0 0.0
    %968 = vmatprep.subr.mxu0 0.0
    %969 = vmatpush1.msra.mxu0 0.0
    %970 = vmatprep.subr.mxu0 0.0
    %971 = vmatpush1.msra.mxu0 0.0
    %972 = vmatprep.mubr.f32.mxu0 0.0
    %973 = vmatmul.mubr.f32.gmra.mrb[0].mxu0 %v907
    %v974 = vpop.f32.mrb[0].mxu0
    %v975 = vadd.f32 %v264, %v974
    %v976 = vpop.f32.mrb[0].mxu0
    %v977 = vadd.f32 %v268, %v976
    %978 = vdwg.mxu0
    %979 = vmatprep.subr.mxu0 0.0
    %980 = vmatpush1.msra.mxu0 %v74
    %981 = vmatprep.subr.mxu0 0.0
    %982 = vmatpush1.msra.mxu0 %v77
    %983 = vmatprep.subr.mxu0 0.0
    %984 = vmatpush1.msra.mxu0 %v80
    %985 = vmatprep.subr.mxu0 0.0
    %986 = vmatpush1.msra.mxu0 %v83
    %987 = vmatprep.subr.mxu0 0.0
    %988 = vmatpush1.msra.mxu0 %v86
    %989 = vmatprep.subr.mxu0 0.0
    %990 = vmatpush1.msra.mxu0 %v89
    %991 = vmatprep.subr.mxu0 0.0
    %992 = vmatpush1.msra.mxu0 %v92
    %993 = vmatprep.subr.mxu0 0.0
    %994 = vmatpush1.msra.mxu0 %v95
    %995 = vmatprep.subr.mxu0 0.0
    %996 = vmatpush1.msra.mxu0 %v98
    %997 = vmatprep.subr.mxu0 0.0
    %998 = vmatpush1.msra.mxu0 %v101
    %999 = vmatprep.subr.mxu0 0.0
    %1000 = vmatpush1.msra.mxu0 %v104
    %1001 = vmatprep.subr.mxu0 0.0
    %1002 = vmatpush1.msra.mxu0 %v107
    %1003 = vmatprep.subr.mxu0 0.0
    %1004 = vmatpush1.msra.mxu0 %v110
    %1005 = vmatprep.subr.mxu0 0.0
    %1006 = vmatpush1.msra.mxu0 %v113
    %1007 = vmatprep.subr.mxu0 0.0
    %1008 = vmatpush1.msra.mxu0 %v116
    %1009 = vmatprep.subr.mxu0 0.0
    %1010 = vmatpush1.msra.mxu0 %v119
    %1011 = vmatprep.subr.mxu0 0.0
    %1012 = vmatpush1.msra.mxu0 0.0
    %1013 = vmatprep.subr.mxu0 0.0
    %1014 = vmatpush1.msra.mxu0 0.0
    %1015 = vmatprep.subr.mxu0 0.0
    %1016 = vmatpush1.msra.mxu0 0.0
    %1017 = vmatprep.subr.mxu0 0.0
    %1018 = vmatpush1.msra.mxu0 0.0
    %1019 = vmatprep.subr.mxu0 0.0
    %1020 = vmatpush1.msra.mxu0 0.0
    %1021 = vmatprep.subr.mxu0 0.0
    %1022 = vmatpush1.msra.mxu0 0.0
    %1023 = vmatprep.subr.mxu0 0.0
    %1024 = vmatpush1.msra.mxu0 0.0
    %1025 = vmatprep.subr.mxu0 0.0
    %1026 = vmatpush1.msra.mxu0 0.0
    %1027 = vmatprep.subr.mxu0 0.0
    %1028 = vmatpush1.msra.mxu0 0.0
    %1029 = vmatprep.subr.mxu0 0.0
    %1030 = vmatpush1.msra.mxu0 0.0
    %1031 = vmatprep.subr.mxu0 0.0
    %1032 = vmatpush1.msra.mxu0 0.0
    %1033 = vmatprep.subr.mxu0 0.0
    %1034 = vmatpush1.msra.mxu0 0.0
    %1035 = vmatprep.subr.mxu0 0.0
    %1036 = vmatpush1.msra.mxu0 0.0
    %1037 = vmatprep.subr.mxu0 0.0
    %1038 = vmatpush1.msra.mxu0 0.0
    %1039 = vmatprep.subr.mxu0 0.0
    %1040 = vmatpush1.msra.mxu0 0.0
    %1041 = vmatprep.subr.mxu0 0.0
    %1042 = vmatpush1.msra.mxu0 0.0
    %1043 = vmatprep.mubr.f32.mxu0 0.0
    %1044 = vmatmul.mubr.f32.gmra.mrb[0].mxu0 %v907
    %v1045 = vpop.f32.mrb[0].mxu0
    %v1046 = vadd.f32 %v272, %v1045
    %v1047 = vpop.f32.mrb[0].mxu0
    %1048 = vdwg.mxu0
    %v1049 = vadd.f32 %v248, %v975
    %v1050 = vmul.f32 %v1049, 0.5
    %v1051 = vtanh.pop %v1050
    %v1052 = vadd.f32 %v1051, 1.0
    %v1053 = vmul.f32 %v1052, 0.5
    %v1054 = vadd.f32 %v249, %v977
    %v1055 = vmul.f32 %v1054, 0.5
    %v1056 = vtanh.pop %v1055
    %v1057 = vadd.f32 %v1056, 1.0
    %v1058 = vmul.f32 %v1057, 0.5
    %v1059 = vmul.f32 %v1053, %v1046
    %v1060 = vadd.f32 %v250, %v1059
    %v1061 = vtanh.pop %v1060
    %v1062 = vsub.f32 1.0, %v1058
    %v1063 = vmul.f32 %v1062, %v1061
    %v1064 = vmul.f32 %v1058, %v907
    %v1065 = vadd.f32 %v1063, %v1064
    %1066 = vmatprep.subr.mxu0 %v73
    %1067 = vmatpush1.msra.mxu0 %v72
    %1068 = vmatprep.subr.mxu0 %v76
    %1069 = vmatpush1.msra.mxu0 %v75
    %1070 = vmatprep.subr.mxu0 %v79
    %1071 = vmatpush1.msra.mxu0 %v78
    %1072 = vmatprep.subr.mxu0 %v82
    %1073 = vmatpush1.msra.mxu0 %v81
    %1074 = vmatprep.subr.mxu0 %v85
    %1075 = vmatpush1.msra.mxu0 %v84
    %1076 = vmatprep.subr.mxu0 %v88
    %1077 = vmatpush1.msra.mxu0 %v87
    %1078 = vmatprep.subr.mxu0 %v91
    %1079 = vmatpush1.msra.mxu0 %v90
    %1080 = vmatprep.subr.mxu0 %v94
    %1081 = vmatpush1.msra.mxu0 %v93
    %1082 = vmatprep.subr.mxu0 %v97
    %1083 = vmatpush1.msra.mxu0 %v96
    %1084 = vmatprep.subr.mxu0 %v100
    %1085 = vmatpush1.msra.mxu0 %v99
    %1086 = vmatprep.subr.mxu0 %v103
    %1087 = vmatpush1.msra.mxu0 %v102
    %1088 = vmatprep.subr.mxu0 %v106
    %1089 = vmatpush1.msra.mxu0 %v105
    %1090 = vmatprep.subr.mxu0 %v109
    %1091 = vmatpush1.msra.mxu0 %v108
    %1092 = vmatprep.subr.mxu0 %v112
    %1093 = vmatpush1.msra.mxu0 %v111
    %1094 = vmatprep.subr.mxu0 %v115
    %1095 = vmatpush1.msra.mxu0 %v114
    %1096 = vmatprep.subr.mxu0 %v118
    %1097 = vmatpush1.msra.mxu0 %v117
    %1098 = vmatprep.subr.mxu0 0.0
    %1099 = vmatpush1.msra.mxu0 0.0
    %1100 = vmatprep.subr.mxu0 0.0
    %1101 = vmatpush1.msra.mxu0 0.0
    %1102 = vmatprep.subr.mxu0 0.0
    %1103 = vmatpush1.msra.mxu0 0.0
    %1104 = vmatprep.subr.mxu0 0.0
    %1105 = vmatpush1.msra.mxu0 0.0
    %1106 = vmatprep.subr.mxu0 0.0
    %1107 = vmatpush1.msra.mxu0 0.0
    %1108 = vmatprep.subr.mxu0 0.0
    %1109 = vmatpush1.msra.mxu0 0.0
    %1110 = vmatprep.subr.mxu0 0.0
    %1111 = vmatpush1.msra.mxu0 0.0
    %1112 = vmatprep.subr.mxu0 0.0
    %1113 = vmatpush1.msra.mxu0 0.0
    %1114 = vmatprep.subr.mxu0 0.0
    %1115 = vmatpush1.msra.mxu0 0.0
    %1116 = vmatprep.subr.mxu0 0.0
    %1117 = vmatpush1.msra.mxu0 0.0
    %1118 = vmatprep.subr.mxu0 0.0
    %1119 = vmatpush1.msra.mxu0 0.0
    %1120 = vmatprep.subr.mxu0 0.0
    %1121 = vmatpush1.msra.mxu0 0.0
    %1122 = vmatprep.subr.mxu0 0.0
    %1123 = vmatpush1.msra.mxu0 0.0
    %1124 = vmatprep.subr.mxu0 0.0
    %1125 = vmatpush1.msra.mxu0 0.0
    %1126 = vmatprep.subr.mxu0 0.0
    %1127 = vmatpush1.msra.mxu0 0.0
    %1128 = vmatprep.subr.mxu0 0.0
    %1129 = vmatpush1.msra.mxu0 0.0
    %1130 = vmatprep.mubr.f32.mxu0 0.0
    %1131 = vmatmul.mubr.f32.gmra.mrb[0].mxu0 %v1065
    %v1132 = vpop.f32.mrb[0].mxu0
    %v1133 = vadd.f32 %v264, %v1132
    %v1134 = vpop.f32.mrb[0].mxu0
    %v1135 = vadd.f32 %v268, %v1134
    %1136 = vdwg.mxu0
    %1137 = vmatprep.subr.mxu0 0.0
    %1138 = vmatpush1.msra.mxu0 %v74
    %1139 = vmatprep.subr.mxu0 0.0
    %1140 = vmatpush1.msra.mxu0 %v77
    %1141 = vmatprep.subr.mxu0 0.0
    %1142 = vmatpush1.msra.mxu0 %v80
    %1143 = vmatprep.subr.mxu0 0.0
    %1144 = vmatpush1.msra.mxu0 %v83
    %1145 = vmatprep.subr.mxu0 0.0
    %1146 = vmatpush1.msra.mxu0 %v86
    %1147 = vmatprep.subr.mxu0 0.0
    %1148 = vmatpush1.msra.mxu0 %v89
    %1149 = vmatprep.subr.mxu0 0.0
    %1150 = vmatpush1.msra.mxu0 %v92
    %1151 = vmatprep.subr.mxu0 0.0
    %1152 = vmatpush1.msra.mxu0 %v95
    %1153 = vmatprep.subr.mxu0 0.0
    %1154 = vmatpush1.msra.mxu0 %v98
    %1155 = vmatprep.subr.mxu0 0.0
    %1156 = vmatpush1.msra.mxu0 %v101
    %1157 = vmatprep.subr.mxu0 0.0
    %1158 = vmatpush1.msra.mxu0 %v104
    %1159 = vmatprep.subr.mxu0 0.0
    %1160 = vmatpush1.msra.mxu0 %v107
    %1161 = vmatprep.subr.mxu0 0.0
    %1162 = vmatpush1.msra.mxu0 %v110
    %1163 = vmatprep.subr.mxu0 0.0
    %1164 = vmatpush1.msra.mxu0 %v113
    %1165 = vmatprep.subr.mxu0 0.0
    %1166 = vmatpush1.msra.mxu0 %v116
    %1167 = vmatprep.subr.mxu0 0.0
    %1168 = vmatpush1.msra.mxu0 %v119
    %1169 = vmatprep.subr.mxu0 0.0
    %1170 = vmatpush1.msra.mxu0 0.0
    %1171 = vmatprep.subr.mxu0 0.0
    %1172 = vmatpush1.msra.mxu0 0.0
    %1173 = vmatprep.subr.mxu0 0.0
    %1174 = vmatpush1.msra.mxu0 0.0
    %1175 = vmatprep.subr.mxu0 0.0
    %1176 = vmatpush1.msra.mxu0 0.0
    %1177 = vmatprep.subr.mxu0 0.0
    %1178 = vmatpush1.msra.mxu0 0.0
    %1179 = vmatprep.subr.mxu0 0.0
    %1180 = vmatpush1.msra.mxu0 0.0
    %1181 = vmatprep.subr.mxu0 0.0
    %1182 = vmatpush1.msra.mxu0 0.0
    %1183 = vmatprep.subr.mxu0 0.0
    %1184 = vmatpush1.msra.mxu0 0.0
    %1185 = vmatprep.subr.mxu0 0.0
    %1186 = vmatpush1.msra.mxu0 0.0
    %1187 = vmatprep.subr.mxu0 0.0
    %1188 = vmatpush1.msra.mxu0 0.0
    %1189 = vmatprep.subr.mxu0 0.0
    %1190 = vmatpush1.msra.mxu0 0.0
    %1191 = vmatprep.subr.mxu0 0.0
    %1192 = vmatpush1.msra.mxu0 0.0
    %1193 = vmatprep.subr.mxu0 0.0
    %1194 = vmatpush1.msra.mxu0 0.0
    %1195 = vmatprep.subr.mxu0 0.0
    %1196 = vmatpush1.msra.mxu0 0.0
    %1197 = vmatprep.subr.mxu0 0.0
    %1198 = vmatpush1.msra.mxu0 0.0
    %1199 = vmatprep.subr.mxu0 0.0
    %1200 = vmatpush1.msra.mxu0 0.0
    %1201 = vmatprep.mubr.f32.mxu0 0.0
    %1202 = vmatmul.mubr.f32.gmra.mrb[0].mxu0 %v1065
    %v1203 = vpop.f32.mrb[0].mxu0
    %v1204 = vadd.f32 %v272, %v1203
    %v1205 = vpop.f32.mrb[0].mxu0
    %1206 = vdwg.mxu0
    %v1207 = vadd.f32 %v251, %v1133
    %v1208 = vmul.f32 %v1207, 0.5
    %v1209 = vtanh.pop %v1208
    %v1210 = vadd.f32 %v1209, 1.0
    %v1211 = vmul.f32 %v1210, 0.5
    %v1212 = vadd.f32 %v252, %v1135
    %v1213 = vmul.f32 %v1212, 0.5
    %v1214 = vtanh.pop %v1213
    %v1215 = vadd.f32 %v1214, 1.0
    %v1216 = vmul.f32 %v1215, 0.5
    %v1217 = vmul.f32 %v1211, %v1204
    %v1218 = vadd.f32 %v253, %v1217
    %v1219 = vtanh.pop %v1218
    %v1220 = vsub.f32 1.0, %v1216
    %v1221 = vmul.f32 %v1220, %v1219
    %v1222 = vmul.f32 %v1216, %v1065
    %v1223 = vadd.f32 %v1221, %v1222
    %1224 = vmatprep.subr.mxu0 %v73
    %1225 = vmatpush1.msra.mxu0 %v72
    %1226 = vmatprep.subr.mxu0 %v76
    %1227 = vmatpush1.msra.mxu0 %v75
    %1228 = vmatprep.subr.mxu0 %v79
    %1229 = vmatpush1.msra.mxu0 %v78
    %1230 = vmatprep.subr.mxu0 %v82
    %1231 = vmatpush1.msra.mxu0 %v81
    %1232 = vmatprep.subr.mxu0 %v85
    %1233 = vmatpush1.msra.mxu0 %v84
    %1234 = vmatprep.subr.mxu0 %v88
    %1235 = vmatpush1.msra.mxu0 %v87
    %1236 = vmatprep.subr.mxu0 %v91
    %1237 = vmatpush1.msra.mxu0 %v90
    %1238 = vmatprep.subr.mxu0 %v94
    %1239 = vmatpush1.msra.mxu0 %v93
    %1240 = vmatprep.subr.mxu0 %v97
    %1241 = vmatpush1.msra.mxu0 %v96
    %1242 = vmatprep.subr.mxu0 %v100
    %1243 = vmatpush1.msra.mxu0 %v99
    %1244 = vmatprep.subr.mxu0 %v103
    %1245 = vmatpush1.msra.mxu0 %v102
    %1246 = vmatprep.subr.mxu0 %v106
    %1247 = vmatpush1.msra.mxu0 %v105
    %1248 = vmatprep.subr.mxu0 %v109
    %1249 = vmatpush1.msra.mxu0 %v108
    %1250 = vmatprep.subr.mxu0 %v112
    %1251 = vmatpush1.msra.mxu0 %v111
    %1252 = vmatprep.subr.mxu0 %v115
    %1253 = vmatpush1.msra.mxu0 %v114
    %1254 = vmatprep.subr.mxu0 %v118
    %1255 = vmatpush1.msra.mxu0 %v117
    %1256 = vmatprep.subr.mxu0 0.0
    %1257 = vmatpush1.msra.mxu0 0.0
    %1258 = vmatprep.subr.mxu0 0.0
    %1259 = vmatpush1.msra.mxu0 0.0
    %1260 = vmatprep.subr.mxu0 0.0
    %1261 = vmatpush1.msra.mxu0 0.0
    %1262 = vmatprep.subr.mxu0 0.0
    %1263 = vmatpush1.msra.mxu0 0.0
    %1264 = vmatprep.subr.mxu0 0.0
    %1265 = vmatpush1.msra.mxu0 0.0
    %1266 = vmatprep.subr.mxu0 0.0
    %1267 = vmatpush1.msra.mxu0 0.0
    %1268 = vmatprep.subr.mxu0 0.0
    %1269 = vmatpush1.msra.mxu0 0.0
    %1270 = vmatprep.subr.mxu0 0.0
    %1271 = vmatpush1.msra.mxu0 0.0
    %1272 = vmatprep.subr.mxu0 0.0
    %1273 = vmatpush1.msra.mxu0 0.0
    %1274 = vmatprep.subr.mxu0 0.0
    %1275 = vmatpush1.msra.mxu0 0.0
    %1276 = vmatprep.subr.mxu0 0.0
    %1277 = vmatpush1.msra.mxu0 0.0
    %1278 = vmatprep.subr.mxu0 0.0
    %1279 = vmatpush1.msra.mxu0 0.0
    %1280 = vmatprep.subr.mxu0 0.0
    %1281 = vmatpush1.msra.mxu0 0.0
    %1282 = vmatprep.subr.mxu0 0.0
    %1283 = vmatpush1.msra.mxu0 0.0
    %1284 = vmatprep.subr.mxu0 0.0
    %1285 = vmatpush1.msra.mxu0 0.0
    %1286 = vmatprep.subr.mxu0 0.0
    %1287 = vmatpush1.msra.mxu0 0.0
    %1288 = vmatprep.mubr.f32.mxu0 0.0
    %1289 = vmatmul.mubr.f32.gmra.mrb[0].mxu0 %v1223
    %v1290 = vpop.f32.mrb[0].mxu0
    %v1291 = vadd.f32 %v264, %v1290
    %v1292 = vpop.f32.mrb[0].mxu0
    %v1293 = vadd.f32 %v268, %v1292
    %1294 = vdwg.mxu0
    %1295 = vmatprep.subr.mxu0 0.0
    %1296 = vmatpush1.msra.mxu0 %v74
    %1297 = vmatprep.subr.mxu0 0.0
    %1298 = vmatpush1.msra.mxu0 %v77
    %1299 = vmatprep.subr.mxu0 0.0
    %1300 = vmatpush1.msra.mxu0 %v80
    %1301 = vmatprep.subr.mxu0 0.0
    %1302 = vmatpush1.msra.mxu0 %v83
    %1303 = vmatprep.subr.mxu0 0.0
    %1304 = vmatpush1.msra.mxu0 %v86
    %1305 = vmatprep.subr.mxu0 0.0
    %1306 = vmatpush1.msra.mxu0 %v89
    %1307 = vmatprep.subr.mxu0 0.0
    %1308 = vmatpush1.msra.mxu0 %v92
    %1309 = vmatprep.subr.mxu0 0.0
    %1310 = vmatpush1.msra.mxu0 %v95
    %1311 = vmatprep.subr.mxu0 0.0
    %1312 = vmatpush1.msra.mxu0 %v98
    %1313 = vmatprep.subr.mxu0 0.0
    %1314 = vmatpush1.msra.mxu0 %v101
    %1315 = vmatprep.subr.mxu0 0.0
    %1316 = vmatpush1.msra.mxu0 %v104
    %1317 = vmatprep.subr.mxu0 0.0
    %1318 = vmatpush1.msra.mxu0 %v107
    %1319 = vmatprep.subr.mxu0 0.0
    %1320 = vmatpush1.msra.mxu0 %v110
    %1321 = vmatprep.subr.mxu0 0.0
    %1322 = vmatpush1.msra.mxu0 %v113
    %1323 = vmatprep.subr.mxu0 0.0
    %1324 = vmatpush1.msra.mxu0 %v116
    %1325 = vmatprep.subr.mxu0 0.0
    %1326 = vmatpush1.msra.mxu0 %v119
    %1327 = vmatprep.subr.mxu0 0.0
    %1328 = vmatpush1.msra.mxu0 0.0
    %1329 = vmatprep.subr.mxu0 0.0
    %1330 = vmatpush1.msra.mxu0 0.0
    %1331 = vmatprep.subr.mxu0 0.0
    %1332 = vmatpush1.msra.mxu0 0.0
    %1333 = vmatprep.subr.mxu0 0.0
    %1334 = vmatpush1.msra.mxu0 0.0
    %1335 = vmatprep.subr.mxu0 0.0
    %1336 = vmatpush1.msra.mxu0 0.0
    %1337 = vmatprep.subr.mxu0 0.0
    %1338 = vmatpush1.msra.mxu0 0.0
    %1339 = vmatprep.subr.mxu0 0.0
    %1340 = vmatpush1.msra.mxu0 0.0
    %1341 = vmatprep.subr.mxu0 0.0
    %1342 = vmatpush1.msra.mxu0 0.0
    %1343 = vmatprep.subr.mxu0 0.0
    %1344 = vmatpush1.msra.mxu0 0.0
    %1345 = vmatprep.subr.mxu0 0.0
    %1346 = vmatpush1.msra.mxu0 0.0
    %1347 = vmatprep.subr.mxu0 0.0
    %1348 = vmatpush1.msra.mxu0 0.0
    %1349 = vmatprep.subr.mxu0 0.0
    %1350 = vmatpush1.msra.mxu0 0.0
    %1351 = vmatprep.subr.mxu0 0.0
    %1352 = vmatpush1.msra.mxu0 0.0
    %1353 = vmatprep.subr.mxu0 0.0
    %1354 = vmatpush1.msra.mxu0 0.0
    %1355 = vmatprep.subr.mxu0 0.0
    %1356 = vmatpush1.msra.mxu0 0.0
    %1357 = vmatprep.subr.mxu0 0.0
    %1358 = vmatpush1.msra.mxu0 0.0
    %1359 = vmatprep.mubr.f32.mxu0 0.0
    %1360 = vmatmul.mubr.f32.gmra.mrb[0].mxu0 %v1223
    %v1361 = vpop.f32.mrb[0].mxu0
    %v1362 = vadd.f32 %v272, %v1361
    %v1363 = vpop.f32.mrb[0].mxu0
    %1364 = vdwg.mxu0
    %v1365 = vadd.f32 %v254, %v1291
    %v1366 = vmul.f32 %v1365, 0.5
    %v1367 = vtanh.pop %v1366
    %v1368 = vadd.f32 %v1367, 1.0
    %v1369 = vmul.f32 %v1368, 0.5
    %v1370 = vadd.f32 %v255, %v1293
    %v1371 = vmul.f32 %v1370, 0.5
    %v1372 = vtanh.pop %v1371
    %v1373 = vadd.f32 %v1372, 1.0
    %v1374 = vmul.f32 %v1373, 0.5
    %v1375 = vmul.f32 %v1369, %v1362
    %v1376 = vadd.f32 %v256, %v1375
    %v1377 = vtanh.pop %v1376
    %v1378 = vsub.f32 1.0, %v1374
    %v1379 = vmul.f32 %v1378, %v1377
    %v1380 = vmul.f32 %v1374, %v1223
    %v1381 = vadd.f32 %v1379, %v1380
    %1382 = vmatprep.subr.mxu0 %v73
    %1383 = vmatpush1.msra.mxu0 %v72
    %1384 = vmatprep.subr.mxu0 %v76
    %1385 = vmatpush1.msra.mxu0 %v75
    %1386 = vmatprep.subr.mxu0 %v79
    %1387 = vmatpush1.msra.mxu0 %v78
    %1388 = vmatprep.subr.mxu0 %v82
    %1389 = vmatpush1.msra.mxu0 %v81
    %1390 = vmatprep.subr.mxu0 %v85
    %1391 = vmatpush1.msra.mxu0 %v84
    %1392 = vmatprep.subr.mxu0 %v88
    %1393 = vmatpush1.msra.mxu0 %v87
    %1394 = vmatprep.subr.mxu0 %v91
    %1395 = vmatpush1.msra.mxu0 %v90
    %1396 = vmatprep.subr.mxu0 %v94
    %1397 = vmatpush1.msra.mxu0 %v93
    %1398 = vmatprep.subr.mxu0 %v97
    %1399 = vmatpush1.msra.mxu0 %v96
    %1400 = vmatprep.subr.mxu0 %v100
    %1401 = vmatpush1.msra.mxu0 %v99
    %1402 = vmatprep.subr.mxu0 %v103
    %1403 = vmatpush1.msra.mxu0 %v102
    %1404 = vmatprep.subr.mxu0 %v106
    %1405 = vmatpush1.msra.mxu0 %v105
    %1406 = vmatprep.subr.mxu0 %v109
    %1407 = vmatpush1.msra.mxu0 %v108
    %1408 = vmatprep.subr.mxu0 %v112
    %1409 = vmatpush1.msra.mxu0 %v111
    %1410 = vmatprep.subr.mxu0 %v115
    %1411 = vmatpush1.msra.mxu0 %v114
    %1412 = vmatprep.subr.mxu0 %v118
    %1413 = vmatpush1.msra.mxu0 %v117
    %1414 = vmatprep.subr.mxu0 0.0
    %1415 = vmatpush1.msra.mxu0 0.0
    %1416 = vmatprep.subr.mxu0 0.0
    %1417 = vmatpush1.msra.mxu0 0.0
    %1418 = vmatprep.subr.mxu0 0.0
    %1419 = vmatpush1.msra.mxu0 0.0
    %1420 = vmatprep.subr.mxu0 0.0
    %1421 = vmatpush1.msra.mxu0 0.0
    %1422 = vmatprep.subr.mxu0 0.0
    %1423 = vmatpush1.msra.mxu0 0.0
    %1424 = vmatprep.subr.mxu0 0.0
    %1425 = vmatpush1.msra.mxu0 0.0
    %1426 = vmatprep.subr.mxu0 0.0
    %1427 = vmatpush1.msra.mxu0 0.0
    %1428 = vmatprep.subr.mxu0 0.0
    %1429 = vmatpush1.msra.mxu0 0.0
    %1430 = vmatprep.subr.mxu0 0.0
    %1431 = vmatpush1.msra.mxu0 0.0
    %1432 = vmatprep.subr.mxu0 0.0
    %1433 = vmatpush1.msra.mxu0 0.0
    %1434 = vmatprep.subr.mxu0 0.0
    %1435 = vmatpush1.msra.mxu0 0.0
    %1436 = vmatprep.subr.mxu0 0.0
    %1437 = vmatpush1.msra.mxu0 0.0
    %1438 = vmatprep.subr.mxu0 0.0
    %1439 = vmatpush1.msra.mxu0 0.0
    %1440 = vmatprep.subr.mxu0 0.0
    %1441 = vmatpush1.msra.mxu0 0.0
    %1442 = vmatprep.subr.mxu0 0.0
    %1443 = vmatpush1.msra.mxu0 0.0
    %1444 = vmatprep.subr.mxu0 0.0
    %1445 = vmatpush1.msra.mxu0 0.0
    %1446 = vmatprep.mubr.f32.mxu0 0.0
    %1447 = vmatmul.mubr.f32.gmra.mrb[0].mxu0 %v1381
    %v1448 = vpop.f32.mrb[0].mxu0
    %v1449 = vadd.f32 %v264, %v1448
    %v1450 = vpop.f32.mrb[0].mxu0
    %v1451 = vadd.f32 %v268, %v1450
    %1452 = vdwg.mxu0
    %1453 = vmatprep.subr.mxu0 0.0
    %1454 = vmatpush1.msra.mxu0 %v74
    %1455 = vmatprep.subr.mxu0 0.0
    %1456 = vmatpush1.msra.mxu0 %v77
    %1457 = vmatprep.subr.mxu0 0.0
    %1458 = vmatpush1.msra.mxu0 %v80
    %1459 = vmatprep.subr.mxu0 0.0
    %1460 = vmatpush1.msra.mxu0 %v83
    %1461 = vmatprep.subr.mxu0 0.0
    %1462 = vmatpush1.msra.mxu0 %v86
    %1463 = vmatprep.subr.mxu0 0.0
    %1464 = vmatpush1.msra.mxu0 %v89
    %1465 = vmatprep.subr.mxu0 0.0
    %1466 = vmatpush1.msra.mxu0 %v92
    %1467 = vmatprep.subr.mxu0 0.0
    %1468 = vmatpush1.msra.mxu0 %v95
    %1469 = vmatprep.subr.mxu0 0.0
    %1470 = vmatpush1.msra.mxu0 %v98
    %1471 = vmatprep.subr.mxu0 0.0
    %1472 = vmatpush1.msra.mxu0 %v101
    %1473 = vmatprep.subr.mxu0 0.0
    %1474 = vmatpush1.msra.mxu0 %v104
    %1475 = vmatprep.subr.mxu0 0.0
    %1476 = vmatpush1.msra.mxu0 %v107
    %1477 = vmatprep.subr.mxu0 0.0
    %1478 = vmatpush1.msra.mxu0 %v110
    %1479 = vmatprep.subr.mxu0 0.0
    %1480 = vmatpush1.msra.mxu0 %v113
    %1481 = vmatprep.subr.mxu0 0.0
    %1482 = vmatpush1.msra.mxu0 %v116
    %1483 = vmatprep.subr.mxu0 0.0
    %1484 = vmatpush1.msra.mxu0 %v119
    %1485 = vmatprep.subr.mxu0 0.0
    %1486 = vmatpush1.msra.mxu0 0.0
    %1487 = vmatprep.subr.mxu0 0.0
    %1488 = vmatpush1.msra.mxu0 0.0
    %1489 = vmatprep.subr.mxu0 0.0
    %1490 = vmatpush1.msra.mxu0 0.0
    %1491 = vmatprep.subr.mxu0 0.0
    %1492 = vmatpush1.msra.mxu0 0.0
    %1493 = vmatprep.subr.mxu0 0.0
    %1494 = vmatpush1.msra.mxu0 0.0
    %1495 = vmatprep.subr.mxu0 0.0
    %1496 = vmatpush1.msra.mxu0 0.0
    %1497 = vmatprep.subr.mxu0 0.0
    %1498 = vmatpush1.msra.mxu0 0.0
    %1499 = vmatprep.subr.mxu0 0.0
    %1500 = vmatpush1.msra.mxu0 0.0
    %1501 = vmatprep.subr.mxu0 0.0
    %1502 = vmatpush1.msra.mxu0 0.0
    %1503 = vmatprep.subr.mxu0 0.0
    %1504 = vmatpush1.msra.mxu0 0.0
    %1505 = vmatprep.subr.mxu0 0.0
    %1506 = vmatpush1.msra.mxu0 0.0
    %1507 = vmatprep.subr.mxu0 0.0
    %1508 = vmatpush1.msra.mxu0 0.0
    %1509 = vmatprep.subr.mxu0 0.0
    %1510 = vmatpush1.msra.mxu0 0.0
    %1511 = vmatprep.subr.mxu0 0.0
    %1512 = vmatpush1.msra.mxu0 0.0
    %1513 = vmatprep.subr.mxu0 0.0
    %1514 = vmatpush1.msra.mxu0 0.0
    %1515 = vmatprep.subr.mxu0 0.0
    %1516 = vmatpush1.msra.mxu0 0.0
    %1517 = vmatprep.mubr.f32.mxu0 0.0
    %1518 = vmatmul.mubr.f32.gmra.mrb[0].mxu0 %v1381
    %v1519 = vpop.f32.mrb[0].mxu0
    %v1520 = vadd.f32 %v272, %v1519
    %v1521 = vpop.f32.mrb[0].mxu0
    %1522 = vdwg.mxu0
    %v1523 = vadd.f32 %v257, %v1449
    %v1524 = vmul.f32 %v1523, 0.5
    %v1525 = vtanh.pop %v1524
    %v1526 = vadd.f32 %v1525, 1.0
    %v1527 = vmul.f32 %v1526, 0.5
    %v1528 = vadd.f32 %v258, %v1451
    %v1529 = vmul.f32 %v1528, 0.5
    %v1530 = vtanh.pop %v1529
    %v1531 = vadd.f32 %v1530, 1.0
    %v1532 = vmul.f32 %v1531, 0.5
    %v1533 = vmul.f32 %v1527, %v1520
    %v1534 = vadd.f32 %v259, %v1533
    %v1535 = vtanh.pop %v1534
    %v1536 = vsub.f32 1.0, %v1532
    %v1537 = vmul.f32 %v1536, %v1535
    %v1538 = vmul.f32 %v1532, %v1381
    %v1539 = vadd.f32 %v1537, %v1538
    %v1540 = vld [vmem:[%s1] sm:$0xff]
    %v1541 = vld [vmem:[%s6] sm:$0x7]
    %1543 = vset.pattern.permute.xlu0 0
    %1544 = vperm.xlu0 %1543, %v1540
    %v1545 = vpop.permute.xlu0 %1544
    %v1548 = vlaneseq
    %v1549 = vshrl.u32 %v1548, 7
    %v1550 = vsub.s32 0, %v1549
    %v1551 = vrot.slane %v1541, %v1550
    %v1552 = vlaneseq
    %v1553 = vshrl.u32 %v1552, 7
    %v1554 = vsub.s32 1, %v1553
    %v1555 = vrot.slane %v1541, %v1554
    %v1556 = vlaneseq
    %v1557 = vshrl.u32 %v1556, 7
    %v1558 = vsub.s32 2, %v1557
    %v1559 = vrot.slane %v1541, %v1558
    %v1563 = vmul.f32 %v1545, %v1551
    %v1564 = vmul.f32 %v1545, %v1555
    %v1565 = vmul.f32 %v1545, %v1559
    %v1566 = vld [vmem:[%s8] sm:$0x7]
    %v1568 = vlaneseq
    %v1569 = vshrl.u32 %v1568, 7
    %v1570 = vsub.s32 0, %v1569
    %v1571 = vrot.slane %v1566, %v1570
    %v1572 = vlaneseq
    %v1573 = vshrl.u32 %v1572, 7
    %v1574 = vsub.s32 1, %v1573
    %v1575 = vrot.slane %v1566, %v1574
    %v1576 = vlaneseq
    %v1577 = vshrl.u32 %v1576, 7
    %v1578 = vsub.s32 2, %v1577
    %v1579 = vrot.slane %v1566, %v1578
    %v1583 = vadd.f32 %v1563, %v1571
    %v1584 = vadd.f32 %v1564, %v1575
    %v1585 = vadd.f32 %v1565, %v1579
    %v1586 = vld [vmem:[#allocation6] sm:$0xff]
    %v1587 = vld [vmem:[#allocation6 + $0x8] sm:$0xff]
    %v1588 = vld [vmem:[#allocation6 + $0x10] sm:$0xff]
    %v1589 = vld [vmem:[#allocation6 + $0x18] sm:$0xff]
    %v1590 = vld [vmem:[#allocation6 + $0x20] sm:$0xff]
    %v1591 = vld [vmem:[#allocation6 + $0x28] sm:$0xff]
    %v1592 = vld [vmem:[#allocation6 + $0x30] sm:$0xff]
    %v1593 = vld [vmem:[#allocation6 + $0x38] sm:$0xff]
    %v1594 = vld [vmem:[#allocation6 + $0x40] sm:$0xff]
    %v1595 = vld [vmem:[#allocation6 + $0x48] sm:$0xff]
    %v1596 = vld [vmem:[#allocation6 + $0x50] sm:$0xff]
    %v1597 = vld [vmem:[#allocation6 + $0x58] sm:$0xff]
    %v1598 = vld [vmem:[#allocation6 + $0x60] sm:$0xff]
    %v1599 = vld [vmem:[#allocation6 + $0x68] sm:$0xff]
    %v1600 = vld [vmem:[#allocation6 + $0x70] sm:$0xff]
    %v1601 = vld [vmem:[#allocation6 + $0x78] sm:$0xff]
    %v1602 = vld [vmem:[#allocation6 + $0x80] sm:$0xff]
    %v1603 = vld [vmem:[#allocation6 + $0x88] sm:$0xff]
    %v1604 = vld [vmem:[#allocation6 + $0x90] sm:$0xff]
    %v1605 = vld [vmem:[#allocation6 + $0x98] sm:$0xff]
    %v1606 = vld [vmem:[#allocation6 + $0xa0] sm:$0xff]
    %v1607 = vld [vmem:[#allocation6 + $0xa8] sm:$0xff]
    %v1608 = vld [vmem:[#allocation6 + $0xb0] sm:$0xff]
    %v1609 = vld [vmem:[#allocation6 + $0xb8] sm:$0xff]
    %v1610 = vld [vmem:[#allocation6 + $0xc0] sm:$0xff]
    %v1611 = vld [vmem:[#allocation6 + $0xc8] sm:$0xff]
    %v1612 = vld [vmem:[#allocation6 + $0xd0] sm:$0xff]
    %v1613 = vld [vmem:[#allocation6 + $0xd8] sm:$0xff]
    %v1614 = vld [vmem:[#allocation6 + $0xe0] sm:$0xff]
    %v1615 = vld [vmem:[#allocation6 + $0xe8] sm:$0xff]
    %v1616 = vld [vmem:[#allocation6 + $0xf0] sm:$0xff]
    %v1617 = vld [vmem:[#allocation6 + $0xf8] sm:$0xff]
    %v1618 = vld [vmem:[#allocation6 + $0x100] sm:$0xff]
    %v1619 = vld [vmem:[#allocation6 + $0x108] sm:$0xff]
    %v1620 = vld [vmem:[#allocation6 + $0x110] sm:$0xff]
    %v1621 = vld [vmem:[#allocation6 + $0x118] sm:$0xff]
    %v1622 = vld [vmem:[#allocation6 + $0x120] sm:$0xff]
    %v1623 = vld [vmem:[#allocation6 + $0x128] sm:$0xff]
    %v1624 = vld [vmem:[#allocation6 + $0x130] sm:$0xff]
    %v1625 = vld [vmem:[#allocation6 + $0x138] sm:$0xff]
    %v1626 = vld [vmem:[#allocation6 + $0x140] sm:$0xff]
    %v1627 = vld [vmem:[#allocation6 + $0x148] sm:$0xff]
    %v1628 = vld [vmem:[#allocation6 + $0x150] sm:$0xff]
    %v1629 = vld [vmem:[#allocation6 + $0x158] sm:$0xff]
    %v1630 = vld [vmem:[#allocation6 + $0x160] sm:$0xff]
    %v1631 = vld [vmem:[#allocation6 + $0x168] sm:$0xff]
    %v1632 = vld [vmem:[#allocation6 + $0x170] sm:$0xff]
    %v1633 = vld [vmem:[#allocation6 + $0x178] sm:$0xff]
    %v1634 = vld [vmem:[#allocation6 + $0x180] sm:$0xff]
    %v1635 = vld [vmem:[#allocation6 + $0x188] sm:$0xff]
    %v1636 = vld [vmem:[#allocation6 + $0x190] sm:$0xff]
    %v1637 = vld [vmem:[#allocation6 + $0x198] sm:$0xff]
    %v1638 = vld [vmem:[#allocation6 + $0x1a0] sm:$0xff]
    %v1639 = vld [vmem:[#allocation6 + $0x1a8] sm:$0xff]
    %v1640 = vld [vmem:[#allocation6 + $0x1b0] sm:$0xff]
    %v1641 = vld [vmem:[#allocation6 + $0x1b8] sm:$0xff]
    %v1642 = vld [vmem:[#allocation6 + $0x1c0] sm:$0xff]
    %v1643 = vld [vmem:[#allocation6 + $0x1c8] sm:$0xff]
    %v1644 = vld [vmem:[#allocation6 + $0x1d0] sm:$0xff]
    %v1645 = vld [vmem:[#allocation6 + $0x1d8] sm:$0xff]
    %v1646 = vld [vmem:[#allocation6 + $0x1e0] sm:$0xff]
    %v1647 = vld [vmem:[#allocation6 + $0x1e8] sm:$0xff]
    %v1648 = vld [vmem:[#allocation6 + $0x1f0] sm:$0xff]
    %v1649 = vld [vmem:[#allocation6 + $0x1f8] sm:$0xff]
    %v1650 = vld [vmem:[#allocation6 + $0x200] sm:$0xff]
    %v1651 = vld [vmem:[#allocation6 + $0x208] sm:$0xff]
    %v1652 = vld [vmem:[#allocation6 + $0x210] sm:$0xff]
    %v1653 = vld [vmem:[#allocation6 + $0x218] sm:$0xff]
    %v1654 = vld [vmem:[#allocation6 + $0x220] sm:$0xff]
    %v1655 = vld [vmem:[#allocation6 + $0x228] sm:$0xff]
    %v1656 = vld [vmem:[#allocation6 + $0x230] sm:$0xff]
    %v1657 = vld [vmem:[#allocation6 + $0x238] sm:$0xff]
    %v1658 = vld [vmem:[#allocation6 + $0x240] sm:$0xff]
    %v1659 = vld [vmem:[#allocation6 + $0x248] sm:$0xff]
    %v1660 = vld [vmem:[#allocation6 + $0x250] sm:$0xff]
    %v1661 = vld [vmem:[#allocation6 + $0x258] sm:$0xff]
    %v1662 = vld [vmem:[#allocation6 + $0x260] sm:$0xff]
    %v1663 = vld [vmem:[#allocation6 + $0x268] sm:$0xff]
    %v1664 = vld [vmem:[#allocation6 + $0x270] sm:$0xff]
    %v1665 = vld [vmem:[#allocation6 + $0x278] sm:$0xff]
    %v1666 = vld [vmem:[#allocation6 + $0x280] sm:$0xff]
    %v1667 = vld [vmem:[#allocation6 + $0x288] sm:$0xff]
    %v1668 = vld [vmem:[#allocation6 + $0x290] sm:$0xff]
    %v1669 = vld [vmem:[#allocation6 + $0x298] sm:$0xff]
    %v1670 = vld [vmem:[#allocation6 + $0x2a0] sm:$0xff]
    %v1671 = vld [vmem:[#allocation6 + $0x2a8] sm:$0xff]
    %v1672 = vld [vmem:[#allocation6 + $0x2b0] sm:$0xff]
    %v1673 = vld [vmem:[#allocation6 + $0x2b8] sm:$0xff]
    %v1674 = vld [vmem:[#allocation6 + $0x2c0] sm:$0xff]
    %v1675 = vld [vmem:[#allocation6 + $0x2c8] sm:$0xff]
    %v1676 = vld [vmem:[#allocation6 + $0x2d0] sm:$0xff]
    %v1677 = vld [vmem:[#allocation6 + $0x2d8] sm:$0xff]
    %v1678 = vld [vmem:[#allocation6 + $0x2e0] sm:$0xff]
    %v1679 = vld [vmem:[#allocation6 + $0x2e8] sm:$0xff]
    %v1680 = vld [vmem:[#allocation6 + $0x2f0] sm:$0xff]
    %v1681 = vld [vmem:[#allocation6 + $0x2f8] sm:$0xff]
    %v1682 = vld [vmem:[%s9] sm:$0x7]
    %1683 = vmatprep.subr.mxu0 %v1587
    %1684 = vmatpush1.msra.mxu0 %v1586
    %1685 = vmatprep.subr.mxu0 %v1593
    %1686 = vmatpush1.msra.mxu0 %v1592
    %1687 = vmatprep.subr.mxu0 %v1599
    %1688 = vmatpush1.msra.mxu0 %v1598
    %1689 = vmatprep.subr.mxu0 %v1605
    %1690 = vmatpush1.msra.mxu0 %v1604
    %1691 = vmatprep.subr.mxu0 %v1611
    %1692 = vmatpush1.msra.mxu0 %v1610
    %1693 = vmatprep.subr.mxu0 %v1617
    %1694 = vmatpush1.msra.mxu0 %v1616
    %1695 = vmatprep.subr.mxu0 %v1623
    %1696 = vmatpush1.msra.mxu0 %v1622
    %1697 = vmatprep.subr.mxu0 %v1629
    %1698 = vmatpush1.msra.mxu0 %v1628
    %1699 = vmatprep.subr.mxu0 %v1635
    %1700 = vmatpush1.msra.mxu0 %v1634
    %1701 = vmatprep.subr.mxu0 %v1641
    %1702 = vmatpush1.msra.mxu0 %v1640
    %1703 = vmatprep.subr.mxu0 %v1647
    %1704 = vmatpush1.msra.mxu0 %v1646
    %1705 = vmatprep.subr.mxu0 %v1653
    %1706 = vmatpush1.msra.mxu0 %v1652
    %1707 = vmatprep.subr.mxu0 %v1659
    %1708 = vmatpush1.msra.mxu0 %v1658
    %1709 = vmatprep.subr.mxu0 %v1665
    %1710 = vmatpush1.msra.mxu0 %v1664
    %1711 = vmatprep.subr.mxu0 %v1671
    %1712 = vmatpush1.msra.mxu0 %v1670
    %1713 = vmatprep.subr.mxu0 %v1677
    %1714 = vmatpush1.msra.mxu0 %v1676
    %1715 = vmatprep.subr.mxu0 0.0
    %1716 = vmatpush1.msra.mxu0 0.0
    %1717 = vmatprep.subr.mxu0 0.0
    %1718 = vmatpush1.msra.mxu0 0.0
    %1719 = vmatprep.subr.mxu0 0.0
    %1720 = vmatpush1.msra.mxu0 0.0
    %1721 = vmatprep.subr.mxu0 0.0
    %1722 = vmatpush1.msra.mxu0 0.0
    %1723 = vmatprep.subr.mxu0 0.0
    %1724 = vmatpush1.msra.mxu0 0.0
    %1725 = vmatprep.subr.mxu0 0.0
    %1726 = vmatpush1.msra.mxu0 0.0
    %1727 = vmatprep.subr.mxu0 0.0
    %1728 = vmatpush1.msra.mxu0 0.0
    %1729 = vmatprep.subr.mxu0 0.0
    %1730 = vmatpush1.msra.mxu0 0.0
    %1731 = vmatprep.subr.mxu0 0.0
    %1732 = vmatpush1.msra.mxu0 0.0
    %1733 = vmatprep.subr.mxu0 0.0
    %1734 = vmatpush1.msra.mxu0 0.0
    %1735 = vmatprep.subr.mxu0 0.0
    %1736 = vmatpush1.msra.mxu0 0.0
    %1737 = vmatprep.subr.mxu0 0.0
    %1738 = vmatpush1.msra.mxu0 0.0
    %1739 = vmatprep.subr.mxu0 0.0
    %1740 = vmatpush1.msra.mxu0 0.0
    %1741 = vmatprep.subr.mxu0 0.0
    %1742 = vmatpush1.msra.mxu0 0.0
    %1743 = vmatprep.subr.mxu0 0.0
    %1744 = vmatpush1.msra.mxu0 0.0
    %1745 = vmatprep.subr.mxu0 0.0
    %1746 = vmatpush1.msra.mxu0 0.0
    %1747 = vmatprep.mubr.f32.mxu0 0.0
    %1748 = vmatmul.mubr.f32.gmra.mrb[0].mxu0 %v1539
    %v1749 = vpop.f32.mrb[0].mxu0
    %v1750 = vadd.f32 0.0, %v1749
    %v1751 = vpop.f32.mrb[0].mxu0
    %v1752 = vadd.f32 0.0, %v1751
    %1753 = vdwg.mxu0
    %1754 = vmatprep.subr.mxu0 %v1589
    %1755 = vmatpush1.msra.mxu0 %v1588
    %1756 = vmatprep.subr.mxu0 %v1595
    %1757 = vmatpush1.msra.mxu0 %v1594
    %1758 = vmatprep.subr.mxu0 %v1601
    %1759 = vmatpush1.msra.mxu0 %v1600
    %1760 = vmatprep.subr.mxu0 %v1607
    %1761 = vmatpush1.msra.mxu0 %v1606
    %1762 = vmatprep.subr.mxu0 %v1613
    %1763 = vmatpush1.msra.mxu0 %v1612
    %1764 = vmatprep.subr.mxu0 %v1619
    %1765 = vmatpush1.msra.mxu0 %v1618
    %1766 = vmatprep.subr.mxu0 %v1625
    %1767 = vmatpush1.msra.mxu0 %v1624
    %1768 = vmatprep.subr.mxu0 %v1631
    %1769 = vmatpush1.msra.mxu0 %v1630
    %1770 = vmatprep.subr.mxu0 %v1637
    %1771 = vmatpush1.msra.mxu0 %v1636
    %1772 = vmatprep.subr.mxu0 %v1643
    %1773 = vmatpush1.msra.mxu0 %v1642
    %1774 = vmatprep.subr.mxu0 %v1649
    %1775 = vmatpush1.msra.mxu0 %v1648
    %1776 = vmatprep.subr.mxu0 %v1655
    %1777 = vmatpush1.msra.mxu0 %v1654
    %1778 = vmatprep.subr.mxu0 %v1661
    %1779 = vmatpush1.msra.mxu0 %v1660
    %1780 = vmatprep.subr.mxu0 %v1667
    %1781 = vmatpush1.msra.mxu0 %v1666
    %1782 = vmatprep.subr.mxu0 %v1673
    %1783 = vmatpush1.msra.mxu0 %v1672
    %1784 = vmatprep.subr.mxu0 %v1679
    %1785 = vmatpush1.msra.mxu0 %v1678
    %1786 = vmatprep.subr.mxu0 0.0
    %1787 = vmatpush1.msra.mxu0 0.0
    %1788 = vmatprep.subr.mxu0 0.0
    %1789 = vmatpush1.msra.mxu0 0.0
    %1790 = vmatprep.subr.mxu0 0.0
    %1791 = vmatpush1.msra.mxu0 0.0
    %1792 = vmatprep.subr.mxu0 0.0
    %1793 = vmatpush1.msra.mxu0 0.0
    %1794 = vmatprep.subr.mxu0 0.0
    %1795 = vmatpush1.msra.mxu0 0.0
    %1796 = vmatprep.subr.mxu0 0.0
    %1797 = vmatpush1.msra.mxu0 0.0
    %1798 = vmatprep.subr.mxu0 0.0
    %1799 = vmatpush1.msra.mxu0 0.0
    %1800 = vmatprep.subr.mxu0 0.0
    %1801 = vmatpush1.msra.mxu0 0.0
    %1802 = vmatprep.subr.mxu0 0.0
    %1803 = vmatpush1.msra.mxu0 0.0
    %1804 = vmatprep.subr.mxu0 0.0
    %1805 = vmatpush1.msra.mxu0 0.0
    %1806 = vmatprep.subr.mxu0 0.0
    %1807 = vmatpush1.msra.mxu0 0.0
    %1808 = vmatprep.subr.mxu0 0.0
    %1809 = vmatpush1.msra.mxu0 0.0
    %1810 = vmatprep.subr.mxu0 0.0
    %1811 = vmatpush1.msra.mxu0 0.0
    %1812 = vmatprep.subr.mxu0 0.0
    %1813 = vmatpush1.msra.mxu0 0.0
    %1814 = vmatprep.subr.mxu0 0.0
    %1815 = vmatpush1.msra.mxu0 0.0
    %1816 = vmatprep.subr.mxu0 0.0
    %1817 = vmatpush1.msra.mxu0 0.0
    %1818 = vmatprep.mubr.f32.mxu0 0.0
    %1819 = vmatmul.mubr.f32.gmra.mrb[0].mxu0 %v1539
    %v1820 = vpop.f32.mrb[0].mxu0
    %v1821 = vadd.f32 0.0, %v1820
    %v1822 = vpop.f32.mrb[0].mxu0
    %v1823 = vadd.f32 0.0, %v1822
    %1824 = vdwg.mxu0
    %1825 = vmatprep.subr.mxu0 %v1591
    %1826 = vmatpush1.msra.mxu0 %v1590
    %1827 = vmatprep.subr.mxu0 %v1597
    %1828 = vmatpush1.msra.mxu0 %v1596
    %1829 = vmatprep.subr.mxu0 %v1603
    %1830 = vmatpush1.msra.mxu0 %v1602
    %1831 = vmatprep.subr.mxu0 %v1609
    %1832 = vmatpush1.msra.mxu0 %v1608
    %1833 = vmatprep.subr.mxu0 %v1615
    %1834 = vmatpush1.msra.mxu0 %v1614
    %1835 = vmatprep.subr.mxu0 %v1621
    %1836 = vmatpush1.msra.mxu0 %v1620
    %1837 = vmatprep.subr.mxu0 %v1627
    %1838 = vmatpush1.msra.mxu0 %v1626
    %1839 = vmatprep.subr.mxu0 %v1633
    %1840 = vmatpush1.msra.mxu0 %v1632
    %1841 = vmatprep.subr.mxu0 %v1639
    %1842 = vmatpush1.msra.mxu0 %v1638
    %1843 = vmatprep.subr.mxu0 %v1645
    %1844 = vmatpush1.msra.mxu0 %v1644
    %1845 = vmatprep.subr.mxu0 %v1651
    %1846 = vmatpush1.msra.mxu0 %v1650
    %1847 = vmatprep.subr.mxu0 %v1657
    %1848 = vmatpush1.msra.mxu0 %v1656
    %1849 = vmatprep.subr.mxu0 %v1663
    %1850 = vmatpush1.msra.mxu0 %v1662
    %1851 = vmatprep.subr.mxu0 %v1669
    %1852 = vmatpush1.msra.mxu0 %v1668
    %1853 = vmatprep.subr.mxu0 %v1675
    %1854 = vmatpush1.msra.mxu0 %v1674
    %1855 = vmatprep.subr.mxu0 %v1681
    %1856 = vmatpush1.msra.mxu0 %v1680
    %1857 = vmatprep.subr.mxu0 0.0
    %1858 = vmatpush1.msra.mxu0 0.0
    %1859 = vmatprep.subr.mxu0 0.0
    %1860 = vmatpush1.msra.mxu0 0.0
    %1861 = vmatprep.subr.mxu0 0.0
    %1862 = vmatpush1.msra.mxu0 0.0
    %1863 = vmatprep.subr.mxu0 0.0
    %1864 = vmatpush1.msra.mxu0 0.0
    %1865 = vmatprep.subr.mxu0 0.0
    %1866 = vmatpush1.msra.mxu0 0.0
    %1867 = vmatprep.subr.mxu0 0.0
    %1868 = vmatpush1.msra.mxu0 0.0
    %1869 = vmatprep.subr.mxu0 0.0
    %1870 = vmatpush1.msra.mxu0 0.0
    %1871 = vmatprep.subr.mxu0 0.0
    %1872 = vmatpush1.msra.mxu0 0.0
    %1873 = vmatprep.subr.mxu0 0.0
    %1874 = vmatpush1.msra.mxu0 0.0
    %1875 = vmatprep.subr.mxu0 0.0
    %1876 = vmatpush1.msra.mxu0 0.0
    %1877 = vmatprep.subr.mxu0 0.0
    %1878 = vmatpush1.msra.mxu0 0.0
    %1879 = vmatprep.subr.mxu0 0.0
    %1880 = vmatpush1.msra.mxu0 0.0
    %1881 = vmatprep.subr.mxu0 0.0
    %1882 = vmatpush1.msra.mxu0 0.0
    %1883 = vmatprep.subr.mxu0 0.0
    %1884 = vmatpush1.msra.mxu0 0.0
    %1885 = vmatprep.subr.mxu0 0.0
    %1886 = vmatpush1.msra.mxu0 0.0
    %1887 = vmatprep.subr.mxu0 0.0
    %1888 = vmatpush1.msra.mxu0 0.0
    %1889 = vmatprep.mubr.f32.mxu0 0.0
    %1890 = vmatmul.mubr.f32.gmra.mrb[0].mxu0 %v1539
    %v1891 = vpop.f32.mrb[0].mxu0
    %v1892 = vadd.f32 0.0, %v1891
    %v1893 = vpop.f32.mrb[0].mxu0
    %v1894 = vadd.f32 0.0, %v1893
    %1895 = vdwg.mxu0
    %v1896 = vadd.f32 %v1750, %v1583
    %v1897 = vadd.f32 %v1752, %v1584
    %v1898 = vadd.f32 %v1821, %v1585
    %v1900 = vlaneseq
    %v1901 = vshrl.u32 %v1900, 7
    %v1902 = vsub.s32 0, %v1901
    %v1903 = vrot.slane %v1682, %v1902
    %v1904 = vlaneseq
    %v1905 = vshrl.u32 %v1904, 7
    %v1906 = vsub.s32 1, %v1905
    %v1907 = vrot.slane %v1682, %v1906
    %v1908 = vlaneseq
    %v1909 = vshrl.u32 %v1908, 7
    %v1910 = vsub.s32 2, %v1909
    %v1911 = vrot.slane %v1682, %v1910
    %v1915 = vadd.f32 %v1823, %v1903
    %v1916 = vadd.f32 %v1892, %v1907
    %v1917 = vadd.f32 %v1894, %v1911
    %v1918 = vadd.f32 %v1896, %v1915
    %v1919 = vmul.f32 %v1918, 0.5
    %v1920 = vtanh.pop %v1919
    %v1921 = vadd.f32 %v1920, 1.0
    %v1922 = vmul.f32 %v1921, 0.5
    %v1923 = vadd.f32 %v1897, %v1916
    %v1924 = vmul.f32 %v1923, 0.5
    %v1925 = vtanh.pop %v1924
    %v1926 = vadd.f32 %v1925, 1.0
    %v1927 = vmul.f32 %v1926, 0.5
    %v1928 = vmul.f32 %v1922, %v1917
    %v1929 = vadd.f32 %v1898, %v1928
    %v1930 = vtanh.pop %v1929
    %v1931 = vsub.f32 1.0, %v1927
    %v1932 = vmul.f32 %v1931, %v1930
    %v1933 = vmul.f32 %v1927, %v1539
    %v1934 = vadd.f32 %v1932, %v1933
    %1935 = vmatprep.subr.mxu0 %v1587
    %1936 = vmatpush1.msra.mxu0 %v1586
    %1937 = vmatprep.subr.mxu0 %v1593
    %1938 = vmatpush1.msra.mxu0 %v1592
    %1939 = vmatprep.subr.mxu0 %v1599
    %1940 = vmatpush1.msra.mxu0 %v1598
    %1941 = vmatprep.subr.mxu0 %v1605
    %1942 = vmatpush1.msra.mxu0 %v1604
    %1943 = vmatprep.subr.mxu0 %v1611
    %1944 = vmatpush1.msra.mxu0 %v1610
    %1945 = vmatprep.subr.mxu0 %v1617
    %1946 = vmatpush1.msra.mxu0 %v1616
    %1947 = vmatprep.subr.mxu0 %v1623
    %1948 = vmatpush1.msra.mxu0 %v1622
    %1949 = vmatprep.subr.mxu0 %v1629
    %1950 = vmatpush1.msra.mxu0 %v1628
    %1951 = vmatprep.subr.mxu0 %v1635
    %1952 = vmatpush1.msra.mxu0 %v1634
    %1953 = vmatprep.subr.mxu0 %v1641
    %1954 = vmatpush1.msra.mxu0 %v1640
    %1955 = vmatprep.subr.mxu0 %v1647
    %1956 = vmatpush1.msra.mxu0 %v1646
    %1957 = vmatprep.subr.mxu0 %v1653
    %1958 = vmatpush1.msra.mxu0 %v1652
    %1959 = vmatprep.subr.mxu0 %v1659
    %1960 = vmatpush1.msra.mxu0 %v1658
    %1961 = vmatprep.subr.mxu0 %v1665
    %1962 = vmatpush1.msra.mxu0 %v1664
    %1963 = vmatprep.subr.mxu0 %v1671
    %1964 = vmatpush1.msra.mxu0 %v1670
    %1965 = vmatprep.subr.mxu0 %v1677
    %1966 = vmatpush1.msra.mxu0 %v1676
    %1967 = vmatprep.subr.mxu0 0.0
    %1968 = vmatpush1.msra.mxu0 0.0
    %1969 = vmatprep.subr.mxu0 0.0
    %1970 = vmatpush1.msra.mxu0 0.0
    %1971 = vmatprep.subr.mxu0 0.0
    %1972 = vmatpush1.msra.mxu0 0.0
    %1973 = vmatprep.subr.mxu0 0.0
    %1974 = vmatpush1.msra.mxu0 0.0
    %1975 = vmatprep.subr.mxu0 0.0
    %1976 = vmatpush1.msra.mxu0 0.0
    %1977 = vmatprep.subr.mxu0 0.0
    %1978 = vmatpush1.msra.mxu0 0.0
    %1979 = vmatprep.subr.mxu0 0.0
    %1980 = vmatpush1.msra.mxu0 0.0
    %1981 = vmatprep.subr.mxu0 0.0
    %1982 = vmatpush1.msra.mxu0 0.0
    %1983 = vmatprep.subr.mxu0 0.0
    %1984 = vmatpush1.msra.mxu0 0.0
    %1985 = vmatprep.subr.mxu0 0.0
    %1986 = vmatpush1.msra.mxu0 0.0
    %1987 = vmatprep.subr.mxu0 0.0
    %1988 = vmatpush1.msra.mxu0 0.0
    %1989 = vmatprep.subr.mxu0 0.0
    %1990 = vmatpush1.msra.mxu0 0.0
    %1991 = vmatprep.subr.mxu0 0.0
    %1992 = vmatpush1.msra.mxu0 0.0
    %1993 = vmatprep.subr.mxu0 0.0
    %1994 = vmatpush1.msra.mxu0 0.0
    %1995 = vmatprep.subr.mxu0 0.0
    %1996 = vmatpush1.msra.mxu0 0.0
    %1997 = vmatprep.subr.mxu0 0.0
    %1998 = vmatpush1.msra.mxu0 0.0
    %1999 = vmatprep.mubr.f32.mxu0 0.0
    %2000 = vmatmul.mubr.f32.gmra.mrb[0].mxu0 %v1934
    %v2001 = vpop.f32.mrb[0].mxu0
    %v2002 = vadd.f32 0.0, %v2001
    %v2003 = vpop.f32.mrb[0].mxu0
    %v2004 = vadd.f32 0.0, %v2003
    %2005 = vdwg.mxu0
    %2006 = vmatprep.subr.mxu0 %v1589
    %2007 = vmatpush1.msra.mxu0 %v1588
    %2008 = vmatprep.subr.mxu0 %v1595
    %2009 = vmatpush1.msra.mxu0 %v1594
    %2010 = vmatprep.subr.mxu0 %v1601
    %2011 = vmatpush1.msra.mxu0 %v1600
    %2012 = vmatprep.subr.mxu0 %v1607
    %2013 = vmatpush1.msra.mxu0 %v1606
    %2014 = vmatprep.subr.mxu0 %v1613
    %2015 = vmatpush1.msra.mxu0 %v1612
    %2016 = vmatprep.subr.mxu0 %v1619
    %2017 = vmatpush1.msra.mxu0 %v1618
    %2018 = vmatprep.subr.mxu0 %v1625
    %2019 = vmatpush1.msra.mxu0 %v1624
    %2020 = vmatprep.subr.mxu0 %v1631
    %2021 = vmatpush1.msra.mxu0 %v1630
    %2022 = vmatprep.subr.mxu0 %v1637
    %2023 = vmatpush1.msra.mxu0 %v1636
    %2024 = vmatprep.subr.mxu0 %v1643
    %2025 = vmatpush1.msra.mxu0 %v1642
    %2026 = vmatprep.subr.mxu0 %v1649
    %2027 = vmatpush1.msra.mxu0 %v1648
    %2028 = vmatprep.subr.mxu0 %v1655
    %2029 = vmatpush1.msra.mxu0 %v1654
    %2030 = vmatprep.subr.mxu0 %v1661
    %2031 = vmatpush1.msra.mxu0 %v1660
    %2032 = vmatprep.subr.mxu0 %v1667
    %2033 = vmatpush1.msra.mxu0 %v1666
    %2034 = vmatprep.subr.mxu0 %v1673
    %2035 = vmatpush1.msra.mxu0 %v1672
    %2036 = vmatprep.subr.mxu0 %v1679
    %2037 = vmatpush1.msra.mxu0 %v1678
    %2038 = vmatprep.subr.mxu0 0.0
    %2039 = vmatpush1.msra.mxu0 0.0
    %2040 = vmatprep.subr.mxu0 0.0
    %2041 = vmatpush1.msra.mxu0 0.0
    %2042 = vmatprep.subr.mxu0 0.0
    %2043 = vmatpush1.msra.mxu0 0.0
    %2044 = vmatprep.subr.mxu0 0.0
    %2045 = vmatpush1.msra.mxu0 0.0
    %2046 = vmatprep.subr.mxu0 0.0
    %2047 = vmatpush1.msra.mxu0 0.0
    %2048 = vmatprep.subr.mxu0 0.0
    %2049 = vmatpush1.msra.mxu0 0.0
    %2050 = vmatprep.subr.mxu0 0.0
    %2051 = vmatpush1.msra.mxu0 0.0
    %2052 = vmatprep.subr.mxu0 0.0
    %2053 = vmatpush1.msra.mxu0 0.0
    %2054 = vmatprep.subr.mxu0 0.0
    %2055 = vmatpush1.msra.mxu0 0.0
    %2056 = vmatprep.subr.mxu0 0.0
    %2057 = vmatpush1.msra.mxu0 0.0
    %2058 = vmatprep.subr.mxu0 0.0
    %2059 = vmatpush1.msra.mxu0 0.0
    %2060 = vmatprep.subr.mxu0 0.0
    %2061 = vmatpush1.msra.mxu0 0.0
    %2062 = vmatprep.subr.mxu0 0.0
    %2063 = vmatpush1.msra.mxu0 0.0
    %2064 = vmatprep.subr.mxu0 0.0
    %2065 = vmatpush1.msra.mxu0 0.0
    %2066 = vmatprep.subr.mxu0 0.0
    %2067 = vmatpush1.msra.mxu0 0.0
    %2068 = vmatprep.subr.mxu0 0.0
    %2069 = vmatpush1.msra.mxu0 0.0
    %2070 = vmatprep.mubr.f32.mxu0 0.0
    %2071 = vmatmul.mubr.f32.gmra.mrb[0].mxu0 %v1934
    %v2072 = vpop.f32.mrb[0].mxu0
    %v2073 = vadd.f32 0.0, %v2072
    %v2074 = vpop.f32.mrb[0].mxu0
    %v2075 = vadd.f32 0.0, %v2074
    %2076 = vdwg.mxu0
    %2077 = vmatprep.subr.mxu0 %v1591
    %2078 = vmatpush1.msra.mxu0 %v1590
    %2079 = vmatprep.subr.mxu0 %v1597
    %2080 = vmatpush1.msra.mxu0 %v1596
    %2081 = vmatprep.subr.mxu0 %v1603
    %2082 = vmatpush1.msra.mxu0 %v1602
    %2083 = vmatprep.subr.mxu0 %v1609
    %2084 = vmatpush1.msra.mxu0 %v1608
    %2085 = vmatprep.subr.mxu0 %v1615
    %2086 = vmatpush1.msra.mxu0 %v1614
    %2087 = vmatprep.subr.mxu0 %v1621
    %2088 = vmatpush1.msra.mxu0 %v1620
    %2089 = vmatprep.subr.mxu0 %v1627
    %2090 = vmatpush1.msra.mxu0 %v1626
    %2091 = vmatprep.subr.mxu0 %v1633
    %2092 = vmatpush1.msra.mxu0 %v1632
    %2093 = vmatprep.subr.mxu0 %v1639
    %2094 = vmatpush1.msra.mxu0 %v1638
    %2095 = vmatprep.subr.mxu0 %v1645
    %2096 = vmatpush1.msra.mxu0 %v1644
    %2097 = vmatprep.subr.mxu0 %v1651
    %2098 = vmatpush1.msra.mxu0 %v1650
    %2099 = vmatprep.subr.mxu0 %v1657
    %2100 = vmatpush1.msra.mxu0 %v1656
    %2101 = vmatprep.subr.mxu0 %v1663
    %2102 = vmatpush1.msra.mxu0 %v1662
    %2103 = vmatprep.subr.mxu0 %v1669
    %2104 = vmatpush1.msra.mxu0 %v1668
    %2105 = vmatprep.subr.mxu0 %v1675
    %2106 = vmatpush1.msra.mxu0 %v1674
    %2107 = vmatprep.subr.mxu0 %v1681
    %2108 = vmatpush1.msra.mxu0 %v1680
    %2109 = vmatprep.subr.mxu0 0.0
    %2110 = vmatpush1.msra.mxu0 0.0
    %2111 = vmatprep.subr.mxu0 0.0
    %2112 = vmatpush1.msra.mxu0 0.0
    %2113 = vmatprep.subr.mxu0 0.0
    %2114 = vmatpush1.msra.mxu0 0.0
    %2115 = vmatprep.subr.mxu0 0.0
    %2116 = vmatpush1.msra.mxu0 0.0
    %2117 = vmatprep.subr.mxu0 0.0
    %2118 = vmatpush1.msra.mxu0 0.0
    %2119 = vmatprep.subr.mxu0 0.0
    %2120 = vmatpush1.msra.mxu0 0.0
    %2121 = vmatprep.subr.mxu0 0.0
    %2122 = vmatpush1.msra.mxu0 0.0
    %2123 = vmatprep.subr.mxu0 0.0
    %2124 = vmatpush1.msra.mxu0 0.0
    %2125 = vmatprep.subr.mxu0 0.0
    %2126 = vmatpush1.msra.mxu0 0.0
    %2127 = vmatprep.subr.mxu0 0.0
    %2128 = vmatpush1.msra.mxu0 0.0
    %2129 = vmatprep.subr.mxu0 0.0
    %2130 = vmatpush1.msra.mxu0 0.0
    %2131 = vmatprep.subr.mxu0 0.0
    %2132 = vmatpush1.msra.mxu0 0.0
    %2133 = vmatprep.subr.mxu0 0.0
    %2134 = vmatpush1.msra.mxu0 0.0
    %2135 = vmatprep.subr.mxu0 0.0
    %2136 = vmatpush1.msra.mxu0 0.0
    %2137 = vmatprep.subr.mxu0 0.0
    %2138 = vmatpush1.msra.mxu0 0.0
    %2139 = vmatprep.subr.mxu0 0.0
    %2140 = vmatpush1.msra.mxu0 0.0
    %2141 = vmatprep.mubr.f32.mxu0 0.0
    %2142 = vmatmul.mubr.f32.gmra.mrb[0].mxu0 %v1934
    %v2143 = vpop.f32.mrb[0].mxu0
    %v2144 = vadd.f32 0.0, %v2143
    %v2145 = vpop.f32.mrb[0].mxu0
    %v2146 = vadd.f32 0.0, %v2145
    %2147 = vdwg.mxu0
    %v2148 = vadd.f32 %v2002, %v1583
    %v2149 = vadd.f32 %v2004, %v1584
    %v2150 = vadd.f32 %v2073, %v1585
    %v2151 = vadd.f32 %v2075, %v1903
    %v2152 = vadd.f32 %v2144, %v1907
    %v2153 = vadd.f32 %v2146, %v1911
    %v2154 = vadd.f32 %v2148, %v2151
    %v2155 = vmul.f32 %v2154, 0.5
    %v2156 = vtanh.pop %v2155
    %v2157 = vadd.f32 %v2156, 1.0
    %v2158 = vmul.f32 %v2157, 0.5
    %v2159 = vadd.f32 %v2149, %v2152
    %v2160 = vmul.f32 %v2159, 0.5
    %v2161 = vtanh.pop %v2160
    %v2162 = vadd.f32 %v2161, 1.0
    %v2163 = vmul.f32 %v2162, 0.5
    %v2164 = vmul.f32 %v2158, %v2153
    %v2165 = vadd.f32 %v2150, %v2164
    %v2166 = vtanh.pop %v2165
    %v2167 = vsub.f32 1.0, %v2163
    %v2168 = vmul.f32 %v2167, %v2166
    %v2169 = vmul.f32 %v2163, %v1934
    %v2170 = vadd.f32 %v2168, %v2169
    %2171 = vmatprep.subr.mxu0 %v1587
    %2172 = vmatpush1.msra.mxu0 %v1586
    %2173 = vmatprep.subr.mxu0 %v1593
    %2174 = vmatpush1.msra.mxu0 %v1592
    %2175 = vmatprep.subr.mxu0 %v1599
    %2176 = vmatpush1.msra.mxu0 %v1598
    %2177 = vmatprep.subr.mxu0 %v1605
    %2178 = vmatpush1.msra.mxu0 %v1604
    %2179 = vmatprep.subr.mxu0 %v1611
    %2180 = vmatpush1.msra.mxu0 %v1610
    %2181 = vmatprep.subr.mxu0 %v1617
    %2182 = vmatpush1.msra.mxu0 %v1616
    %2183 = vmatprep.subr.mxu0 %v1623
    %2184 = vmatpush1.msra.mxu0 %v1622
    %2185 = vmatprep.subr.mxu0 %v1629
    %2186 = vmatpush1.msra.mxu0 %v1628
    %2187 = vmatprep.subr.mxu0 %v1635
    %2188 = vmatpush1.msra.mxu0 %v1634
    %2189 = vmatprep.subr.mxu0 %v1641
    %2190 = vmatpush1.msra.mxu0 %v1640
    %2191 = vmatprep.subr.mxu0 %v1647
    %2192 = vmatpush1.msra.mxu0 %v1646
    %2193 = vmatprep.subr.mxu0 %v1653
    %2194 = vmatpush1.msra.mxu0 %v1652
    %2195 = vmatprep.subr.mxu0 %v1659
    %2196 = vmatpush1.msra.mxu0 %v1658
    %2197 = vmatprep.subr.mxu0 %v1665
    %2198 = vmatpush1.msra.mxu0 %v1664
    %2199 = vmatprep.subr.mxu0 %v1671
    %2200 = vmatpush1.msra.mxu0 %v1670
    %2201 = vmatprep.subr.mxu0 %v1677
    %2202 = vmatpush1.msra.mxu0 %v1676
    %2203 = vmatprep.subr.mxu0 0.0
    %2204 = vmatpush1.msra.mxu0 0.0
    %2205 = vmatprep.subr.mxu0 0.0
    %2206 = vmatpush1.msra.mxu0 0.0
    %2207 = vmatprep.subr.mxu0 0.0
    %2208 = vmatpush1.msra.mxu0 0.0
    %2209 = vmatprep.subr.mxu0 0.0
    %2210 = vmatpush1.msra.mxu0 0.0
    %2211 = vmatprep.subr.mxu0 0.0
    %2212 = vmatpush1.msra.mxu0 0.0
    %2213 = vmatprep.subr.mxu0 0.0
    %2214 = vmatpush1.msra.mxu0 0.0
    %2215 = vmatprep.subr.mxu0 0.0
    %2216 = vmatpush1.msra.mxu0 0.0
    %2217 = vmatprep.subr.mxu0 0.0
    %2218 = vmatpush1.msra.mxu0 0.0
    %2219 = vmatprep.subr.mxu0 0.0
    %2220 = vmatpush1.msra.mxu0 0.0
    %2221 = vmatprep.subr.mxu0 0.0
    %2222 = vmatpush1.msra.mxu0 0.0
    %2223 = vmatprep.subr.mxu0 0.0
    %2224 = vmatpush1.msra.mxu0 0.0
    %2225 = vmatprep.subr.mxu0 0.0
    %2226 = vmatpush1.msra.mxu0 0.0
    %2227 = vmatprep.subr.mxu0 0.0
    %2228 = vmatpush1.msra.mxu0 0.0
    %2229 = vmatprep.subr.mxu0 0.0
    %2230 = vmatpush1.msra.mxu0 0.0
    %2231 = vmatprep.subr.mxu0 0.0
    %2232 = vmatpush1.msra.mxu0 0.0
    %2233 = vmatprep.subr.mxu0 0.0
    %2234 = vmatpush1.msra.mxu0 0.0
    %2235 = vmatprep.mubr.f32.mxu0 0.0
    %2236 = vmatmul.mubr.f32.gmra.mrb[0].mxu0 %v2170
    %v2237 = vpop.f32.mrb[0].mxu0
    %v2238 = vadd.f32 0.0, %v2237
    %v2239 = vpop.f32.mrb[0].mxu0
    %v2240 = vadd.f32 0.0, %v2239
    %2241 = vdwg.mxu0
    %2242 = vmatprep.subr.mxu0 %v1589
    %2243 = vmatpush1.msra.mxu0 %v1588
    %2244 = vmatprep.subr.mxu0 %v1595
    %2245 = vmatpush1.msra.mxu0 %v1594
    %2246 = vmatprep.subr.mxu0 %v1601
    %2247 = vmatpush1.msra.mxu0 %v1600
    %2248 = vmatprep.subr.mxu0 %v1607
    %2249 = vmatpush1.msra.mxu0 %v1606
    %2250 = vmatprep.subr.mxu0 %v1613
    %2251 = vmatpush1.msra.mxu0 %v1612
    %2252 = vmatprep.subr.mxu0 %v1619
    %2253 = vmatpush1.msra.mxu0 %v1618
    %2254 = vmatprep.subr.mxu0 %v1625
    %2255 = vmatpush1.msra.mxu0 %v1624
    %2256 = vmatprep.subr.mxu0 %v1631
    %2257 = vmatpush1.msra.mxu0 %v1630
    %2258 = vmatprep.subr.mxu0 %v1637
    %2259 = vmatpush1.msra.mxu0 %v1636
    %2260 = vmatprep.subr.mxu0 %v1643
    %2261 = vmatpush1.msra.mxu0 %v1642
    %2262 = vmatprep.subr.mxu0 %v1649
    %2263 = vmatpush1.msra.mxu0 %v1648
    %2264 = vmatprep.subr.mxu0 %v1655
    %2265 = vmatpush1.msra.mxu0 %v1654
    %2266 = vmatprep.subr.mxu0 %v1661
    %2267 = vmatpush1.msra.mxu0 %v1660
    %2268 = vmatprep.subr.mxu0 %v1667
    %2269 = vmatpush1.msra.mxu0 %v1666
    %2270 = vmatprep.subr.mxu0 %v1673
    %2271 = vmatpush1.msra.mxu0 %v1672
    %2272 = vmatprep.subr.mxu0 %v1679
    %2273 = vmatpush1.msra.mxu0 %v1678
    %2274 = vmatprep.subr.mxu0 0.0
    %2275 = vmatpush1.msra.mxu0 0.0
    %2276 = vmatprep.subr.mxu0 0.0
    %2277 = vmatpush1.msra.mxu0 0.0
    %2278 = vmatprep.subr.mxu0 0.0
    %2279 = vmatpush1.msra.mxu0 0.0
    %2280 = vmatprep.subr.mxu0 0.0
    %2281 = vmatpush1.msra.mxu0 0.0
    %2282 = vmatprep.subr.mxu0 0.0
    %2283 = vmatpush1.msra.mxu0 0.0
    %2284 = vmatprep.subr.mxu0 0.0
    %2285 = vmatpush1.msra.mxu0 0.0
    %2286 = vmatprep.subr.mxu0 0.0
    %2287 = vmatpush1.msra.mxu0 0.0
    %2288 = vmatprep.subr.mxu0 0.0
    %2289 = vmatpush1.msra.mxu0 0.0
    %2290 = vmatprep.subr.mxu0 0.0
    %2291 = vmatpush1.msra.mxu0 0.0
    %2292 = vmatprep.subr.mxu0 0.0
    %2293 = vmatpush1.msra.mxu0 0.0
    %2294 = vmatprep.subr.mxu0 0.0
    %2295 = vmatpush1.msra.mxu0 0.0
    %2296 = vmatprep.subr.mxu0 0.0
    %2297 = vmatpush1.msra.mxu0 0.0
    %2298 = vmatprep.subr.mxu0 0.0
    %2299 = vmatpush1.msra.mxu0 0.0
    %2300 = vmatprep.subr.mxu0 0.0
    %2301 = vmatpush1.msra.mxu0 0.0
    %2302 = vmatprep.subr.mxu0 0.0
    %2303 = vmatpush1.msra.mxu0 0.0
    %2304 = vmatprep.subr.mxu0 0.0
    %2305 = vmatpush1.msra.mxu0 0.0
    %2306 = vmatprep.mubr.f32.mxu0 0.0
    %2307 = vmatmul.mubr.f32.gmra.mrb[0].mxu0 %v2170
    %v2308 = vpop.f32.mrb[0].mxu0
    %v2309 = vadd.f32 0.0, %v2308
    %v2310 = vpop.f32.mrb[0].mxu0
    %v2311 = vadd.f32 0.0, %v2310
    %2312 = vdwg.mxu0
    %2313 = vmatprep.subr.mxu0 %v1591
    %2314 = vmatpush1.msra.mxu0 %v1590
    %2315 = vmatprep.subr.mxu0 %v1597
    %2316 = vmatpush1.msra.mxu0 %v1596
    %2317 = vmatprep.subr.mxu0 %v1603
    %2318 = vmatpush1.msra.mxu0 %v1602
    %2319 = vmatprep.subr.mxu0 %v1609
    %2320 = vmatpush1.msra.mxu0 %v1608
    %2321 = vmatprep.subr.mxu0 %v1615
    %2322 = vmatpush1.msra.mxu0 %v1614
    %2323 = vmatprep.subr.mxu0 %v1621
    %2324 = vmatpush1.msra.mxu0 %v1620
    %2325 = vmatprep.subr.mxu0 %v1627
    %2326 = vmatpush1.msra.mxu0 %v1626
    %2327 = vmatprep.subr.mxu0 %v1633
    %2328 = vmatpush1.msra.mxu0 %v1632
    %2329 = vmatprep.subr.mxu0 %v1639
    %2330 = vmatpush1.msra.mxu0 %v1638
    %2331 = vmatprep.subr.mxu0 %v1645
    %2332 = vmatpush1.msra.mxu0 %v1644
    %2333 = vmatprep.subr.mxu0 %v1651
    %2334 = vmatpush1.msra.mxu0 %v1650
    %2335 = vmatprep.subr.mxu0 %v1657
    %2336 = vmatpush1.msra.mxu0 %v1656
    %2337 = vmatprep.subr.mxu0 %v1663
    %2338 = vmatpush1.msra.mxu0 %v1662
    %2339 = vmatprep.subr.mxu0 %v1669
    %2340 = vmatpush1.msra.mxu0 %v1668
    %2341 = vmatprep.subr.mxu0 %v1675
    %2342 = vmatpush1.msra.mxu0 %v1674
    %2343 = vmatprep.subr.mxu0 %v1681
    %2344 = vmatpush1.msra.mxu0 %v1680
    %2345 = vmatprep.subr.mxu0 0.0
    %2346 = vmatpush1.msra.mxu0 0.0
    %2347 = vmatprep.subr.mxu0 0.0
    %2348 = vmatpush1.msra.mxu0 0.0
    %2349 = vmatprep.subr.mxu0 0.0
    %2350 = vmatpush1.msra.mxu0 0.0
    %2351 = vmatprep.subr.mxu0 0.0
    %2352 = vmatpush1.msra.mxu0 0.0
    %2353 = vmatprep.subr.mxu0 0.0
    %2354 = vmatpush1.msra.mxu0 0.0
    %2355 = vmatprep.subr.mxu0 0.0
    %2356 = vmatpush1.msra.mxu0 0.0
    %2357 = vmatprep.subr.mxu0 0.0
    %2358 = vmatpush1.msra.mxu0 0.0
    %2359 = vmatprep.subr.mxu0 0.0
    %2360 = vmatpush1.msra.mxu0 0.0
    %2361 = vmatprep.subr.mxu0 0.0
    %2362 = vmatpush1.msra.mxu0 0.0
    %2363 = vmatprep.subr.mxu0 0.0
    %2364 = vmatpush1.msra.mxu0 0.0
    %2365 = vmatprep.subr.mxu0 0.0
    %2366 = vmatpush1.msra.mxu0 0.0
    %2367 = vmatprep.subr.mxu0 0.0
    %2368 = vmatpush1.msra.mxu0 0.0
    %2369 = vmatprep.subr.mxu0 0.0
    %2370 = vmatpush1.msra.mxu0 0.0
    %2371 = vmatprep.subr.mxu0 0.0
    %2372 = vmatpush1.msra.mxu0 0.0
    %2373 = vmatprep.subr.mxu0 0.0
    %2374 = vmatpush1.msra.mxu0 0.0
    %2375 = vmatprep.subr.mxu0 0.0
    %2376 = vmatpush1.msra.mxu0 0.0
    %2377 = vmatprep.mubr.f32.mxu0 0.0
    %2378 = vmatmul.mubr.f32.gmra.mrb[0].mxu0 %v2170
    %v2379 = vpop.f32.mrb[0].mxu0
    %v2380 = vadd.f32 0.0, %v2379
    %v2381 = vpop.f32.mrb[0].mxu0
    %v2382 = vadd.f32 0.0, %v2381
    %2383 = vdwg.mxu0
    %v2384 = vadd.f32 %v2238, %v1583
    %v2385 = vadd.f32 %v2240, %v1584
    %v2386 = vadd.f32 %v2309, %v1585
    %v2387 = vadd.f32 %v2311, %v1903
    %v2388 = vadd.f32 %v2380, %v1907
    %v2389 = vadd.f32 %v2382, %v1911
    %v2390 = vadd.f32 %v2384, %v2387
    %v2391 = vmul.f32 %v2390, 0.5
    %v2392 = vtanh.pop %v2391
    %v2393 = vadd.f32 %v2392, 1.0
    %v2394 = vmul.f32 %v2393, 0.5
    %v2395 = vadd.f32 %v2385, %v2388
    %v2396 = vmul.f32 %v2395, 0.5
    %v2397 = vtanh.pop %v2396
    %v2398 = vadd.f32 %v2397, 1.0
    %v2399 = vmul.f32 %v2398, 0.5
    %v2400 = vmul.f32 %v2394, %v2389
    %v2401 = vadd.f32 %v2386, %v2400
    %v2402 = vtanh.pop %v2401
    %v2403 = vsub.f32 1.0, %v2399
    %v2404 = vmul.f32 %v2403, %v2402
    %v2405 = vmul.f32 %v2399, %v2170
    %v2406 = vadd.f32 %v2404, %v2405
    %2407 = vmatprep.subr.mxu0 %v1587
    %2408 = vmatpush1.msra.mxu0 %v1586
    %2409 = vmatprep.subr.mxu0 %v1593
    %2410 = vmatpush1.msra.mxu0 %v1592
    %2411 = vmatprep.subr.mxu0 %v1599
    %2412 = vmatpush1.msra.mxu0 %v1598
    %2413 = vmatprep.subr.mxu0 %v1605
    %2414 = vmatpush1.msra.mxu0 %v1604
    %2415 = vmatprep.subr.mxu0 %v1611
    %2416 = vmatpush1.msra.mxu0 %v1610
    %2417 = vmatprep.subr.mxu0 %v1617
    %2418 = vmatpush1.msra.mxu0 %v1616
    %2419 = vmatprep.subr.mxu0 %v1623
    %2420 = vmatpush1.msra.mxu0 %v1622
    %2421 = vmatprep.subr.mxu0 %v1629
    %2422 = vmatpush1.msra.mxu0 %v1628
    %2423 = vmatprep.subr.mxu0 %v1635
    %2424 = vmatpush1.msra.mxu0 %v1634
    %2425 = vmatprep.subr.mxu0 %v1641
    %2426 = vmatpush1.msra.mxu0 %v1640
    %2427 = vmatprep.subr.mxu0 %v1647
    %2428 = vmatpush1.msra.mxu0 %v1646
    %2429 = vmatprep.subr.mxu0 %v1653
    %2430 = vmatpush1.msra.mxu0 %v1652
    %2431 = vmatprep.subr.mxu0 %v1659
    %2432 = vmatpush1.msra.mxu0 %v1658
    %2433 = vmatprep.subr.mxu0 %v1665
    %2434 = vmatpush1.msra.mxu0 %v1664
    %2435 = vmatprep.subr.mxu0 %v1671
    %2436 = vmatpush1.msra.mxu0 %v1670
    %2437 = vmatprep.subr.mxu0 %v1677
    %2438 = vmatpush1.msra.mxu0 %v1676
    %2439 = vmatprep.subr.mxu0 0.0
    %2440 = vmatpush1.msra.mxu0 0.0
    %2441 = vmatprep.subr.mxu0 0.0
    %2442 = vmatpush1.msra.mxu0 0.0
    %2443 = vmatprep.subr.mxu0 0.0
    %2444 = vmatpush1.msra.mxu0 0.0
    %2445 = vmatprep.subr.mxu0 0.0
    %2446 = vmatpush1.msra.mxu0 0.0
    %2447 = vmatprep.subr.mxu0 0.0
    %2448 = vmatpush1.msra.mxu0 0.0
    %2449 = vmatprep.subr.mxu0 0.0
    %2450 = vmatpush1.msra.mxu0 0.0
    %2451 = vmatprep.subr.mxu0 0.0
    %2452 = vmatpush1.msra.mxu0 0.0
    %2453 = vmatprep.subr.mxu0 0.0
    %2454 = vmatpush1.msra.mxu0 0.0
    %2455 = vmatprep.subr.mxu0 0.0
    %2456 = vmatpush1.msra.mxu0 0.0
    %2457 = vmatprep.subr.mxu0 0.0
    %2458 = vmatpush1.msra.mxu0 0.0
    %2459 = vmatprep.subr.mxu0 0.0
    %2460 = vmatpush1.msra.mxu0 0.0
    %2461 = vmatprep.subr.mxu0 0.0
    %2462 = vmatpush1.msra.mxu0 0.0
    %2463 = vmatprep.subr.mxu0 0.0
    %2464 = vmatpush1.msra.mxu0 0.0
    %2465 = vmatprep.subr.mxu0 0.0
    %2466 = vmatpush1.msra.mxu0 0.0
    %2467 = vmatprep.subr.mxu0 0.0
    %2468 = vmatpush1.msra.mxu0 0.0
    %2469 = vmatprep.subr.mxu0 0.0
    %2470 = vmatpush1.msra.mxu0 0.0
    %2471 = vmatprep.mubr.f32.mxu0 0.0
    %2472 = vmatmul.mubr.f32.gmra.mrb[0].mxu0 %v2406
    %v2473 = vpop.f32.mrb[0].mxu0
    %v2474 = vadd.f32 0.0, %v2473
    %v2475 = vpop.f32.mrb[0].mxu0
    %v2476 = vadd.f32 0.0, %v2475
    %2477 = vdwg.mxu0
    %2478 = vmatprep.subr.mxu0 %v1589
    %2479 = vmatpush1.msra.mxu0 %v1588
    %2480 = vmatprep.subr.mxu0 %v1595
    %2481 = vmatpush1.msra.mxu0 %v1594
    %2482 = vmatprep.subr.mxu0 %v1601
    %2483 = vmatpush1.msra.mxu0 %v1600
    %2484 = vmatprep.subr.mxu0 %v1607
    %2485 = vmatpush1.msra.mxu0 %v1606
    %2486 = vmatprep.subr.mxu0 %v1613
    %2487 = vmatpush1.msra.mxu0 %v1612
    %2488 = vmatprep.subr.mxu0 %v1619
    %2489 = vmatpush1.msra.mxu0 %v1618
    %2490 = vmatprep.subr.mxu0 %v1625
    %2491 = vmatpush1.msra.mxu0 %v1624
    %2492 = vmatprep.subr.mxu0 %v1631
    %2493 = vmatpush1.msra.mxu0 %v1630
    %2494 = vmatprep.subr.mxu0 %v1637
    %2495 = vmatpush1.msra.mxu0 %v1636
    %2496 = vmatprep.subr.mxu0 %v1643
    %2497 = vmatpush1.msra.mxu0 %v1642
    %2498 = vmatprep.subr.mxu0 %v1649
    %2499 = vmatpush1.msra.mxu0 %v1648
    %2500 = vmatprep.subr.mxu0 %v1655
    %2501 = vmatpush1.msra.mxu0 %v1654
    %2502 = vmatprep.subr.mxu0 %v1661
    %2503 = vmatpush1.msra.mxu0 %v1660
    %2504 = vmatprep.subr.mxu0 %v1667
    %2505 = vmatpush1.msra.mxu0 %v1666
    %2506 = vmatprep.subr.mxu0 %v1673
    %2507 = vmatpush1.msra.mxu0 %v1672
    %2508 = vmatprep.subr.mxu0 %v1679
    %2509 = vmatpush1.msra.mxu0 %v1678
    %2510 = vmatprep.subr.mxu0 0.0
    %2511 = vmatpush1.msra.mxu0 0.0
    %2512 = vmatprep.subr.mxu0 0.0
    %2513 = vmatpush1.msra.mxu0 0.0
    %2514 = vmatprep.subr.mxu0 0.0
    %2515 = vmatpush1.msra.mxu0 0.0
    %2516 = vmatprep.subr.mxu0 0.0
    %2517 = vmatpush1.msra.mxu0 0.0
    %2518 = vmatprep.subr.mxu0 0.0
    %2519 = vmatpush1.msra.mxu0 0.0
    %2520 = vmatprep.subr.mxu0 0.0
    %2521 = vmatpush1.msra.mxu0 0.0
    %2522 = vmatprep.subr.mxu0 0.0
    %2523 = vmatpush1.msra.mxu0 0.0
    %2524 = vmatprep.subr.mxu0 0.0
    %2525 = vmatpush1.msra.mxu0 0.0
    %2526 = vmatprep.subr.mxu0 0.0
    %2527 = vmatpush1.msra.mxu0 0.0
    %2528 = vmatprep.subr.mxu0 0.0
    %2529 = vmatpush1.msra.mxu0 0.0
    %2530 = vmatprep.subr.mxu0 0.0
    %2531 = vmatpush1.msra.mxu0 0.0
    %2532 = vmatprep.subr.mxu0 0.0
    %2533 = vmatpush1.msra.mxu0 0.0
    %2534 = vmatprep.subr.mxu0 0.0
    %2535 = vmatpush1.msra.mxu0 0.0
    %2536 = vmatprep.subr.mxu0 0.0
    %2537 = vmatpush1.msra.mxu0 0.0
    %2538 = vmatprep.subr.mxu0 0.0
    %2539 = vmatpush1.msra.mxu0 0.0
    %2540 = vmatprep.subr.mxu0 0.0
    %2541 = vmatpush1.msra.mxu0 0.0
    %2542 = vmatprep.mubr.f32.mxu0 0.0
    %2543 = vmatmul.mubr.f32.gmra.mrb[0].mxu0 %v2406
    %v2544 = vpop.f32.mrb[0].mxu0
    %v2545 = vadd.f32 0.0, %v2544
    %v2546 = vpop.f32.mrb[0].mxu0
    %v2547 = vadd.f32 0.0, %v2546
    %2548 = vdwg.mxu0
    %2549 = vmatprep.subr.mxu0 %v1591
    %2550 = vmatpush1.msra.mxu0 %v1590
    %2551 = vmatprep.subr.mxu0 %v1597
    %2552 = vmatpush1.msra.mxu0 %v1596
    %2553 = vmatprep.subr.mxu0 %v1603
    %2554 = vmatpush1.msra.mxu0 %v1602
    %2555 = vmatprep.subr.mxu0 %v1609
    %2556 = vmatpush1.msra.mxu0 %v1608
    %2557 = vmatprep.subr.mxu0 %v1615
    %2558 = vmatpush1.msra.mxu0 %v1614
    %2559 = vmatprep.subr.mxu0 %v1621
    %2560 = vmatpush1.msra.mxu0 %v1620
    %2561 = vmatprep.subr.mxu0 %v1627
    %2562 = vmatpush1.msra.mxu0 %v1626
    %2563 = vmatprep.subr.mxu0 %v1633
    %2564 = vmatpush1.msra.mxu0 %v1632
    %2565 = vmatprep.subr.mxu0 %v1639
    %2566 = vmatpush1.msra.mxu0 %v1638
    %2567 = vmatprep.subr.mxu0 %v1645
    %2568 = vmatpush1.msra.mxu0 %v1644
    %2569 = vmatprep.subr.mxu0 %v1651
    %2570 = vmatpush1.msra.mxu0 %v1650
    %2571 = vmatprep.subr.mxu0 %v1657
    %2572 = vmatpush1.msra.mxu0 %v1656
    %2573 = vmatprep.subr.mxu0 %v1663
    %2574 = vmatpush1.msra.mxu0 %v1662
    %2575 = vmatprep.subr.mxu0 %v1669
    %2576 = vmatpush1.msra.mxu0 %v1668
    %2577 = vmatprep.subr.mxu0 %v1675
    %2578 = vmatpush1.msra.mxu0 %v1674
    %2579 = vmatprep.subr.mxu0 %v1681
    %2580 = vmatpush1.msra.mxu0 %v1680
    %2581 = vmatprep.subr.mxu0 0.0
    %2582 = vmatpush1.msra.mxu0 0.0
    %2583 = vmatprep.subr.mxu0 0.0
    %2584 = vmatpush1.msra.mxu0 0.0
    %2585 = vmatprep.subr.mxu0 0.0
    %2586 = vmatpush1.msra.mxu0 0.0
    %2587 = vmatprep.subr.mxu0 0.0
    %2588 = vmatpush1.msra.mxu0 0.0
    %2589 = vmatprep.subr.mxu0 0.0
    %2590 = vmatpush1.msra.mxu0 0.0
    %2591 = vmatprep.subr.mxu0 0.0
    %2592 = vmatpush1.msra.mxu0 0.0
    %2593 = vmatprep.subr.mxu0 0.0
    %2594 = vmatpush1.msra.mxu0 0.0
    %2595 = vmatprep.subr.mxu0 0.0
    %2596 = vmatpush1.msra.mxu0 0.0
    %2597 = vmatprep.subr.mxu0 0.0
    %2598 = vmatpush1.msra.mxu0 0.0
    %2599 = vmatprep.subr.mxu0 0.0
    %2600 = vmatpush1.msra.mxu0 0.0
    %2601 = vmatprep.subr.mxu0 0.0
    %2602 = vmatpush1.msra.mxu0 0.0
    %2603 = vmatprep.subr.mxu0 0.0
    %2604 = vmatpush1.msra.mxu0 0.0
    %2605 = vmatprep.subr.mxu0 0.0
    %2606 = vmatpush1.msra.mxu0 0.0
    %2607 = vmatprep.subr.mxu0 0.0
    %2608 = vmatpush1.msra.mxu0 0.0
    %2609 = vmatprep.subr.mxu0 0.0
    %2610 = vmatpush1.msra.mxu0 0.0
    %2611 = vmatprep.subr.mxu0 0.0
    %2612 = vmatpush1.msra.mxu0 0.0
    %2613 = vmatprep.mubr.f32.mxu0 0.0
    %2614 = vmatmul.mubr.f32.gmra.mrb[0].mxu0 %v2406
    %v2615 = vpop.f32.mrb[0].mxu0
    %v2616 = vadd.f32 0.0, %v2615
    %v2617 = vpop.f32.mrb[0].mxu0
    %v2618 = vadd.f32 0.0, %v2617
    %2619 = vdwg.mxu0
    %v2620 = vadd.f32 %v2474, %v1583
    %v2621 = vadd.f32 %v2476, %v1584
    %v2622 = vadd.f32 %v2545, %v1585
    %v2623 = vadd.f32 %v2547, %v1903
    %v2624 = vadd.f32 %v2616, %v1907
    %v2625 = vadd.f32 %v2618, %v1911
    %v2626 = vadd.f32 %v2620, %v2623
    %v2627 = vmul.f32 %v2626, 0.5
    %v2628 = vtanh.pop %v2627
    %v2629 = vadd.f32 %v2628, 1.0
    %v2630 = vmul.f32 %v2629, 0.5
    %v2631 = vadd.f32 %v2621, %v2624
    %v2632 = vmul.f32 %v2631, 0.5
    %v2633 = vtanh.pop %v2632
    %v2634 = vadd.f32 %v2633, 1.0
    %v2635 = vmul.f32 %v2634, 0.5
    %v2636 = vmul.f32 %v2630, %v2625
    %v2637 = vadd.f32 %v2622, %v2636
    %v2638 = vtanh.pop %v2637
    %v2639 = vsub.f32 1.0, %v2635
    %v2640 = vmul.f32 %v2639, %v2638
    %v2641 = vmul.f32 %v2635, %v2406
    %v2642 = vadd.f32 %v2640, %v2641
    %2643 = vmatprep.subr.mxu0 %v1587
    %2644 = vmatpush1.msra.mxu0 %v1586
    %2645 = vmatprep.subr.mxu0 %v1593
    %2646 = vmatpush1.msra.mxu0 %v1592
    %2647 = vmatprep.subr.mxu0 %v1599
    %2648 = vmatpush1.msra.mxu0 %v1598
    %2649 = vmatprep.subr.mxu0 %v1605
    %2650 = vmatpush1.msra.mxu0 %v1604
    %2651 = vmatprep.subr.mxu0 %v1611
    %2652 = vmatpush1.msra.mxu0 %v1610
    %2653 = vmatprep.subr.mxu0 %v1617
    %2654 = vmatpush1.msra.mxu0 %v1616
    %2655 = vmatprep.subr.mxu0 %v1623
    %2656 = vmatpush1.msra.mxu0 %v1622
    %2657 = vmatprep.subr.mxu0 %v1629
    %2658 = vmatpush1.msra.mxu0 %v1628
    %2659 = vmatprep.subr.mxu0 %v1635
    %2660 = vmatpush1.msra.mxu0 %v1634
    %2661 = vmatprep.subr.mxu0 %v1641
    %2662 = vmatpush1.msra.mxu0 %v1640
    %2663 = vmatprep.subr.mxu0 %v1647
    %2664 = vmatpush1.msra.mxu0 %v1646
    %2665 = vmatprep.subr.mxu0 %v1653
    %2666 = vmatpush1.msra.mxu0 %v1652
    %2667 = vmatprep.subr.mxu0 %v1659
    %2668 = vmatpush1.msra.mxu0 %v1658
    %2669 = vmatprep.subr.mxu0 %v1665
    %2670 = vmatpush1.msra.mxu0 %v1664
    %2671 = vmatprep.subr.mxu0 %v1671
    %2672 = vmatpush1.msra.mxu0 %v1670
    %2673 = vmatprep.subr.mxu0 %v1677
    %2674 = vmatpush1.msra.mxu0 %v1676
    %2675 = vmatprep.subr.mxu0 0.0
    %2676 = vmatpush1.msra.mxu0 0.0
    %2677 = vmatprep.subr.mxu0 0.0
    %2678 = vmatpush1.msra.mxu0 0.0
    %2679 = vmatprep.subr.mxu0 0.0
    %2680 = vmatpush1.msra.mxu0 0.0
    %2681 = vmatprep.subr.mxu0 0.0
    %2682 = vmatpush1.msra.mxu0 0.0
    %2683 = vmatprep.subr.mxu0 0.0
    %2684 = vmatpush1.msra.mxu0 0.0
    %2685 = vmatprep.subr.mxu0 0.0
    %2686 = vmatpush1.msra.mxu0 0.0
    %2687 = vmatprep.subr.mxu0 0.0
    %2688 = vmatpush1.msra.mxu0 0.0
    %2689 = vmatprep.subr.mxu0 0.0
    %2690 = vmatpush1.msra.mxu0 0.0
    %2691 = vmatprep.subr.mxu0 0.0
    %2692 = vmatpush1.msra.mxu0 0.0
    %2693 = vmatprep.subr.mxu0 0.0
    %2694 = vmatpush1.msra.mxu0 0.0
    %2695 = vmatprep.subr.mxu0 0.0
    %2696 = vmatpush1.msra.mxu0 0.0
    %2697 = vmatprep.subr.mxu0 0.0
    %2698 = vmatpush1.msra.mxu0 0.0
    %2699 = vmatprep.subr.mxu0 0.0
    %2700 = vmatpush1.msra.mxu0 0.0
    %2701 = vmatprep.subr.mxu0 0.0
    %2702 = vmatpush1.msra.mxu0 0.0
    %2703 = vmatprep.subr.mxu0 0.0
    %2704 = vmatpush1.msra.mxu0 0.0
    %2705 = vmatprep.subr.mxu0 0.0
    %2706 = vmatpush1.msra.mxu0 0.0
    %2707 = vmatprep.mubr.f32.mxu0 0.0
    %2708 = vmatmul.mubr.f32.gmra.mrb[0].mxu0 %v2642
    %v2709 = vpop.f32.mrb[0].mxu0
    %v2710 = vadd.f32 0.0, %v2709
    %v2711 = vpop.f32.mrb[0].mxu0
    %v2712 = vadd.f32 0.0, %v2711
    %2713 = vdwg.mxu0
    %2714 = vmatprep.subr.mxu0 %v1589
    %2715 = vmatpush1.msra.mxu0 %v1588
    %2716 = vmatprep.subr.mxu0 %v1595
    %2717 = vmatpush1.msra.mxu0 %v1594
    %2718 = vmatprep.subr.mxu0 %v1601
    %2719 = vmatpush1.msra.mxu0 %v1600
    %2720 = vmatprep.subr.mxu0 %v1607
    %2721 = vmatpush1.msra.mxu0 %v1606
    %2722 = vmatprep.subr.mxu0 %v1613
    %2723 = vmatpush1.msra.mxu0 %v1612
    %2724 = vmatprep.subr.mxu0 %v1619
    %2725 = vmatpush1.msra.mxu0 %v1618
    %2726 = vmatprep.subr.mxu0 %v1625
    %2727 = vmatpush1.msra.mxu0 %v1624
    %2728 = vmatprep.subr.mxu0 %v1631
    %2729 = vmatpush1.msra.mxu0 %v1630
    %2730 = vmatprep.subr.mxu0 %v1637
    %2731 = vmatpush1.msra.mxu0 %v1636
    %2732 = vmatprep.subr.mxu0 %v1643
    %2733 = vmatpush1.msra.mxu0 %v1642
    %2734 = vmatprep.subr.mxu0 %v1649
    %2735 = vmatpush1.msra.mxu0 %v1648
    %2736 = vmatprep.subr.mxu0 %v1655
    %2737 = vmatpush1.msra.mxu0 %v1654
    %2738 = vmatprep.subr.mxu0 %v1661
    %2739 = vmatpush1.msra.mxu0 %v1660
    %2740 = vmatprep.subr.mxu0 %v1667
    %2741 = vmatpush1.msra.mxu0 %v1666
    %2742 = vmatprep.subr.mxu0 %v1673
    %2743 = vmatpush1.msra.mxu0 %v1672
    %2744 = vmatprep.subr.mxu0 %v1679
    %2745 = vmatpush1.msra.mxu0 %v1678
    %2746 = vmatprep.subr.mxu0 0.0
    %2747 = vmatpush1.msra.mxu0 0.0
    %2748 = vmatprep.subr.mxu0 0.0
    %2749 = vmatpush1.msra.mxu0 0.0
    %2750 = vmatprep.subr.mxu0 0.0
    %2751 = vmatpush1.msra.mxu0 0.0
    %2752 = vmatprep.subr.mxu0 0.0
    %2753 = vmatpush1.msra.mxu0 0.0
    %2754 = vmatprep.subr.mxu0 0.0
    %2755 = vmatpush1.msra.mxu0 0.0
    %2756 = vmatprep.subr.mxu0 0.0
    %2757 = vmatpush1.msra.mxu0 0.0
    %2758 = vmatprep.subr.mxu0 0.0
    %2759 = vmatpush1.msra.mxu0 0.0
    %2760 = vmatprep.subr.mxu0 0.0
    %2761 = vmatpush1.msra.mxu0 0.0
    %2762 = vmatprep.subr.mxu0 0.0
    %2763 = vmatpush1.msra.mxu0 0.0
    %2764 = vmatprep.subr.mxu0 0.0
    %2765 = vmatpush1.msra.mxu0 0.0
    %2766 = vmatprep.subr.mxu0 0.0
    %2767 = vmatpush1.msra.mxu0 0.0
    %2768 = vmatprep.subr.mxu0 0.0
    %2769 = vmatpush1.msra.mxu0 0.0
    %2770 = vmatprep.subr.mxu0 0.0
    %2771 = vmatpush1.msra.mxu0 0.0
    %2772 = vmatprep.subr.mxu0 0.0
    %2773 = vmatpush1.msra.mxu0 0.0
    %2774 = vmatprep.subr.mxu0 0.0
    %2775 = vmatpush1.msra.mxu0 0.0
    %2776 = vmatprep.subr.mxu0 0.0
    %2777 = vmatpush1.msra.mxu0 0.0
    %2778 = vmatprep.mubr.f32.mxu0 0.0
    %2779 = vmatmul.mubr.f32.gmra.mrb[0].mxu0 %v2642
    %v2780 = vpop.f32.mrb[0].mxu0
    %v2781 = vadd.f32 0.0, %v2780
    %v2782 = vpop.f32.mrb[0].mxu0
    %v2783 = vadd.f32 0.0, %v2782
    %2784 = vdwg.mxu0
    %2785 = vmatprep.subr.mxu0 %v1591
    %2786 = vmatpush1.msra.mxu0 %v1590
    %2787 = vmatprep.subr.mxu0 %v1597
    %2788 = vmatpush1.msra.mxu0 %v1596
    %2789 = vmatprep.subr.mxu0 %v1603
    %2790 = vmatpush1.msra.mxu0 %v1602
    %2791 = vmatprep.subr.mxu0 %v1609
    %2792 = vmatpush1.msra.mxu0 %v1608
    %2793 = vmatprep.subr.mxu0 %v1615
    %2794 = vmatpush1.msra.mxu0 %v1614
    %2795 = vmatprep.subr.mxu0 %v1621
    %2796 = vmatpush1.msra.mxu0 %v1620
    %2797 = vmatprep.subr.mxu0 %v1627
    %2798 = vmatpush1.msra.mxu0 %v1626
    %2799 = vmatprep.subr.mxu0 %v1633
    %2800 = vmatpush1.msra.mxu0 %v1632
    %2801 = vmatprep.subr.mxu0 %v1639
    %2802 = vmatpush1.msra.mxu0 %v1638
    %2803 = vmatprep.subr.mxu0 %v1645
    %2804 = vmatpush1.msra.mxu0 %v1644
    %2805 = vmatprep.subr.mxu0 %v1651
    %2806 = vmatpush1.msra.mxu0 %v1650
    %2807 = vmatprep.subr.mxu0 %v1657
    %2808 = vmatpush1.msra.mxu0 %v1656
    %2809 = vmatprep.subr.mxu0 %v1663
    %2810 = vmatpush1.msra.mxu0 %v1662
    %2811 = vmatprep.subr.mxu0 %v1669
    %2812 = vmatpush1.msra.mxu0 %v1668
    %2813 = vmatprep.subr.mxu0 %v1675
    %2814 = vmatpush1.msra.mxu0 %v1674
    %2815 = vmatprep.subr.mxu0 %v1681
    %2816 = vmatpush1.msra.mxu0 %v1680
    %2817 = vmatprep.subr.mxu0 0.0
    %2818 = vmatpush1.msra.mxu0 0.0
    %2819 = vmatprep.subr.mxu0 0.0
    %2820 = vmatpush1.msra.mxu0 0.0
    %2821 = vmatprep.subr.mxu0 0.0
    %2822 = vmatpush1.msra.mxu0 0.0
    %2823 = vmatprep.subr.mxu0 0.0
    %2824 = vmatpush1.msra.mxu0 0.0
    %2825 = vmatprep.subr.mxu0 0.0
    %2826 = vmatpush1.msra.mxu0 0.0
    %2827 = vmatprep.subr.mxu0 0.0
    %2828 = vmatpush1.msra.mxu0 0.0
    %2829 = vmatprep.subr.mxu0 0.0
    %2830 = vmatpush1.msra.mxu0 0.0
    %2831 = vmatprep.subr.mxu0 0.0
    %2832 = vmatpush1.msra.mxu0 0.0
    %2833 = vmatprep.subr.mxu0 0.0
    %2834 = vmatpush1.msra.mxu0 0.0
    %2835 = vmatprep.subr.mxu0 0.0
    %2836 = vmatpush1.msra.mxu0 0.0
    %2837 = vmatprep.subr.mxu0 0.0
    %2838 = vmatpush1.msra.mxu0 0.0
    %2839 = vmatprep.subr.mxu0 0.0
    %2840 = vmatpush1.msra.mxu0 0.0
    %2841 = vmatprep.subr.mxu0 0.0
    %2842 = vmatpush1.msra.mxu0 0.0
    %2843 = vmatprep.subr.mxu0 0.0
    %2844 = vmatpush1.msra.mxu0 0.0
    %2845 = vmatprep.subr.mxu0 0.0
    %2846 = vmatpush1.msra.mxu0 0.0
    %2847 = vmatprep.subr.mxu0 0.0
    %2848 = vmatpush1.msra.mxu0 0.0
    %2849 = vmatprep.mubr.f32.mxu0 0.0
    %2850 = vmatmul.mubr.f32.gmra.mrb[0].mxu0 %v2642
    %v2851 = vpop.f32.mrb[0].mxu0
    %v2852 = vadd.f32 0.0, %v2851
    %v2853 = vpop.f32.mrb[0].mxu0
    %v2854 = vadd.f32 0.0, %v2853
    %2855 = vdwg.mxu0
    %v2856 = vadd.f32 %v2710, %v1583
    %v2857 = vadd.f32 %v2712, %v1584
    %v2858 = vadd.f32 %v2781, %v1585
    %v2859 = vadd.f32 %v2783, %v1903
    %v2860 = vadd.f32 %v2852, %v1907
    %v2861 = vadd.f32 %v2854, %v1911
    %v2862 = vadd.f32 %v2856, %v2859
    %v2863 = vmul.f32 %v2862, 0.5
    %v2864 = vtanh.pop %v2863
    %v2865 = vadd.f32 %v2864, 1.0
    %v2866 = vmul.f32 %v2865, 0.5
    %v2867 = vadd.f32 %v2857, %v2860
    %v2868 = vmul.f32 %v2867, 0.5
    %v2869 = vtanh.pop %v2868
    %v2870 = vadd.f32 %v2869, 1.0
    %v2871 = vmul.f32 %v2870, 0.5
    %v2872 = vmul.f32 %v2866, %v2861
    %v2873 = vadd.f32 %v2858, %v2872
    %v2874 = vtanh.pop %v2873
    %v2875 = vsub.f32 1.0, %v2871
    %v2876 = vmul.f32 %v2875, %v2874
    %v2877 = vmul.f32 %v2871, %v2642
    %v2878 = vadd.f32 %v2876, %v2877
    %2879 = vmatprep.subr.mxu0 %v1587
    %2880 = vmatpush1.msra.mxu0 %v1586
    %2881 = vmatprep.subr.mxu0 %v1593
    %2882 = vmatpush1.msra.mxu0 %v1592
    %2883 = vmatprep.subr.mxu0 %v1599
    %2884 = vmatpush1.msra.mxu0 %v1598
    %2885 = vmatprep.subr.mxu0 %v1605
    %2886 = vmatpush1.msra.mxu0 %v1604
    %2887 = vmatprep.subr.mxu0 %v1611
    %2888 = vmatpush1.msra.mxu0 %v1610
    %2889 = vmatprep.subr.mxu0 %v1617
    %2890 = vmatpush1.msra.mxu0 %v1616
    %2891 = vmatprep.subr.mxu0 %v1623
    %2892 = vmatpush1.msra.mxu0 %v1622
    %2893 = vmatprep.subr.mxu0 %v1629
    %2894 = vmatpush1.msra.mxu0 %v1628
    %2895 = vmatprep.subr.mxu0 %v1635
    %2896 = vmatpush1.msra.mxu0 %v1634
    %2897 = vmatprep.subr.mxu0 %v1641
    %2898 = vmatpush1.msra.mxu0 %v1640
    %2899 = vmatprep.subr.mxu0 %v1647
    %2900 = vmatpush1.msra.mxu0 %v1646
    %2901 = vmatprep.subr.mxu0 %v1653
    %2902 = vmatpush1.msra.mxu0 %v1652
    %2903 = vmatprep.subr.mxu0 %v1659
    %2904 = vmatpush1.msra.mxu0 %v1658
    %2905 = vmatprep.subr.mxu0 %v1665
    %2906 = vmatpush1.msra.mxu0 %v1664
    %2907 = vmatprep.subr.mxu0 %v1671
    %2908 = vmatpush1.msra.mxu0 %v1670
    %2909 = vmatprep.subr.mxu0 %v1677
    %2910 = vmatpush1.msra.mxu0 %v1676
    %2911 = vmatprep.subr.mxu0 0.0
    %2912 = vmatpush1.msra.mxu0 0.0
    %2913 = vmatprep.subr.mxu0 0.0
    %2914 = vmatpush1.msra.mxu0 0.0
    %2915 = vmatprep.subr.mxu0 0.0
    %2916 = vmatpush1.msra.mxu0 0.0
    %2917 = vmatprep.subr.mxu0 0.0
    %2918 = vmatpush1.msra.mxu0 0.0
    %2919 = vmatprep.subr.mxu0 0.0
    %2920 = vmatpush1.msra.mxu0 0.0
    %2921 = vmatprep.subr.mxu0 0.0
    %2922 = vmatpush1.msra.mxu0 0.0
    %2923 = vmatprep.subr.mxu0 0.0
    %2924 = vmatpush1.msra.mxu0 0.0
    %2925 = vmatprep.subr.mxu0 0.0
    %2926 = vmatpush1.msra.mxu0 0.0
    %2927 = vmatprep.subr.mxu0 0.0
    %2928 = vmatpush1.msra.mxu0 0.0
    %2929 = vmatprep.subr.mxu0 0.0
    %2930 = vmatpush1.msra.mxu0 0.0
    %2931 = vmatprep.subr.mxu0 0.0
    %2932 = vmatpush1.msra.mxu0 0.0
    %2933 = vmatprep.subr.mxu0 0.0
    %2934 = vmatpush1.msra.mxu0 0.0
    %2935 = vmatprep.subr.mxu0 0.0
    %2936 = vmatpush1.msra.mxu0 0.0
    %2937 = vmatprep.subr.mxu0 0.0
    %2938 = vmatpush1.msra.mxu0 0.0
    %2939 = vmatprep.subr.mxu0 0.0
    %2940 = vmatpush1.msra.mxu0 0.0
    %2941 = vmatprep.subr.mxu0 0.0
    %2942 = vmatpush1.msra.mxu0 0.0
    %2943 = vmatprep.mubr.f32.mxu0 0.0
    %2944 = vmatmul.mubr.f32.gmra.mrb[0].mxu0 %v2878
    %v2945 = vpop.f32.mrb[0].mxu0
    %v2946 = vadd.f32 0.0, %v2945
    %v2947 = vpop.f32.mrb[0].mxu0
    %v2948 = vadd.f32 0.0, %v2947
    %2949 = vdwg.mxu0
    %2950 = vmatprep.subr.mxu0 %v1589
    %2951 = vmatpush1.msra.mxu0 %v1588
    %2952 = vmatprep.subr.mxu0 %v1595
    %2953 = vmatpush1.msra.mxu0 %v1594
    %2954 = vmatprep.subr.mxu0 %v1601
    %2955 = vmatpush1.msra.mxu0 %v1600
    %2956 = vmatprep.subr.mxu0 %v1607
    %2957 = vmatpush1.msra.mxu0 %v1606
    %2958 = vmatprep.subr.mxu0 %v1613
    %2959 = vmatpush1.msra.mxu0 %v1612
    %2960 = vmatprep.subr.mxu0 %v1619
    %2961 = vmatpush1.msra.mxu0 %v1618
    %2962 = vmatprep.subr.mxu0 %v1625
    %2963 = vmatpush1.msra.mxu0 %v1624
    %2964 = vmatprep.subr.mxu0 %v1631
    %2965 = vmatpush1.msra.mxu0 %v1630
    %2966 = vmatprep.subr.mxu0 %v1637
    %2967 = vmatpush1.msra.mxu0 %v1636
    %2968 = vmatprep.subr.mxu0 %v1643
    %2969 = vmatpush1.msra.mxu0 %v1642
    %2970 = vmatprep.subr.mxu0 %v1649
    %2971 = vmatpush1.msra.mxu0 %v1648
    %2972 = vmatprep.subr.mxu0 %v1655
    %2973 = vmatpush1.msra.mxu0 %v1654
    %2974 = vmatprep.subr.mxu0 %v1661
    %2975 = vmatpush1.msra.mxu0 %v1660
    %2976 = vmatprep.subr.mxu0 %v1667
    %2977 = vmatpush1.msra.mxu0 %v1666
    %2978 = vmatprep.subr.mxu0 %v1673
    %2979 = vmatpush1.msra.mxu0 %v1672
    %2980 = vmatprep.subr.mxu0 %v1679
    %2981 = vmatpush1.msra.mxu0 %v1678
    %2982 = vmatprep.subr.mxu0 0.0
    %2983 = vmatpush1.msra.mxu0 0.0
    %2984 = vmatprep.subr.mxu0 0.0
    %2985 = vmatpush1.msra.mxu0 0.0
    %2986 = vmatprep.subr.mxu0 0.0
    %2987 = vmatpush1.msra.mxu0 0.0
    %2988 = vmatprep.subr.mxu0 0.0
    %2989 = vmatpush1.msra.mxu0 0.0
    %2990 = vmatprep.subr.mxu0 0.0
    %2991 = vmatpush1.msra.mxu0 0.0
    %2992 = vmatprep.subr.mxu0 0.0
    %2993 = vmatpush1.msra.mxu0 0.0
    %2994 = vmatprep.subr.mxu0 0.0
    %2995 = vmatpush1.msra.mxu0 0.0
    %2996 = vmatprep.subr.mxu0 0.0
    %2997 = vmatpush1.msra.mxu0 0.0
    %2998 = vmatprep.subr.mxu0 0.0
    %2999 = vmatpush1.msra.mxu0 0.0
    %3000 = vmatprep.subr.mxu0 0.0
    %3001 = vmatpush1.msra.mxu0 0.0
    %3002 = vmatprep.subr.mxu0 0.0
    %3003 = vmatpush1.msra.mxu0 0.0
    %3004 = vmatprep.subr.mxu0 0.0
    %3005 = vmatpush1.msra.mxu0 0.0
    %3006 = vmatprep.subr.mxu0 0.0
    %3007 = vmatpush1.msra.mxu0 0.0
    %3008 = vmatprep.subr.mxu0 0.0
    %3009 = vmatpush1.msra.mxu0 0.0
    %3010 = vmatprep.subr.mxu0 0.0
    %3011 = vmatpush1.msra.mxu0 0.0
    %3012 = vmatprep.subr.mxu0 0.0
    %3013 = vmatpush1.msra.mxu0 0.0
    %3014 = vmatprep.mubr.f32.mxu0 0.0
    %3015 = vmatmul.mubr.f32.gmra.mrb[0].mxu0 %v2878
    %v3016 = vpop.f32.mrb[0].mxu0
    %v3017 = vadd.f32 0.0, %v3016
    %v3018 = vpop.f32.mrb[0].mxu0
    %v3019 = vadd.f32 0.0, %v3018
    %3020 = vdwg.mxu0
    %3021 = vmatprep.subr.mxu0 %v1591
    %3022 = vmatpush1.msra.mxu0 %v1590
    %3023 = vmatprep.subr.mxu0 %v1597
    %3024 = vmatpush1.msra.mxu0 %v1596
    %3025 = vmatprep.subr.mxu0 %v1603
    %3026 = vmatpush1.msra.mxu0 %v1602
    %3027 = vmatprep.subr.mxu0 %v1609
    %3028 = vmatpush1.msra.mxu0 %v1608
    %3029 = vmatprep.subr.mxu0 %v1615
    %3030 = vmatpush1.msra.mxu0 %v1614
    %3031 = vmatprep.subr.mxu0 %v1621
    %3032 = vmatpush1.msra.mxu0 %v1620
    %3033 = vmatprep.subr.mxu0 %v1627
    %3034 = vmatpush1.msra.mxu0 %v1626
    %3035 = vmatprep.subr.mxu0 %v1633
    %3036 = vmatpush1.msra.mxu0 %v1632
    %3037 = vmatprep.subr.mxu0 %v1639
    %3038 = vmatpush1.msra.mxu0 %v1638
    %3039 = vmatprep.subr.mxu0 %v1645
    %3040 = vmatpush1.msra.mxu0 %v1644
    %3041 = vmatprep.subr.mxu0 %v1651
    %3042 = vmatpush1.msra.mxu0 %v1650
    %3043 = vmatprep.subr.mxu0 %v1657
    %3044 = vmatpush1.msra.mxu0 %v1656
    %3045 = vmatprep.subr.mxu0 %v1663
    %3046 = vmatpush1.msra.mxu0 %v1662
    %3047 = vmatprep.subr.mxu0 %v1669
    %3048 = vmatpush1.msra.mxu0 %v1668
    %3049 = vmatprep.subr.mxu0 %v1675
    %3050 = vmatpush1.msra.mxu0 %v1674
    %3051 = vmatprep.subr.mxu0 %v1681
    %3052 = vmatpush1.msra.mxu0 %v1680
    %3053 = vmatprep.subr.mxu0 0.0
    %3054 = vmatpush1.msra.mxu0 0.0
    %3055 = vmatprep.subr.mxu0 0.0
    %3056 = vmatpush1.msra.mxu0 0.0
    %3057 = vmatprep.subr.mxu0 0.0
    %3058 = vmatpush1.msra.mxu0 0.0
    %3059 = vmatprep.subr.mxu0 0.0
    %3060 = vmatpush1.msra.mxu0 0.0
    %3061 = vmatprep.subr.mxu0 0.0
    %3062 = vmatpush1.msra.mxu0 0.0
    %3063 = vmatprep.subr.mxu0 0.0
    %3064 = vmatpush1.msra.mxu0 0.0
    %3065 = vmatprep.subr.mxu0 0.0
    %3066 = vmatpush1.msra.mxu0 0.0
    %3067 = vmatprep.subr.mxu0 0.0
    %3068 = vmatpush1.msra.mxu0 0.0
    %3069 = vmatprep.subr.mxu0 0.0
    %3070 = vmatpush1.msra.mxu0 0.0
    %3071 = vmatprep.subr.mxu0 0.0
    %3072 = vmatpush1.msra.mxu0 0.0
    %3073 = vmatprep.subr.mxu0 0.0
    %3074 = vmatpush1.msra.mxu0 0.0
    %3075 = vmatprep.subr.mxu0 0.0
    %3076 = vmatpush1.msra.mxu0 0.0
    %3077 = vmatprep.subr.mxu0 0.0
    %3078 = vmatpush1.msra.mxu0 0.0
    %3079 = vmatprep.subr.mxu0 0.0
    %3080 = vmatpush1.msra.mxu0 0.0
    %3081 = vmatprep.subr.mxu0 0.0
    %3082 = vmatpush1.msra.mxu0 0.0
    %3083 = vmatprep.subr.mxu0 0.0
    %3084 = vmatpush1.msra.mxu0 0.0
    %3085 = vmatprep.mubr.f32.mxu0 0.0
    %3086 = vmatmul.mubr.f32.gmra.mrb[0].mxu0 %v2878
    %v3087 = vpop.f32.mrb[0].mxu0
    %v3088 = vadd.f32 0.0, %v3087
    %v3089 = vpop.f32.mrb[0].mxu0
    %v3090 = vadd.f32 0.0, %v3089
    %3091 = vdwg.mxu0
    %v3092 = vadd.f32 %v2946, %v1583
    %v3093 = vadd.f32 %v2948, %v1584
    %v3094 = vadd.f32 %v3017, %v1585
    %v3095 = vadd.f32 %v3019, %v1903
    %v3096 = vadd.f32 %v3088, %v1907
    %v3097 = vadd.f32 %v3090, %v1911
    %v3098 = vadd.f32 %v3092, %v3095
    %v3099 = vmul.f32 %v3098, 0.5
    %v3100 = vtanh.pop %v3099
    %v3101 = vadd.f32 %v3100, 1.0
    %v3102 = vmul.f32 %v3101, 0.5
    %v3103 = vadd.f32 %v3093, %v3096
    %v3104 = vmul.f32 %v3103, 0.5
    %v3105 = vtanh.pop %v3104
    %v3106 = vadd.f32 %v3105, 1.0
    %v3107 = vmul.f32 %v3106, 0.5
    %v3108 = vmul.f32 %v3102, %v3097
    %v3109 = vadd.f32 %v3094, %v3108
    %v3110 = vtanh.pop %v3109
    %v3111 = vsub.f32 1.0, %v3107
    %v3112 = vmul.f32 %v3111, %v3110
    %v3113 = vmul.f32 %v3107, %v2878
    %v3114 = vadd.f32 %v3112, %v3113
    %3115 = vmatprep.subr.mxu0 %v1587
    %3116 = vmatpush1.msra.mxu0 %v1586
    %3117 = vmatprep.subr.mxu0 %v1593
    %3118 = vmatpush1.msra.mxu0 %v1592
    %3119 = vmatprep.subr.mxu0 %v1599
    %3120 = vmatpush1.msra.mxu0 %v1598
    %3121 = vmatprep.subr.mxu0 %v1605
    %3122 = vmatpush1.msra.mxu0 %v1604
    %3123 = vmatprep.subr.mxu0 %v1611
    %3124 = vmatpush1.msra.mxu0 %v1610
    %3125 = vmatprep.subr.mxu0 %v1617
    %3126 = vmatpush1.msra.mxu0 %v1616
    %3127 = vmatprep.subr.mxu0 %v1623
    %3128 = vmatpush1.msra.mxu0 %v1622
    %3129 = vmatprep.subr.mxu0 %v1629
    %3130 = vmatpush1.msra.mxu0 %v1628
    %3131 = vmatprep.subr.mxu0 %v1635
    %3132 = vmatpush1.msra.mxu0 %v1634
    %3133 = vmatprep.subr.mxu0 %v1641
    %3134 = vmatpush1.msra.mxu0 %v1640
    %3135 = vmatprep.subr.mxu0 %v1647
    %3136 = vmatpush1.msra.mxu0 %v1646
    %3137 = vmatprep.subr.mxu0 %v1653
    %3138 = vmatpush1.msra.mxu0 %v1652
    %3139 = vmatprep.subr.mxu0 %v1659
    %3140 = vmatpush1.msra.mxu0 %v1658
    %3141 = vmatprep.subr.mxu0 %v1665
    %3142 = vmatpush1.msra.mxu0 %v1664
    %3143 = vmatprep.subr.mxu0 %v1671
    %3144 = vmatpush1.msra.mxu0 %v1670
    %3145 = vmatprep.subr.mxu0 %v1677
    %3146 = vmatpush1.msra.mxu0 %v1676
    %3147 = vmatprep.subr.mxu0 0.0
    %3148 = vmatpush1.msra.mxu0 0.0
    %3149 = vmatprep.subr.mxu0 0.0
    %3150 = vmatpush1.msra.mxu0 0.0
    %3151 = vmatprep.subr.mxu0 0.0
    %3152 = vmatpush1.msra.mxu0 0.0
    %3153 = vmatprep.subr.mxu0 0.0
    %3154 = vmatpush1.msra.mxu0 0.0
    %3155 = vmatprep.subr.mxu0 0.0
    %3156 = vmatpush1.msra.mxu0 0.0
    %3157 = vmatprep.subr.mxu0 0.0
    %3158 = vmatpush1.msra.mxu0 0.0
    %3159 = vmatprep.subr.mxu0 0.0
    %3160 = vmatpush1.msra.mxu0 0.0
    %3161 = vmatprep.subr.mxu0 0.0
    %3162 = vmatpush1.msra.mxu0 0.0
    %3163 = vmatprep.subr.mxu0 0.0
    %3164 = vmatpush1.msra.mxu0 0.0
    %3165 = vmatprep.subr.mxu0 0.0
    %3166 = vmatpush1.msra.mxu0 0.0
    %3167 = vmatprep.subr.mxu0 0.0
    %3168 = vmatpush1.msra.mxu0 0.0
    %3169 = vmatprep.subr.mxu0 0.0
    %3170 = vmatpush1.msra.mxu0 0.0
    %3171 = vmatprep.subr.mxu0 0.0
    %3172 = vmatpush1.msra.mxu0 0.0
    %3173 = vmatprep.subr.mxu0 0.0
    %3174 = vmatpush1.msra.mxu0 0.0
    %3175 = vmatprep.subr.mxu0 0.0
    %3176 = vmatpush1.msra.mxu0 0.0
    %3177 = vmatprep.subr.mxu0 0.0
    %3178 = vmatpush1.msra.mxu0 0.0
    %3179 = vmatprep.mubr.f32.mxu0 0.0
    %3180 = vmatmul.mubr.f32.gmra.mrb[0].mxu0 %v3114
    %v3181 = vpop.f32.mrb[0].mxu0
    %v3182 = vadd.f32 0.0, %v3181
    %v3183 = vpop.f32.mrb[0].mxu0
    %v3184 = vadd.f32 0.0, %v3183
    %3185 = vdwg.mxu0
    %3186 = vmatprep.subr.mxu0 %v1589
    %3187 = vmatpush1.msra.mxu0 %v1588
    %3188 = vmatprep.subr.mxu0 %v1595
    %3189 = vmatpush1.msra.mxu0 %v1594
    %3190 = vmatprep.subr.mxu0 %v1601
    %3191 = vmatpush1.msra.mxu0 %v1600
    %3192 = vmatprep.subr.mxu0 %v1607
    %3193 = vmatpush1.msra.mxu0 %v1606
    %3194 = vmatprep.subr.mxu0 %v1613
    %3195 = vmatpush1.msra.mxu0 %v1612
    %3196 = vmatprep.subr.mxu0 %v1619
    %3197 = vmatpush1.msra.mxu0 %v1618
    %3198 = vmatprep.subr.mxu0 %v1625
    %3199 = vmatpush1.msra.mxu0 %v1624
    %3200 = vmatprep.subr.mxu0 %v1631
    %3201 = vmatpush1.msra.mxu0 %v1630
    %3202 = vmatprep.subr.mxu0 %v1637
    %3203 = vmatpush1.msra.mxu0 %v1636
    %3204 = vmatprep.subr.mxu0 %v1643
    %3205 = vmatpush1.msra.mxu0 %v1642
    %3206 = vmatprep.subr.mxu0 %v1649
    %3207 = vmatpush1.msra.mxu0 %v1648
    %3208 = vmatprep.subr.mxu0 %v1655
    %3209 = vmatpush1.msra.mxu0 %v1654
    %3210 = vmatprep.subr.mxu0 %v1661
    %3211 = vmatpush1.msra.mxu0 %v1660
    %3212 = vmatprep.subr.mxu0 %v1667
    %3213 = vmatpush1.msra.mxu0 %v1666
    %3214 = vmatprep.subr.mxu0 %v1673
    %3215 = vmatpush1.msra.mxu0 %v1672
    %3216 = vmatprep.subr.mxu0 %v1679
    %3217 = vmatpush1.msra.mxu0 %v1678
    %3218 = vmatprep.subr.mxu0 0.0
    %3219 = vmatpush1.msra.mxu0 0.0
    %3220 = vmatprep.subr.mxu0 0.0
    %3221 = vmatpush1.msra.mxu0 0.0
    %3222 = vmatprep.subr.mxu0 0.0
    %3223 = vmatpush1.msra.mxu0 0.0
    %3224 = vmatprep.subr.mxu0 0.0
    %3225 = vmatpush1.msra.mxu0 0.0
    %3226 = vmatprep.subr.mxu0 0.0
    %3227 = vmatpush1.msra.mxu0 0.0
    %3228 = vmatprep.subr.mxu0 0.0
    %3229 = vmatpush1.msra.mxu0 0.0
    %3230 = vmatprep.subr.mxu0 0.0
    %3231 = vmatpush1.msra.mxu0 0.0
    %3232 = vmatprep.subr.mxu0 0.0
    %3233 = vmatpush1.msra.mxu0 0.0
    %3234 = vmatprep.subr.mxu0 0.0
    %3235 = vmatpush1.msra.mxu0 0.0
    %3236 = vmatprep.subr.mxu0 0.0
    %3237 = vmatpush1.msra.mxu0 0.0
    %3238 = vmatprep.subr.mxu0 0.0
    %3239 = vmatpush1.msra.mxu0 0.0
    %3240 = vmatprep.subr.mxu0 0.0
    %3241 = vmatpush1.msra.mxu0 0.0
    %3242 = vmatprep.subr.mxu0 0.0
    %3243 = vmatpush1.msra.mxu0 0.0
    %3244 = vmatprep.subr.mxu0 0.0
    %3245 = vmatpush1.msra.mxu0 0.0
    %3246 = vmatprep.subr.mxu0 0.0
    %3247 = vmatpush1.msra.mxu0 0.0
    %3248 = vmatprep.subr.mxu0 0.0
    %3249 = vmatpush1.msra.mxu0 0.0
    %3250 = vmatprep.mubr.f32.mxu0 0.0
    %3251 = vmatmul.mubr.f32.gmra.mrb[0].mxu0 %v3114
    %v3252 = vpop.f32.mrb[0].mxu0
    %v3253 = vadd.f32 0.0, %v3252
    %v3254 = vpop.f32.mrb[0].mxu0
    %v3255 = vadd.f32 0.0, %v3254
    %3256 = vdwg.mxu0
    %3257 = vmatprep.subr.mxu0 %v1591
    %3258 = vmatpush1.msra.mxu0 %v1590
    %3259 = vmatprep.subr.mxu0 %v1597
    %3260 = vmatpush1.msra.mxu0 %v1596
    %3261 = vmatprep.subr.mxu0 %v1603
    %3262 = vmatpush1.msra.mxu0 %v1602
    %3263 = vmatprep.subr.mxu0 %v1609
    %3264 = vmatpush1.msra.mxu0 %v1608
    %3265 = vmatprep.subr.mxu0 %v1615
    %3266 = vmatpush1.msra.mxu0 %v1614
    %3267 = vmatprep.subr.mxu0 %v1621
    %3268 = vmatpush1.msra.mxu0 %v1620
    %3269 = vmatprep.subr.mxu0 %v1627
    %3270 = vmatpush1.msra.mxu0 %v1626
    %3271 = vmatprep.subr.mxu0 %v1633
    %3272 = vmatpush1.msra.mxu0 %v1632
    %3273 = vmatprep.subr.mxu0 %v1639
    %3274 = vmatpush1.msra.mxu0 %v1638
    %3275 = vmatprep.subr.mxu0 %v1645
    %3276 = vmatpush1.msra.mxu0 %v1644
    %3277 = vmatprep.subr.mxu0 %v1651
    %3278 = vmatpush1.msra.mxu0 %v1650
    %3279 = vmatprep.subr.mxu0 %v1657
    %3280 = vmatpush1.msra.mxu0 %v1656
    %3281 = vmatprep.subr.mxu0 %v1663
    %3282 = vmatpush1.msra.mxu0 %v1662
    %3283 = vmatprep.subr.mxu0 %v1669
    %3284 = vmatpush1.msra.mxu0 %v1668
    %3285 = vmatprep.subr.mxu0 %v1675
    %3286 = vmatpush1.msra.mxu0 %v1674
    %3287 = vmatprep.subr.mxu0 %v1681
    %3288 = vmatpush1.msra.mxu0 %v1680
    %3289 = vmatprep.subr.mxu0 0.0
    %3290 = vmatpush1.msra.mxu0 0.0
    %3291 = vmatprep.subr.mxu0 0.0
    %3292 = vmatpush1.msra.mxu0 0.0
    %3293 = vmatprep.subr.mxu0 0.0
    %3294 = vmatpush1.msra.mxu0 0.0
    %3295 = vmatprep.subr.mxu0 0.0
    %3296 = vmatpush1.msra.mxu0 0.0
    %3297 = vmatprep.subr.mxu0 0.0
    %3298 = vmatpush1.msra.mxu0 0.0
    %3299 = vmatprep.subr.mxu0 0.0
    %3300 = vmatpush1.msra.mxu0 0.0
    %3301 = vmatprep.subr.mxu0 0.0
    %3302 = vmatpush1.msra.mxu0 0.0
    %3303 = vmatprep.subr.mxu0 0.0
    %3304 = vmatpush1.msra.mxu0 0.0
    %3305 = vmatprep.subr.mxu0 0.0
    %3306 = vmatpush1.msra.mxu0 0.0
    %3307 = vmatprep.subr.mxu0 0.0
    %3308 = vmatpush1.msra.mxu0 0.0
    %3309 = vmatprep.subr.mxu0 0.0
    %3310 = vmatpush1.msra.mxu0 0.0
    %3311 = vmatprep.subr.mxu0 0.0
    %3312 = vmatpush1.msra.mxu0 0.0
    %3313 = vmatprep.subr.mxu0 0.0
    %3314 = vmatpush1.msra.mxu0 0.0
    %3315 = vmatprep.subr.mxu0 0.0
    %3316 = vmatpush1.msra.mxu0 0.0
    %3317 = vmatprep.subr.mxu0 0.0
    %3318 = vmatpush1.msra.mxu0 0.0
    %3319 = vmatprep.subr.mxu0 0.0
    %3320 = vmatpush1.msra.mxu0 0.0
    %3321 = vmatprep.mubr.f32.mxu0 0.0
    %3322 = vmatmul.mubr.f32.gmra.mrb[0].mxu0 %v3114
    %v3323 = vpop.f32.mrb[0].mxu0
    %v3324 = vadd.f32 0.0, %v3323
    %v3325 = vpop.f32.mrb[0].mxu0
    %v3326 = vadd.f32 0.0, %v3325
    %3327 = vdwg.mxu0
    %v3328 = vadd.f32 %v3182, %v1583
    %v3329 = vadd.f32 %v3184, %v1584
    %v3330 = vadd.f32 %v3253, %v1585
    %v3331 = vadd.f32 %v3255, %v1903
    %v3332 = vadd.f32 %v3324, %v1907
    %v3333 = vadd.f32 %v3326, %v1911
    %v3334 = vadd.f32 %v3328, %v3331
    %v3335 = vmul.f32 %v3334, 0.5
    %v3336 = vtanh.pop %v3335
    %v3337 = vadd.f32 %v3336, 1.0
    %v3338 = vmul.f32 %v3337, 0.5
    %v3339 = vadd.f32 %v3329, %v3332
    %v3340 = vmul.f32 %v3339, 0.5
    %v3341 = vtanh.pop %v3340
    %v3342 = vadd.f32 %v3341, 1.0
    %v3343 = vmul.f32 %v3342, 0.5
    %v3344 = vmul.f32 %v3338, %v3333
    %v3345 = vadd.f32 %v3330, %v3344
    %v3346 = vtanh.pop %v3345
    %v3347 = vsub.f32 1.0, %v3343
    %v3348 = vmul.f32 %v3347, %v3346
    %v3349 = vmul.f32 %v3343, %v3114
    %v3350 = vadd.f32 %v3348, %v3349
    %3351 = vmatprep.subr.mxu0 %v1587
    %3352 = vmatpush1.msra.mxu0 %v1586
    %3353 = vmatprep.subr.mxu0 %v1593
    %3354 = vmatpush1.msra.mxu0 %v1592
    %3355 = vmatprep.subr.mxu0 %v1599
    %3356 = vmatpush1.msra.mxu0 %v1598
    %3357 = vmatprep.subr.mxu0 %v1605
    %3358 = vmatpush1.msra.mxu0 %v1604
    %3359 = vmatprep.subr.mxu0 %v1611
    %3360 = vmatpush1.msra.mxu0 %v1610
    %3361 = vmatprep.subr.mxu0 %v1617
    %3362 = vmatpush1.msra.mxu0 %v1616
    %3363 = vmatprep.subr.mxu0 %v1623
    %3364 = vmatpush1.msra.mxu0 %v1622
    %3365 = vmatprep.subr.mxu0 %v1629
    %3366 = vmatpush1.msra.mxu0 %v1628
    %3367 = vmatprep.subr.mxu0 %v1635
    %3368 = vmatpush1.msra.mxu0 %v1634
    %3369 = vmatprep.subr.mxu0 %v1641
    %3370 = vmatpush1.msra.mxu0 %v1640
    %3371 = vmatprep.subr.mxu0 %v1647
    %3372 = vmatpush1.msra.mxu0 %v1646
    %3373 = vmatprep.subr.mxu0 %v1653
    %3374 = vmatpush1.msra.mxu0 %v1652
    %3375 = vmatprep.subr.mxu0 %v1659
    %3376 = vmatpush1.msra.mxu0 %v1658
    %3377 = vmatprep.subr.mxu0 %v1665
    %3378 = vmatpush1.msra.mxu0 %v1664
    %3379 = vmatprep.subr.mxu0 %v1671
    %3380 = vmatpush1.msra.mxu0 %v1670
    %3381 = vmatprep.subr.mxu0 %v1677
    %3382 = vmatpush1.msra.mxu0 %v1676
    %3383 = vmatprep.subr.mxu0 0.0
    %3384 = vmatpush1.msra.mxu0 0.0
    %3385 = vmatprep.subr.mxu0 0.0
    %3386 = vmatpush1.msra.mxu0 0.0
    %3387 = vmatprep.subr.mxu0 0.0
    %3388 = vmatpush1.msra.mxu0 0.0
    %3389 = vmatprep.subr.mxu0 0.0
    %3390 = vmatpush1.msra.mxu0 0.0
    %3391 = vmatprep.subr.mxu0 0.0
    %3392 = vmatpush1.msra.mxu0 0.0
    %3393 = vmatprep.subr.mxu0 0.0
    %3394 = vmatpush1.msra.mxu0 0.0
    %3395 = vmatprep.subr.mxu0 0.0
    %3396 = vmatpush1.msra.mxu0 0.0
    %3397 = vmatprep.subr.mxu0 0.0
    %3398 = vmatpush1.msra.mxu0 0.0
    %3399 = vmatprep.subr.mxu0 0.0
    %3400 = vmatpush1.msra.mxu0 0.0
    %3401 = vmatprep.subr.mxu0 0.0
    %3402 = vmatpush1.msra.mxu0 0.0
    %3403 = vmatprep.subr.mxu0 0.0
    %3404 = vmatpush1.msra.mxu0 0.0
    %3405 = vmatprep.subr.mxu0 0.0
    %3406 = vmatpush1.msra.mxu0 0.0
    %3407 = vmatprep.subr.mxu0 0.0
    %3408 = vmatpush1.msra.mxu0 0.0
    %3409 = vmatprep.subr.mxu0 0.0
    %3410 = vmatpush1.msra.mxu0 0.0
    %3411 = vmatprep.subr.mxu0 0.0
    %3412 = vmatpush1.msra.mxu0 0.0
    %3413 = vmatprep.subr.mxu0 0.0
    %3414 = vmatpush1.msra.mxu0 0.0
    %3415 = vmatprep.mubr.f32.mxu0 0.0
    %3416 = vmatmul.mubr.f32.gmra.mrb[0].mxu0 %v3350
    %v3417 = vpop.f32.mrb[0].mxu0
    %v3418 = vadd.f32 0.0, %v3417
    %v3419 = vpop.f32.mrb[0].mxu0
    %v3420 = vadd.f32 0.0, %v3419
    %3421 = vdwg.mxu0
    %3422 = vmatprep.subr.mxu0 %v1589
    %3423 = vmatpush1.msra.mxu0 %v1588
    %3424 = vmatprep.subr.mxu0 %v1595
    %3425 = vmatpush1.msra.mxu0 %v1594
    %3426 = vmatprep.subr.mxu0 %v1601
    %3427 = vmatpush1.msra.mxu0 %v1600
    %3428 = vmatprep.subr.mxu0 %v1607
    %3429 = vmatpush1.msra.mxu0 %v1606
    %3430 = vmatprep.subr.mxu0 %v1613
    %3431 = vmatpush1.msra.mxu0 %v1612
    %3432 = vmatprep.subr.mxu0 %v1619
    %3433 = vmatpush1.msra.mxu0 %v1618
    %3434 = vmatprep.subr.mxu0 %v1625
    %3435 = vmatpush1.msra.mxu0 %v1624
    %3436 = vmatprep.subr.mxu0 %v1631
    %3437 = vmatpush1.msra.mxu0 %v1630
    %3438 = vmatprep.subr.mxu0 %v1637
    %3439 = vmatpush1.msra.mxu0 %v1636
    %3440 = vmatprep.subr.mxu0 %v1643
    %3441 = vmatpush1.msra.mxu0 %v1642
    %3442 = vmatprep.subr.mxu0 %v1649
    %3443 = vmatpush1.msra.mxu0 %v1648
    %3444 = vmatprep.subr.mxu0 %v1655
    %3445 = vmatpush1.msra.mxu0 %v1654
    %3446 = vmatprep.subr.mxu0 %v1661
    %3447 = vmatpush1.msra.mxu0 %v1660
    %3448 = vmatprep.subr.mxu0 %v1667
    %3449 = vmatpush1.msra.mxu0 %v1666
    %3450 = vmatprep.subr.mxu0 %v1673
    %3451 = vmatpush1.msra.mxu0 %v1672
    %3452 = vmatprep.subr.mxu0 %v1679
    %3453 = vmatpush1.msra.mxu0 %v1678
    %3454 = vmatprep.subr.mxu0 0.0
    %3455 = vmatpush1.msra.mxu0 0.0
    %3456 = vmatprep.subr.mxu0 0.0
    %3457 = vmatpush1.msra.mxu0 0.0
    %3458 = vmatprep.subr.mxu0 0.0
    %3459 = vmatpush1.msra.mxu0 0.0
    %3460 = vmatprep.subr.mxu0 0.0
    %3461 = vmatpush1.msra.mxu0 0.0
    %3462 = vmatprep.subr.mxu0 0.0
    %3463 = vmatpush1.msra.mxu0 0.0
    %3464 = vmatprep.subr.mxu0 0.0
    %3465 = vmatpush1.msra.mxu0 0.0
    %3466 = vmatprep.subr.mxu0 0.0
    %3467 = vmatpush1.msra.mxu0 0.0
    %3468 = vmatprep.subr.mxu0 0.0
    %3469 = vmatpush1.msra.mxu0 0.0
    %3470 = vmatprep.subr.mxu0 0.0
    %3471 = vmatpush1.msra.mxu0 0.0
    %3472 = vmatprep.subr.mxu0 0.0
    %3473 = vmatpush1.msra.mxu0 0.0
    %3474 = vmatprep.subr.mxu0 0.0
    %3475 = vmatpush1.msra.mxu0 0.0
    %3476 = vmatprep.subr.mxu0 0.0
    %3477 = vmatpush1.msra.mxu0 0.0
    %3478 = vmatprep.subr.mxu0 0.0
    %3479 = vmatpush1.msra.mxu0 0.0
    %3480 = vmatprep.subr.mxu0 0.0
    %3481 = vmatpush1.msra.mxu0 0.0
    %3482 = vmatprep.subr.mxu0 0.0
    %3483 = vmatpush1.msra.mxu0 0.0
    %3484 = vmatprep.subr.mxu0 0.0
    %3485 = vmatpush1.msra.mxu0 0.0
    %3486 = vmatprep.mubr.f32.mxu0 0.0
    %3487 = vmatmul.mubr.f32.gmra.mrb[0].mxu0 %v3350
    %v3488 = vpop.f32.mrb[0].mxu0
    %v3489 = vadd.f32 0.0, %v3488
    %v3490 = vpop.f32.mrb[0].mxu0
    %v3491 = vadd.f32 0.0, %v3490
    %3492 = vdwg.mxu0
    %3493 = vmatprep.subr.mxu0 %v1591
    %3494 = vmatpush1.msra.mxu0 %v1590
    %3495 = vmatprep.subr.mxu0 %v1597
    %3496 = vmatpush1.msra.mxu0 %v1596
    %3497 = vmatprep.subr.mxu0 %v1603
    %3498 = vmatpush1.msra.mxu0 %v1602
    %3499 = vmatprep.subr.mxu0 %v1609
    %3500 = vmatpush1.msra.mxu0 %v1608
    %3501 = vmatprep.subr.mxu0 %v1615
    %3502 = vmatpush1.msra.mxu0 %v1614
    %3503 = vmatprep.subr.mxu0 %v1621
    %3504 = vmatpush1.msra.mxu0 %v1620
    %3505 = vmatprep.subr.mxu0 %v1627
    %3506 = vmatpush1.msra.mxu0 %v1626
    %3507 = vmatprep.subr.mxu0 %v1633
    %3508 = vmatpush1.msra.mxu0 %v1632
    %3509 = vmatprep.subr.mxu0 %v1639
    %3510 = vmatpush1.msra.mxu0 %v1638
    %3511 = vmatprep.subr.mxu0 %v1645
    %3512 = vmatpush1.msra.mxu0 %v1644
    %3513 = vmatprep.subr.mxu0 %v1651
    %3514 = vmatpush1.msra.mxu0 %v1650
    %3515 = vmatprep.subr.mxu0 %v1657
    %3516 = vmatpush1.msra.mxu0 %v1656
    %3517 = vmatprep.subr.mxu0 %v1663
    %3518 = vmatpush1.msra.mxu0 %v1662
    %3519 = vmatprep.subr.mxu0 %v1669
    %3520 = vmatpush1.msra.mxu0 %v1668
    %3521 = vmatprep.subr.mxu0 %v1675
    %3522 = vmatpush1.msra.mxu0 %v1674
    %3523 = vmatprep.subr.mxu0 %v1681
    %3524 = vmatpush1.msra.mxu0 %v1680
    %3525 = vmatprep.subr.mxu0 0.0
    %3526 = vmatpush1.msra.mxu0 0.0
    %3527 = vmatprep.subr.mxu0 0.0
    %3528 = vmatpush1.msra.mxu0 0.0
    %3529 = vmatprep.subr.mxu0 0.0
    %3530 = vmatpush1.msra.mxu0 0.0
    %3531 = vmatprep.subr.mxu0 0.0
    %3532 = vmatpush1.msra.mxu0 0.0
    %3533 = vmatprep.subr.mxu0 0.0
    %3534 = vmatpush1.msra.mxu0 0.0
    %3535 = vmatprep.subr.mxu0 0.0
    %3536 = vmatpush1.msra.mxu0 0.0
    %3537 = vmatprep.subr.mxu0 0.0
    %3538 = vmatpush1.msra.mxu0 0.0
    %3539 = vmatprep.subr.mxu0 0.0
    %3540 = vmatpush1.msra.mxu0 0.0
    %3541 = vmatprep.subr.mxu0 0.0
    %3542 = vmatpush1.msra.mxu0 0.0
    %3543 = vmatprep.subr.mxu0 0.0
    %3544 = vmatpush1.msra.mxu0 0.0
    %3545 = vmatprep.subr.mxu0 0.0
    %3546 = vmatpush1.msra.mxu0 0.0
    %3547 = vmatprep.subr.mxu0 0.0
    %3548 = vmatpush1.msra.mxu0 0.0
    %3549 = vmatprep.subr.mxu0 0.0
    %3550 = vmatpush1.msra.mxu0 0.0
    %3551 = vmatprep.subr.mxu0 0.0
    %3552 = vmatpush1.msra.mxu0 0.0
    %3553 = vmatprep.subr.mxu0 0.0
    %3554 = vmatpush1.msra.mxu0 0.0
    %3555 = vmatprep.subr.mxu0 0.0
    %3556 = vmatpush1.msra.mxu0 0.0
    %3557 = vmatprep.mubr.f32.mxu0 0.0
    %3558 = vmatmul.mubr.f32.gmra.mrb[0].mxu0 %v3350
    %v3559 = vpop.f32.mrb[0].mxu0
    %v3560 = vadd.f32 0.0, %v3559
    %v3561 = vpop.f32.mrb[0].mxu0
    %v3562 = vadd.f32 0.0, %v3561
    %3563 = vdwg.mxu0
    %v3564 = vadd.f32 %v3418, %v1583
    %v3565 = vadd.f32 %v3420, %v1584
    %v3566 = vadd.f32 %v3489, %v1585
    %v3567 = vadd.f32 %v3491, %v1903
    %v3568 = vadd.f32 %v3560, %v1907
    %v3569 = vadd.f32 %v3562, %v1911
    %v3570 = vadd.f32 %v3564, %v3567
    %v3571 = vmul.f32 %v3570, 0.5
    %v3572 = vtanh.pop %v3571
    %v3573 = vadd.f32 %v3572, 1.0
    %v3574 = vmul.f32 %v3573, 0.5
    %v3575 = vadd.f32 %v3565, %v3568
    %v3576 = vmul.f32 %v3575, 0.5
    %v3577 = vtanh.pop %v3576
    %v3578 = vadd.f32 %v3577, 1.0
    %v3579 = vmul.f32 %v3578, 0.5
    %v3580 = vmul.f32 %v3574, %v3569
    %v3581 = vadd.f32 %v3566, %v3580
    %v3582 = vtanh.pop %v3581
    %v3583 = vsub.f32 1.0, %v3579
    %v3584 = vmul.f32 %v3583, %v3582
    %v3585 = vmul.f32 %v3579, %v3350
    %v3586 = vadd.f32 %v3584, %v3585
    %v3587 = vld [vmem:[%s10] sm:$0x1]
    %v3589 = vlaneseq
    %v3590 = vshrl.u32 %v3589, 7
    %v3591 = vsub.s32 0, %v3590
    %v3592 = vrot.slane %v3587, %v3591
    %v3594 = vmul.f32 %v1934, %v3592
    %v3595 = vmul.f32 %v2170, %v3592
    %v3596 = vmul.f32 %v2406, %v3592
    %v3597 = vmul.f32 %v2642, %v3592
    %v3598 = vmul.f32 %v2878, %v3592
    %v3599 = vmul.f32 %v3114, %v3592
    %v3600 = vmul.f32 %v3350, %v3592
    %v3601 = vmul.f32 %v3586, %v3592
    %3602 = vadd.xlane.f32.xlu0 %v3594
    %v3603 = vpop.xlane.xlu0 %3602
    %3604 = vadd.xlane.f32.xlu0 %v3595
    %v3605 = vpop.xlane.xlu0 %3604
    %3606 = vadd.xlane.f32.xlu0 %v3596
    %v3607 = vpop.xlane.xlu0 %3606
    %3608 = vadd.xlane.f32.xlu0 %v3597
    %v3609 = vpop.xlane.xlu0 %3608
    %3610 = vadd.xlane.f32.xlu0 %v3598
    %v3611 = vpop.xlane.xlu0 %3610
    %3612 = vadd.xlane.f32.xlu0 %v3599
    %v3613 = vpop.xlane.xlu0 %3612
    %3614 = vadd.xlane.f32.xlu0 %v3600
    %v3615 = vpop.xlane.xlu0 %3614
    %3616 = vadd.xlane.f32.xlu0 %v3601
    %v3617 = vpop.xlane.xlu0 %3616
    %v3618 = vld [vmem:[#allocation2] sm:$0x1]
    %v3620 = vlaneseq
    %v3621 = vshrl.u32 %v3620, 7
    %v3622 = vsub.s32 0, %v3621
    %v3623 = vrot.slane %v3618, %v3622
    %3624 = vset.pattern.permute.xlu0 0
    %3625 = vperm.xlu0 %3624, %v3623
    %v3626 = vpop.permute.xlu0 %3625
    %v3628 = vadd.f32 %v3603, %v3626
    %v3629 = vadd.f32 %v3605, %v3626
    %v3630 = vadd.f32 %v3607, %v3626
    %v3631 = vadd.f32 %v3609, %v3626
    %v3632 = vadd.f32 %v3611, %v3626
    %v3633 = vadd.f32 %v3613, %v3626
    %v3634 = vadd.f32 %v3615, %v3626
    %v3635 = vadd.f32 %v3617, %v3626
    %v3644 = vlaneseq
    %v3645 = vand.u32 %v3644, 127
    %v3646 = vlaneseq
    %v3647 = vshrl.u32 %v3646, 7
    %v3648 = vsub.s32 %v3645, %v3647
    %v3649 = vrot.slane %v3628, %v3648
    %v3650 = vlaneseq
    %v3651 = vshrl.u32 %v3650, 7
    %v3652 = vsub.s32 %v3645, %v3651
    %v3653 = vrot.slane %v3629, %v3652
    %v3654 = vlaneseq
    %v3655 = vshrl.u32 %v3654, 7
    %v3656 = vsub.s32 %v3645, %v3655
    %v3657 = vrot.slane %v3630, %v3656
    %v3658 = vlaneseq
    %v3659 = vshrl.u32 %v3658, 7
    %v3660 = vsub.s32 %v3645, %v3659
    %v3661 = vrot.slane %v3631, %v3660
    %v3662 = vlaneseq
    %v3663 = vshrl.u32 %v3662, 7
    %v3664 = vsub.s32 %v3645, %v3663
    %v3665 = vrot.slane %v3632, %v3664
    %v3666 = vlaneseq
    %v3667 = vshrl.u32 %v3666, 7
    %v3668 = vsub.s32 %v3645, %v3667
    %v3669 = vrot.slane %v3633, %v3668
    %v3670 = vlaneseq
    %v3671 = vshrl.u32 %v3670, 7
    %v3672 = vsub.s32 %v3645, %v3671
    %v3673 = vrot.slane %v3634, %v3672
    %v3674 = vlaneseq
    %v3675 = vshrl.u32 %v3674, 7
    %v3676 = vsub.s32 %v3645, %v3675
    %v3677 = vrot.slane %v3635, %v3676
    %vm3678 = vcmask 1041409
    %v3679 = vsel %vm3678, %v3653, %v3649
    %vm3680 = vcmask 1042434
    %v3681 = vsel %vm3680, %v3657, %v3679
    %vm3682 = vcmask 1043459
    %v3683 = vsel %vm3682, %v3661, %v3681
    %vm3684 = vcmask 1044484
    %v3685 = vsel %vm3684, %v3665, %v3683
    %vm3686 = vcmask 1045509
    %v3687 = vsel %vm3686, %v3669, %v3685
    %vm3688 = vcmask 1046534
    %v3689 = vsel %vm3688, %v3673, %v3687
    %vm3690 = vcmask 1047559
    %v3691 = vsel %vm3690, %v3677, %v3689
    %vm3693 = vcmask 64512
    %3694 = vst.msk [vmem:[#allocation8] sm:$0xff] %vm3693, %v3691
    // Predicated region
    $region58: #{tpu_custom_call.1} parent=1 // pred_check
      _
    $region59: #{tpu_custom_call.1} parent=1 // pred_check_branch
      %3696 = sbr.rel (0) target = $region61
    $region60: #{tpu_custom_call.1} parent=1 // pred_region
      %s3698 = ssub.s32 128, 128
      %3699 = vsyncadd [#allocation5], %s3698
      %s3701 = sshll.u32 [#allocation8], 4
      %s3702 = int_to_ptr.vmem [resolvable:$true] %s3701
      %3704 = dma.vmem_to_hbm [thread:$0]  %s3702, 128, %s12, [#allocation5]
    $region61: #{tpu_custom_call.1} parent=1 // pred_fallthru
      _
    // Predicated region
    $region62: #{tpu_custom_call.1} parent=1 // pred_check
      _
    $region63: #{tpu_custom_call.1} parent=1 // pred_check_branch
      %3706 = sbr.rel (0) target = $region65
    $region64: #{tpu_custom_call.1} parent=1 // pred_region
      %3707 = dma.done [#allocation5], 128
    $region65: #{tpu_custom_call.1} parent=1 // pred_fallthru
      _
    %3708 = vsyncpa [#allocation4], 1
    %3709 = vsyncpa [#allocation7], 1
    %3710 = vsyncpa [#allocation5], 1

</llo_original>
